<compile_context>
chip_gen: v7x
topology: tpu7x:2x2x1
jax: 0.10.0
libtpu: 0.0.40
codegen_flags: <defaults>
</compile_context>

<pallas_src>
import functools
import math

import jax
import jax.numpy as jnp
from jax import lax
from jax.experimental import pallas as pl
from jax.experimental.pallas import tpu as pltpu

MXU_DTYPE = jnp.bfloat16   # MXU operand dtype; accumulation is always f32
LN_EPS = 1e-5              # nn.LayerNorm default


# -----------------------------------------------------------------------------
# helpers
# -----------------------------------------------------------------------------
def _row_tile(n, cap=512):
    """Largest multiple-of-8 tile <= cap dividing n (or the full dim)."""
    if n <= cap:
        return n
    t = (cap // 8) * 8
    while t >= 8:
        if n % t == 0:
            return t
        t -= 8
    return n


def _layer_norm(z, gamma, beta, eps):
    mu = jnp.mean(z, axis=-1, keepdims=True)
    var = jnp.mean(jnp.square(z - mu), axis=-1, keepdims=True)
    return (z - mu) * lax.rsqrt(var + eps) * gamma + beta


def _attn_core(q, k, v, n_heads):
    """q:(Sq,D) k,v:(Sk,D) f32 -> (Sq,D) f32, lane-dense (scale already in Q)."""
    d = q.shape[-1]
    dh = d // n_heads
    outs = []
    for h in range(n_heads):                      # static, small head count
        sl = slice(h * dh, (h + 1) * dh)
        qh = q[:, sl].astype(MXU_DTYPE)
        kh = k[:, sl].astype(MXU_DTYPE)
        vh = v[:, sl].astype(MXU_DTYPE)
        # contract last dims directly: no materialized K transpose
        s = lax.dot_general(qh, kh, (((1,), (1,)), ((), ())),
                            preferred_element_type=jnp.float32)
        m = jnp.max(s, axis=-1, keepdims=True)
        e = jnp.exp(s - m)
        p = e * pl.reciprocal(jnp.sum(e, axis=-1, keepdims=True), approx=True)
        outs.append(jnp.dot(p.astype(MXU_DTYPE), vh,
                            preferred_element_type=jnp.float32))
    # single lane-dense (Sq, D) value; no per-head masked stores
    return jnp.concatenate(outs, axis=-1)


# -----------------------------------------------------------------------------
# Pallas kernels (one kernel per transformer sub-block)
# -----------------------------------------------------------------------------
def _self_attn_block_kernel(x_ref, wqkv_ref, bqkv_ref, wo_ref, bo_ref,
                            g_ref, bln_ref, o_ref, *, n_heads, eps):
    # out = LayerNorm(x + MHA(x) @ Wo + bo), fully fused per batch element.
    x = x_ref[0]                                   # (S, D) f32
    d = x.shape[-1]
    qkv = jnp.dot(x.astype(MXU_DTYPE), wqkv_ref[...],
                  preferred_element_type=jnp.float32) + bqkv_ref[...]
    attn = _attn_core(qkv[:, :d], qkv[:, d:2 * d], qkv[:, 2 * d:], n_heads)
    z = x + jnp.dot(attn.astype(MXU_DTYPE), wo_ref[...],
                    preferred_element_type=jnp.float32) + bo_ref[...]
    o_ref[0] = _layer_norm(z, g_ref[...], bln_ref[...], eps).astype(o_ref.dtype)


def _cross_attn_block_kernel(x_ref, enc_ref, wq_ref, bq_ref, wkv_ref, bkv_ref,
                             wo_ref, bo_ref, g_ref, bln_ref, o_ref,
                             *, n_heads, eps):
    x = x_ref[0]                                   # (Sq, D) f32
    enc = enc_ref[0]                               # (Sk, D) f32
    d = x.shape[-1]
    q = jnp.dot(x.astype(MXU_DTYPE), wq_ref[...],
                preferred_element_type=jnp.float32) + bq_ref[...]
    kv = jnp.dot(enc.astype(MXU_DTYPE), wkv_ref[...],
                 preferred_element_type=jnp.float32) + bkv_ref[...]
    attn = _attn_core(q, kv[:, :d], kv[:, d:], n_heads)
    z = x + jnp.dot(attn.astype(MXU_DTYPE), wo_ref[...],
                    preferred_element_type=jnp.float32) + bo_ref[...]
    o_ref[0] = _layer_norm(z, g_ref[...], bln_ref[...], eps).astype(o_ref.dtype)


def _ffn_block_kernel(x_ref, w1_ref, b1_ref, w2_ref, b2_ref, g_ref, bln_ref,
                      o_ref, *, eps):
    # out = LayerNorm(x + relu(x @ W1 + b1) @ W2 + b2)
    x = x_ref[...]                                 # (TM, D) f32
    h = jnp.dot(x.astype(MXU_DTYPE), w1_ref[...],
                preferred_element_type=jnp.float32) + b1_ref[...]
    h = jnp.maximum(h, 0.0)
    z = x + jnp.dot(h.astype(MXU_DTYPE), w2_ref[...],
                    preferred_element_type=jnp.float32) + b2_ref[...]
    o_ref[...] = _layer_norm(z, g_ref[...], bln_ref[...], eps).astype(o_ref.dtype)


def _out_proj_kernel(x_ref, w_ref, b_ref, o_ref, *, apply_softmax):
    y = jnp.dot(x_ref[...].astype(MXU_DTYPE), w_ref[...],
                preferred_element_type=jnp.float32) + b_ref[...]
    if apply_softmax:
        m = jnp.max(y, axis=-1, keepdims=True)
        e = jnp.exp(y - m)
        y = e / jnp.sum(e, axis=-1, keepdims=True)   # exact divide for output
    o_ref[...] = y.astype(o_ref.dtype)


# -----------------------------------------------------------------------------
# kernel wrappers
# -----------------------------------------------------------------------------
def self_attention_block(x, mha, ln_g, ln_b, n_heads):
    b, s, d = x.shape
    return pl.pallas_call(
        functools.partial(_self_attn_block_kernel, n_heads=n_heads, eps=LN_EPS),
        grid=(b,),
        in_specs=[pl.BlockSpec((1, s, d), lambda i: (i, 0, 0)),
                  pl.BlockSpec((d, 3 * d), lambda i: (0, 0)),
                  pl.BlockSpec((1, 3 * d), lambda i: (0, 0)),
                  pl.BlockSpec((d, d), lambda i: (0, 0)),
                  pl.BlockSpec((1, d), lambda i: (0, 0)),
                  pl.BlockSpec((1, d), lambda i: (0, 0)),
                  pl.BlockSpec((1, d), lambda i: (0, 0))],
        out_specs=pl.BlockSpec((1, s, d), lambda i: (i, 0, 0)),
        out_shape=jax.ShapeDtypeStruct((b, s, d), jnp.float32),
        compiler_params=pltpu.CompilerParams(
            dimension_semantics=("parallel",)),
    )(x, mha["w_qkv"], mha["b_qkv"], mha["wo"], mha["bo"], ln_g, ln_b)


def cross_attention_block(x, enc_out, mha, ln_g, ln_b, n_heads):
    b, sq, d = x.shape
    sk = enc_out.shape[1]
    return pl.pallas_call(
        functools.partial(_cross_attn_block_kernel, n_heads=n_heads, eps=LN_EPS),
        grid=(b,),
        in_specs=[pl.BlockSpec((1, sq, d), lambda i: (i, 0, 0)),
                  pl.BlockSpec((1, sk, d), lambda i: (i, 0, 0)),
                  pl.BlockSpec((d, d), lambda i: (0, 0)),
                  pl.BlockSpec((1, d), lambda i: (0, 0)),
                  pl.BlockSpec((d, 2 * d), lambda i: (0, 0)),
                  pl.BlockSpec((1, 2 * d), lambda i: (0, 0)),
                  pl.BlockSpec((d, d), lambda i: (0, 0)),
                  pl.BlockSpec((1, d), lambda i: (0, 0)),
                  pl.BlockSpec((1, d), lambda i: (0, 0)),
                  pl.BlockSpec((1, d), lambda i: (0, 0))],
        out_specs=pl.BlockSpec((1, sq, d), lambda i: (i, 0, 0)),
        out_shape=jax.ShapeDtypeStruct((b, sq, d), jnp.float32),
        compiler_params=pltpu.CompilerParams(
            dimension_semantics=("parallel",)),
    )(x, enc_out, mha["wq"], mha["bq"], mha["w_kv"], mha["b_kv"],
      mha["wo"], mha["bo"], ln_g, ln_b)


def ffn_block(x, ffn, ln_g, ln_b):
    b, s, d = x.shape
    n = b * s
    hid = ffn["w1"].shape[1]
    tm = _row_tile(n)
    out = pl.pallas_call(
        functools.partial(_ffn_block_kernel, eps=LN_EPS),
        grid=(n // tm,),
        in_specs=[pl.BlockSpec((tm, d), lambda i: (i, 0)),
                  pl.BlockSpec((d, hid), lambda i: (0, 0)),
                  pl.BlockSpec((1, hid), lambda i: (0, 0)),
                  pl.BlockSpec((hid, d), lambda i: (0, 0)),
                  pl.BlockSpec((1, d), lambda i: (0, 0)),
                  pl.BlockSpec((1, d), lambda i: (0, 0)),
                  pl.BlockSpec((1, d), lambda i: (0, 0))],
        out_specs=pl.BlockSpec((tm, d), lambda i: (i, 0)),
        out_shape=jax.ShapeDtypeStruct((n, d), jnp.float32),
        compiler_params=pltpu.CompilerParams(
            dimension_semantics=("parallel",)),
    )(x.reshape(n, d), ffn["w1"], ffn["b1"], ffn["w2"], ffn["b2"], ln_g, ln_b)
    return out.reshape(b, s, d)


def output_projection(x, w, b, apply_softmax):
    bsz, s, d = x.shape
    n = bsz * s
    vocab = w.shape[1]
    tm = _row_tile(n)
    out = pl.pallas_call(
        functools.partial(_out_proj_kernel, apply_softmax=apply_softmax),
        grid=(n // tm,),
        in_specs=[pl.BlockSpec((tm, d), lambda i: (i, 0)),
                  pl.BlockSpec((d, vocab), lambda i: (0, 0)),
                  pl.BlockSpec((1, vocab), lambda i: (0, 0))],
        out_specs=pl.BlockSpec((tm, vocab), lambda i: (i, 0)),
        out_shape=jax.ShapeDtypeStruct((n, vocab), jnp.float32),
        compiler_params=pltpu.CompilerParams(
            dimension_semantics=("parallel",)),
    )(x.reshape(n, d), w, b)
    return out.reshape(bsz, s, vocab)


# -----------------------------------------------------------------------------
# Transformer blocks (dropout_rate=0 -> Identity, so dropout is a no-op)
# -----------------------------------------------------------------------------
def encoder_block(x, p, n_heads):
    x = self_attention_block(x, p["mha"], p["ln1_g"], p["ln1_b"], n_heads)
    x = ffn_block(x, p["ffn"], p["ln2_g"], p["ln2_b"])
    return x


def decoder_block(x, enc_out, p, n_heads):
    x = self_attention_block(x, p["self_mha"], p["ln1_g"], p["ln1_b"], n_heads)
    x = cross_attention_block(x, enc_out, p["cross_mha"],
                              p["ln2_g"], p["ln2_b"], n_heads)
    x = ffn_block(x, p["ffn"], p["ln3_g"], p["ln3_b"])
    return x


def positional_encoding(max_len, d_model):
    pos = jnp.arange(max_len, dtype=jnp.float32)[:, None]
    dims = jnp.arange(d_model)
    angle_rates = 1.0 / (10000.0 ** ((dims // 2 * 2).astype(jnp.float32) / d_model))
    angles = pos * angle_rates[None, :]
    pe = jnp.zeros((max_len, d_model), jnp.float32)
    pe = pe.at[:, 0::2].set(jnp.sin(angles[:, 0::2]))
    pe = pe.at[:, 1::2].set(jnp.cos(angles[:, 1::2]))
    return pe[None]  # (1, max_len, d_model)


def transformer_forward(params, inputs, outputs, *, d_model, n_heads,
                        training=False, encoder_mask=None, decoder_mask=None):
    # TODO(synk): masks unsupported — module is used with the default None masks.
    pe = params["pos_enc"]
    scale = d_model ** 0.5

    # encoder (embedding gather + positional add stay in XLA)
    x = jnp.take(params["enc_emb"], inputs, axis=0) * scale
    x = x + pe[:, : inputs.shape[1], :]
    for blk in params["encoder"]:
        x = encoder_block(x, blk, n_heads)
    enc_out = x

    # decoder
    x = jnp.take(params["dec_emb"], outputs, axis=0) * scale
    x = x + pe[:, : outputs.shape[1], :]
    for blk in params["decoder"]:
        x = decoder_block(x, enc_out, blk, n_heads)

    # output projection; softmax fused in the same kernel (inference path)
    return output_projection(x, params["w_out"], params["b_out"],
                             apply_softmax=not training)


# -----------------------------------------------------------------------------
# Deterministic parameter construction (weights pre-cast to bf16, scale folded
# into the Q projection, biases / LN params kept f32)
# -----------------------------------------------------------------------------
def _linear_params(key, fan_in, fan_out):
    kw, kb = jax.random.split(key)
    bound = 1.0 / math.sqrt(fan_in)
    w = jax.random.uniform(kw, (fan_in, fan_out), jnp.float32, -bound, bound)
    b = jax.random.uniform(kb, (fan_out,), jnp.float32, -bound, bound)
    return w, b


def _mha_params(key, d_model, n_heads):
    ks = jax.random.split(key, 4)
    ws, bs = {}, {}
    for name, k in zip(("q", "k", "v", "o"), ks):
        w, b = _linear_params(k, d_model, d_model)
        ws[name], bs[name] = w, b
    scale = 1.0 / math.sqrt(d_model // n_heads)
    wq = ws["q"] * scale                 # fold 1/sqrt(dh) into Q projection
    bq = bs["q"] * scale
    return {
        "w_qkv": jnp.concatenate([wq, ws["k"], ws["v"]], axis=1).astype(MXU_DTYPE),
        "b_qkv": jnp.concatenate([bq, bs["k"], bs["v"]]).reshape(1, -1),
        "w_kv": jnp.concatenate([ws["k"], ws["v"]], axis=1).astype(MXU_DTYPE),
        "b_kv": jnp.concatenate([bs["k"], bs["v"]]).reshape(1, -1),
        "wq": wq.astype(MXU_DTYPE), "bq": bq.reshape(1, -1),
        "wo": ws["o"].astype(MXU_DTYPE), "bo": bs["o"].reshape(1, -1),
    }


def _ffn_params(key, d_model, hidden):
    k1, k2 = jax.random.split(key)
    w1, b1 = _linear_params(k1, d_model, hidden)
    w2, b2 = _linear_params(k2, hidden, d_model)
    return {"w1": w1.astype(MXU_DTYPE), "b1": b1.reshape(1, -1),
            "w2": w2.astype(MXU_DTYPE), "b2": b2.reshape(1, -1)}


def _ln_pair(d_model):
    return jnp.ones((1, d_model), jnp.float32), jnp.zeros((1, d_model), jnp.float32)


def _encoder_block_params(key, d_model, hidden, n_heads):
    k1, k2 = jax.random.split(key)
    g1, b1 = _ln_pair(d_model)
    g2, b2 = _ln_pair(d_model)
    return {"mha": _mha_params(k1, d_model, n_heads),
            "ffn": _ffn_params(k2, d_model, hidden),
            "ln1_g": g1, "ln1_b": b1, "ln2_g": g2, "ln2_b": b2}


def _decoder_block_params(key, d_model, hidden, n_heads):
    k1, k2, k3 = jax.random.split(key, 3)
    g1, b1 = _ln_pair(d_model)
    g2, b2 = _ln_pair(d_model)
    g3, b3 = _ln_pair(d_model)
    return {"self_mha": _mha_params(k1, d_model, n_heads),
            "cross_mha": _mha_params(k2, d_model, n_heads),
            "ffn": _ffn_params(k3, d_model, hidden),
            "ln1_g": g1, "ln1_b": b1, "ln2_g": g2, "ln2_b": b2,
            "ln3_g": g3, "ln3_b": b3}


def make_transformer_params(key, *, d_model, n_heads, ffn_hidden, n_enc, n_dec,
                            vocab_size, max_len):
    keys = jax.random.split(key, 4 + n_enc + n_dec)
    params = {
        "enc_emb": jax.random.normal(keys[0], (vocab_size, d_model), jnp.float32),
        "dec_emb": jax.random.normal(keys[1], (vocab_size, d_model), jnp.float32),
        "pos_enc": positional_encoding(max_len, d_model),
    }
    w_out, b_out = _linear_params(keys[2], d_model, vocab_size)
    params["w_out"] = w_out.astype(MXU_DTYPE)
    params["b_out"] = b_out.reshape(1, -1)
    params["encoder"] = [
        _encoder_block_params(keys[4 + i], d_model, ffn_hidden, n_heads)
        for i in range(n_enc)]
    params["decoder"] = [
        _decoder_block_params(keys[4 + n_enc + i], d_model, ffn_hidden, n_heads)
        for i in range(n_dec)]
    return params


# -----------------------------------------------------------------------------
if __name__ == "__main__":
    # small, lane-friendly toy config (d_model / vocab multiples of 128)
    D_MODEL = 128
    N_HEADS = 4
    FFN_HIDDEN = 256
    N_ENC = 2
    N_DEC = 2
    VOCAB = 128
    MAX_LEN = 32
    BATCH = 2
    SEQ_IN = 16
    SEQ_OUT = 16

    key = jax.random.PRNGKey(0)
    kp, ki, ko = jax.random.split(key, 3)
    params = make_transformer_params(
        kp, d_model=D_MODEL, n_heads=N_HEADS, ffn_hidden=FFN_HIDDEN,
        n_enc=N_ENC, n_dec=N_DEC, vocab_size=VOCAB, max_len=MAX_LEN)

    inputs = jax.random.randint(ki, (BATCH, SEQ_IN), 0, VOCAB, dtype=jnp.int32)
    outputs = jax.random.randint(ko, (BATCH, SEQ_OUT), 0, VOCAB, dtype=jnp.int32)

    fwd = jax.jit(functools.partial(
        transformer_forward, d_model=D_MODEL, n_heads=N_HEADS, training=False))
    probs = fwd(params, inputs, outputs)
    jax.block_until_ready(probs)

    assert probs.shape == (BATCH, SEQ_OUT, VOCAB)
    assert bool(jnp.all(jnp.isfinite(probs)))
    # rows of the softmax output must sum to 1
    assert bool(jnp.allclose(jnp.sum(probs, axis=-1), 1.0, atol=1e-4))
    print("KERNEL_OK")
</pallas_src>

<mosaic_0001>
module attributes {stable_mosaic.version = 11 : i64} {
  func.func @_ffn_block_kernel(%arg0: i32, %arg1: memref<32x128xf32, #tpu.memory_space<vmem>>, %arg2: memref<128x256xbf16, #tpu.memory_space<vmem>>, %arg3: memref<1x256xf32, #tpu.memory_space<vmem>>, %arg4: memref<256x128xbf16, #tpu.memory_space<vmem>>, %arg5: memref<1x128xf32, #tpu.memory_space<vmem>>, %arg6: memref<1x128xf32, #tpu.memory_space<vmem>>, %arg7: memref<1x128xf32, #tpu.memory_space<vmem>>, %arg8: memref<32x128xf32, #tpu.memory_space<vmem>>) attributes {dimension_semantics = [#tpu.dimension_semantics<parallel>], iteration_bounds = array<i64: 1>, scalar_prefetch = 0 : i64, scratch_operands = 0 : i64, tpu.core_type = #tpu.core_type<tc>, window_params = [{transform_indices = @transform_0, window_bounds = array<i64: 32, 128>}, {pipeline_mode = #tpu.pipeline_mode<synchronous>, transform_indices = @transform_1, window_bounds = array<i64: 128, 256>}, {pipeline_mode = #tpu.pipeline_mode<synchronous>, transform_indices = @transform_2, window_bounds = array<i64: 1, 256>}, {pipeline_mode = #tpu.pipeline_mode<synchronous>, transform_indices = @transform_3, window_bounds = array<i64: 256, 128>}, {pipeline_mode = #tpu.pipeline_mode<synchronous>, transform_indices = @transform_4, window_bounds = array<i64: 1, 128>}, {pipeline_mode = #tpu.pipeline_mode<synchronous>, transform_indices = @transform_5, window_bounds = array<i64: 1, 128>}, {pipeline_mode = #tpu.pipeline_mode<synchronous>, transform_indices = @transform_6, window_bounds = array<i64: 1, 128>}, {transform_indices = @transform_7, window_bounds = array<i64: 32, 128>}]} {
    %c0 = arith.constant 0 : index
    %c0_0 = arith.constant 0 : index
    %0 = vector.load %arg1[%c0, %c0_0] : memref<32x128xf32, #tpu.memory_space<vmem>>, vector<32x128xf32>
    %1 = arith.truncf %0 : vector<32x128xf32> to vector<32x128xbf16>
    %c0_1 = arith.constant 0 : index
    %c0_2 = arith.constant 0 : index
    %2 = vector.load %arg2[%c0_1, %c0_2] : memref<128x256xbf16, #tpu.memory_space<vmem>>, vector<128x256xbf16>
    %cst = arith.constant dense<0.000000e+00> : vector<32x256xf32>
    %3 = tpu.matmul %1, %2, %cst {dimension_numbers = #tpu.dot_dimension_numbers<[1], [0], [0], [1], [0, 0, 1, 1], [], []>} : vector<32x128xbf16>, vector<128x256xbf16>, vector<32x256xf32> -> vector<32x256xf32>
    %c0_3 = arith.constant 0 : index
    %c0_4 = arith.constant 0 : index
    %4 = vector.load %arg3[%c0_3, %c0_4] : memref<1x256xf32, #tpu.memory_space<vmem>>, vector<1x256xf32>
    %5 = vector.broadcast %4 : vector<1x256xf32> to vector<32x256xf32>
    %6 = arith.addf %3, %5 : vector<32x256xf32>
    %cst_5 = arith.constant 0.000000e+00 : f32
    %7 = vector.broadcast %cst_5 : f32 to vector<32x256xf32>
    %8 = arith.maximumf %6, %7 : vector<32x256xf32>
    %9 = arith.truncf %8 : vector<32x256xf32> to vector<32x256xbf16>
    %c0_6 = arith.constant 0 : index
    %c0_7 = arith.constant 0 : index
    %10 = vector.load %arg4[%c0_6, %c0_7] : memref<256x128xbf16, #tpu.memory_space<vmem>>, vector<256x128xbf16>
    %cst_8 = arith.constant dense<0.000000e+00> : vector<32x128xf32>
    %11 = tpu.matmul %9, %10, %cst_8 {dimension_numbers = #tpu.dot_dimension_numbers<[1], [0], [0], [1], [0, 0, 1, 1], [], []>} : vector<32x256xbf16>, vector<256x128xbf16>, vector<32x128xf32> -> vector<32x128xf32>
    %12 = arith.addf %0, %11 : vector<32x128xf32>
    %c0_9 = arith.constant 0 : index
    %c0_10 = arith.constant 0 : index
    %13 = vector.load %arg5[%c0_9, %c0_10] : memref<1x128xf32, #tpu.memory_space<vmem>>, vector<1x128xf32>
    %14 = vector.broadcast %13 : vector<1x128xf32> to vector<32x128xf32>
    %15 = arith.addf %12, %14 : vector<32x128xf32>
    %c0_11 = arith.constant 0 : index
    %c0_12 = arith.constant 0 : index
    %16 = vector.load %arg6[%c0_11, %c0_12] : memref<1x128xf32, #tpu.memory_space<vmem>>, vector<1x128xf32>
    %c0_13 = arith.constant 0 : index
    %c0_14 = arith.constant 0 : index
    %17 = vector.load %arg7[%c0_13, %c0_14] : memref<1x128xf32, #tpu.memory_space<vmem>>, vector<1x128xf32>
    %cst_15 = arith.constant dense<0.000000e+00> : vector<32xf32>
    %18 = vector.multi_reduction <add>, %15, %cst_15 [1] : vector<32x128xf32> to vector<32xf32>
    %19 = vector.shape_cast %18 : vector<32xf32> to vector<32x1xf32>
    %cst_16 = arith.constant 1.280000e+02 : f32
    %20 = vector.broadcast %cst_16 : f32 to vector<32x1xf32>
    %21 = arith.divf %19, %20 : vector<32x1xf32>
    %22 = vector.broadcast %21 : vector<32x1xf32> to vector<32x128xf32>
    %23 = arith.subf %15, %22 : vector<32x128xf32>
    %24 = arith.mulf %23, %23 : vector<32x128xf32>
    %cst_17 = arith.constant dense<0.000000e+00> : vector<32xf32>
    %25 = vector.multi_reduction <add>, %24, %cst_17 [1] : vector<32x128xf32> to vector<32xf32>
    %26 = vector.shape_cast %25 : vector<32xf32> to vector<32x1xf32>
    %cst_18 = arith.constant 1.280000e+02 : f32
    %27 = vector.broadcast %cst_18 : f32 to vector<32x1xf32>
    %28 = arith.divf %26, %27 : vector<32x1xf32>
    %29 = vector.broadcast %21 : vector<32x1xf32> to vector<32x128xf32>
    %30 = arith.subf %15, %29 : vector<32x128xf32>
    %cst_19 = arith.constant 9.99999974E-6 : f32
    %31 = vector.broadcast %cst_19 : f32 to vector<32x1xf32>
    %32 = arith.addf %28, %31 : vector<32x1xf32>
    %33 = math.rsqrt %32 : vector<32x1xf32>
    %34 = vector.broadcast %33 : vector<32x1xf32> to vector<32x128xf32>
    %35 = arith.mulf %30, %34 : vector<32x128xf32>
    %36 = vector.broadcast %16 : vector<1x128xf32> to vector<32x128xf32>
    %37 = arith.mulf %35, %36 : vector<32x128xf32>
    %38 = vector.broadcast %17 : vector<1x128xf32> to vector<32x128xf32>
    %39 = arith.addf %37, %38 : vector<32x128xf32>
    %c0_20 = arith.constant 0 : index
    %c0_21 = arith.constant 0 : index
    %40 = vector.load %arg8[%c0_20, %c0_21] : memref<32x128xf32, #tpu.memory_space<vmem>>, vector<32x128xf32>
    tpu.vector_store %arg8[%c0_20, %c0_21], %39 {strides = array<i32>} : memref<32x128xf32, #tpu.memory_space<vmem>>, vector<32x128xf32>,
    return
  }
  func.func @transform_0(%arg0: i32) -> (i32, i32) {
    %c0_i32 = arith.constant 0 : i32
    %c0_i32_0 = arith.constant 0 : i32
    return %arg0, %c0_i32 : i32, i32
  }
  func.func @transform_1(%arg0: i32) -> (i32, i32) {
    %c0_i32 = arith.constant 0 : i32
    %c0_i32_0 = arith.constant 0 : i32
    %c0_i32_1 = arith.constant 0 : i32
    return %c0_i32, %c0_i32_0 : i32, i32
  }
  func.func @transform_2(%arg0: i32) -> (i32, i32) {
    %c0_i32 = arith.constant 0 : i32
    %c0_i32_0 = arith.constant 0 : i32
    %c0_i32_1 = arith.constant 0 : i32
    return %c0_i32, %c0_i32_0 : i32, i32
  }
  func.func @transform_3(%arg0: i32) -> (i32, i32) {
    %c0_i32 = arith.constant 0 : i32
    %c0_i32_0 = arith.constant 0 : i32
    %c0_i32_1 = arith.constant 0 : i32
    return %c0_i32, %c0_i32_0 : i32, i32
  }
  func.func @transform_4(%arg0: i32) -> (i32, i32) {
    %c0_i32 = arith.constant 0 : i32
    %c0_i32_0 = arith.constant 0 : i32
    %c0_i32_1 = arith.constant 0 : i32
    return %c0_i32, %c0_i32_0 : i32, i32
  }
  func.func @transform_5(%arg0: i32) -> (i32, i32) {
    %c0_i32 = arith.constant 0 : i32
    %c0_i32_0 = arith.constant 0 : i32
    %c0_i32_1 = arith.constant 0 : i32
    return %c0_i32, %c0_i32_0 : i32, i32
  }
  func.func @transform_6(%arg0: i32) -> (i32, i32) {
    %c0_i32 = arith.constant 0 : i32
    %c0_i32_0 = arith.constant 0 : i32
    %c0_i32_1 = arith.constant 0 : i32
    return %c0_i32, %c0_i32_0 : i32, i32
  }
  func.func @transform_7(%arg0: i32) -> (i32, i32) {
    %c0_i32 = arith.constant 0 : i32
    %c0_i32_0 = arith.constant 0 : i32
    return %arg0, %c0_i32 : i32, i32
  }
}

module attributes {stable_mosaic.version = 11 : i64} {
  func.func @_self_attn_block_kernel(%arg0: i32, %arg1: memref<1x16x128xf32, #tpu.memory_space<vmem>>, %arg2: memref<128x384xbf16, #tpu.memory_space<vmem>>, %arg3: memref<1x384xf32, #tpu.memory_space<vmem>>, %arg4: memref<128x128xbf16, #tpu.memory_space<vmem>>, %arg5: memref<1x128xf32, #tpu.memory_space<vmem>>, %arg6: memref<1x128xf32, #tpu.memory_space<vmem>>, %arg7: memref<1x128xf32, #tpu.memory_space<vmem>>, %arg8: memref<1x16x128xf32, #tpu.memory_space<vmem>>) attributes {dimension_semantics = [#tpu.dimension_semantics<parallel>], iteration_bounds = array<i64: 2>, scalar_prefetch = 0 : i64, scratch_operands = 0 : i64, tpu.core_type = #tpu.core_type<tc>, window_params = [{transform_indices = @transform_0, window_bounds = array<i64: 1, 16, 128>}, {pipeline_mode = #tpu.pipeline_mode<synchronous>, transform_indices = @transform_1, window_bounds = array<i64: 128, 384>}, {pipeline_mode = #tpu.pipeline_mode<synchronous>, transform_indices = @transform_2, window_bounds = array<i64: 1, 384>}, {pipeline_mode = #tpu.pipeline_mode<synchronous>, transform_indices = @transform_3, window_bounds = array<i64: 128, 128>}, {pipeline_mode = #tpu.pipeline_mode<synchronous>, transform_indices = @transform_4, window_bounds = array<i64: 1, 128>}, {pipeline_mode = #tpu.pipeline_mode<synchronous>, transform_indices = @transform_5, window_bounds = array<i64: 1, 128>}, {pipeline_mode = #tpu.pipeline_mode<synchronous>, transform_indices = @transform_6, window_bounds = array<i64: 1, 128>}, {transform_indices = @transform_7, window_bounds = array<i64: 1, 16, 128>}]} {
    %c0 = arith.constant 0 : index
    %c0_0 = arith.constant 0 : index
    %c0_1 = arith.constant 0 : index
    %0 = vector.load %arg1[%c0, %c0_0, %c0_1] : memref<1x16x128xf32, #tpu.memory_space<vmem>>, vector<1x16x128xf32>
    %1 = vector.shape_cast %0 : vector<1x16x128xf32> to vector<16x128xf32>
    %2 = arith.truncf %1 : vector<16x128xf32> to vector<16x128xbf16>
    %c0_2 = arith.constant 0 : index
    %c0_3 = arith.constant 0 : index
    %3 = vector.load %arg2[%c0_2, %c0_3] : memref<128x384xbf16, #tpu.memory_space<vmem>>, vector<128x384xbf16>
    %cst = arith.constant dense<0.000000e+00> : vector<16x384xf32>
    %4 = tpu.matmul %2, %3, %cst {dimension_numbers = #tpu.dot_dimension_numbers<[1], [0], [0], [1], [0, 0, 1, 1], [], []>} : vector<16x128xbf16>, vector<128x384xbf16>, vector<16x384xf32> -> vector<16x384xf32>
    %c0_4 = arith.constant 0 : index
    %c0_5 = arith.constant 0 : index
    %5 = vector.load %arg3[%c0_4, %c0_5] : memref<1x384xf32, #tpu.memory_space<vmem>>, vector<1x384xf32>
    %6 = vector.broadcast %5 : vector<1x384xf32> to vector<16x384xf32>
    %7 = arith.addf %4, %6 : vector<16x384xf32>
    %8 = vector.extract_strided_slice %7 {offsets = [0, 0], sizes = [16, 128], strides = [1, 1]} : vector<16x384xf32> to vector<16x128xf32>
    %9 = vector.extract_strided_slice %7 {offsets = [0, 128], sizes = [16, 128], strides = [1, 1]} : vector<16x384xf32> to vector<16x128xf32>
    %10 = vector.extract_strided_slice %7 {offsets = [0, 256], sizes = [16, 128], strides = [1, 1]} : vector<16x384xf32> to vector<16x128xf32>
    %11 = vector.extract_strided_slice %8 {offsets = [0, 0], sizes = [16, 32], strides = [1, 1]} : vector<16x128xf32> to vector<16x32xf32>
    %12 = arith.truncf %11 : vector<16x32xf32> to vector<16x32xbf16>
    %13 = vector.extract_strided_slice %9 {offsets = [0, 0], sizes = [16, 32], strides = [1, 1]} : vector<16x128xf32> to vector<16x32xf32>
    %14 = arith.truncf %13 : vector<16x32xf32> to vector<16x32xbf16>
    %15 = vector.extract_strided_slice %10 {offsets = [0, 0], sizes = [16, 32], strides = [1, 1]} : vector<16x128xf32> to vector<16x32xf32>
    %16 = arith.truncf %15 : vector<16x32xf32> to vector<16x32xbf16>
    %cst_6 = arith.constant dense<0.000000e+00> : vector<16x16xf32>
    %17 = tpu.matmul %12, %14, %cst_6 {dimension_numbers = #tpu.dot_dimension_numbers<[1], [1], [0], [0], [0, 0, 1, 0], [], []>} : vector<16x32xbf16>, vector<16x32xbf16>, vector<16x16xf32> -> vector<16x16xf32>
    %cst_7 = arith.constant dense<0xFF800000> : vector<16xf32>
    %18 = vector.multi_reduction <maximumf>, %17, %cst_7 [1] : vector<16x16xf32> to vector<16xf32>
    %19 = vector.shape_cast %18 : vector<16xf32> to vector<16x1xf32>
    %20 = vector.broadcast %19 : vector<16x1xf32> to vector<16x16xf32>
    %21 = arith.subf %17, %20 : vector<16x16xf32>
    %22 = math.exp %21 : vector<16x16xf32>
    %cst_8 = arith.constant dense<0.000000e+00> : vector<16xf32>
    %23 = vector.multi_reduction <add>, %22, %cst_8 [1] : vector<16x16xf32> to vector<16xf32>
    %24 = vector.shape_cast %23 : vector<16xf32> to vector<16x1xf32>
    %25 = tpu.reciprocal %24 {approx = true} : vector<16x1xf32> -> vector<16x1xf32>
    %26 = vector.broadcast %25 : vector<16x1xf32> to vector<16x16xf32>
    %27 = arith.mulf %22, %26 : vector<16x16xf32>
    %28 = arith.truncf %27 : vector<16x16xf32> to vector<16x16xbf16>
    %cst_9 = arith.constant dense<0.000000e+00> : vector<16x32xf32>
    %29 = tpu.matmul %28, %16, %cst_9 {dimension_numbers = #tpu.dot_dimension_numbers<[1], [0], [0], [1], [0, 0, 1, 1], [], []>} : vector<16x16xbf16>, vector<16x32xbf16>, vector<16x32xf32> -> vector<16x32xf32>
    %30 = vector.extract_strided_slice %8 {offsets = [0, 32], sizes = [16, 32], strides = [1, 1]} : vector<16x128xf32> to vector<16x32xf32>
    %31 = arith.truncf %30 : vector<16x32xf32> to vector<16x32xbf16>
    %32 = vector.extract_strided_slice %9 {offsets = [0, 32], sizes = [16, 32], strides = [1, 1]} : vector<16x128xf32> to vector<16x32xf32>
    %33 = arith.truncf %32 : vector<16x32xf32> to vector<16x32xbf16>
    %34 = vector.extract_strided_slice %10 {offsets = [0, 32], sizes = [16, 32], strides = [1, 1]} : vector<16x128xf32> to vector<16x32xf32>
    %35 = arith.truncf %34 : vector<16x32xf32> to vector<16x32xbf16>
    %cst_10 = arith.constant dense<0.000000e+00> : vector<16x16xf32>
    %36 = tpu.matmul %31, %33, %cst_10 {dimension_numbers = #tpu.dot_dimension_numbers<[1], [1], [0], [0], [0, 0, 1, 0], [], []>} : vector<16x32xbf16>, vector<16x32xbf16>, vector<16x16xf32> -> vector<16x16xf32>
    %cst_11 = arith.constant dense<0xFF800000> : vector<16xf32>
    %37 = vector.multi_reduction <maximumf>, %36, %cst_11 [1] : vector<16x16xf32> to vector<16xf32>
    %38 = vector.shape_cast %37 : vector<16xf32> to vector<16x1xf32>
    %39 = vector.broadcast %38 : vector<16x1xf32> to vector<16x16xf32>
    %40 = arith.subf %36, %39 : vector<16x16xf32>
    %41 = math.exp %40 : vector<16x16xf32>
    %cst_12 = arith.constant dense<0.000000e+00> : vector<16xf32>
    %42 = vector.multi_reduction <add>, %41, %cst_12 [1] : vector<16x16xf32> to vector<16xf32>
    %43 = vector.shape_cast %42 : vector<16xf32> to vector<16x1xf32>
    %44 = tpu.reciprocal %43 {approx = true} : vector<16x1xf32> -> vector<16x1xf32>
    %45 = vector.broadcast %44 : vector<16x1xf32> to vector<16x16xf32>
    %46 = arith.mulf %41, %45 : vector<16x16xf32>
    %47 = arith.truncf %46 : vector<16x16xf32> to vector<16x16xbf16>
    %cst_13 = arith.constant dense<0.000000e+00> : vector<16x32xf32>
    %48 = tpu.matmul %47, %35, %cst_13 {dimension_numbers = #tpu.dot_dimension_numbers<[1], [0], [0], [1], [0, 0, 1, 1], [], []>} : vector<16x16xbf16>, vector<16x32xbf16>, vector<16x32xf32> -> vector<16x32xf32>
    %49 = vector.extract_strided_slice %8 {offsets = [0, 64], sizes = [16, 32], strides = [1, 1]} : vector<16x128xf32> to vector<16x32xf32>
    %50 = arith.truncf %49 : vector<16x32xf32> to vector<16x32xbf16>
    %51 = vector.extract_strided_slice %9 {offsets = [0, 64], sizes = [16, 32], strides = [1, 1]} : vector<16x128xf32> to vector<16x32xf32>
    %52 = arith.truncf %51 : vector<16x32xf32> to vector<16x32xbf16>
    %53 = vector.extract_strided_slice %10 {offsets = [0, 64], sizes = [16, 32], strides = [1, 1]} : vector<16x128xf32> to vector<16x32xf32>
    %54 = arith.truncf %53 : vector<16x32xf32> to vector<16x32xbf16>
    %cst_14 = arith.constant dense<0.000000e+00> : vector<16x16xf32>
    %55 = tpu.matmul %50, %52, %cst_14 {dimension_numbers = #tpu.dot_dimension_numbers<[1], [1], [0], [0], [0, 0, 1, 0], [], []>} : vector<16x32xbf16>, vector<16x32xbf16>, vector<16x16xf32> -> vector<16x16xf32>
    %cst_15 = arith.constant dense<0xFF800000> : vector<16xf32>
    %56 = vector.multi_reduction <maximumf>, %55, %cst_15 [1] : vector<16x16xf32> to vector<16xf32>
    %57 = vector.shape_cast %56 : vector<16xf32> to vector<16x1xf32>
    %58 = vector.broadcast %57 : vector<16x1xf32> to vector<16x16xf32>
    %59 = arith.subf %55, %58 : vector<16x16xf32>
    %60 = math.exp %59 : vector<16x16xf32>
    %cst_16 = arith.constant dense<0.000000e+00> : vector<16xf32>
    %61 = vector.multi_reduction <add>, %60, %cst_16 [1] : vector<16x16xf32> to vector<16xf32>
    %62 = vector.shape_cast %61 : vector<16xf32> to vector<16x1xf32>
    %63 = tpu.reciprocal %62 {approx = true} : vector<16x1xf32> -> vector<16x1xf32>
    %64 = vector.broadcast %63 : vector<16x1xf32> to vector<16x16xf32>
    %65 = arith.mulf %60, %64 : vector<16x16xf32>
    %66 = arith.truncf %65 : vector<16x16xf32> to vector<16x16xbf16>
    %cst_17 = arith.constant dense<0.000000e+00> : vector<16x32xf32>
    %67 = tpu.matmul %66, %54, %cst_17 {dimension_numbers = #tpu.dot_dimension_numbers<[1], [0], [0], [1], [0, 0, 1, 1], [], []>} : vector<16x16xbf16>, vector<16x32xbf16>, vector<16x32xf32> -> vector<16x32xf32>
    %68 = vector.extract_strided_slice %8 {offsets = [0, 96], sizes = [16, 32], strides = [1, 1]} : vector<16x128xf32> to vector<16x32xf32>
    %69 = arith.truncf %68 : vector<16x32xf32> to vector<16x32xbf16>
    %70 = vector.extract_strided_slice %9 {offsets = [0, 96], sizes = [16, 32], strides = [1, 1]} : vector<16x128xf32> to vector<16x32xf32>
    %71 = arith.truncf %70 : vector<16x32xf32> to vector<16x32xbf16>
    %72 = vector.extract_strided_slice %10 {offsets = [0, 96], sizes = [16, 32], strides = [1, 1]} : vector<16x128xf32> to vector<16x32xf32>
    %73 = arith.truncf %72 : vector<16x32xf32> to vector<16x32xbf16>
    %cst_18 = arith.constant dense<0.000000e+00> : vector<16x16xf32>
    %74 = tpu.matmul %69, %71, %cst_18 {dimension_numbers = #tpu.dot_dimension_numbers<[1], [1], [0], [0], [0, 0, 1, 0], [], []>} : vector<16x32xbf16>, vector<16x32xbf16>, vector<16x16xf32> -> vector<16x16xf32>
    %cst_19 = arith.constant dense<0xFF800000> : vector<16xf32>
    %75 = vector.multi_reduction <maximumf>, %74, %cst_19 [1] : vector<16x16xf32> to vector<16xf32>
    %76 = vector.shape_cast %75 : vector<16xf32> to vector<16x1xf32>
    %77 = vector.broadcast %76 : vector<16x1xf32> to vector<16x16xf32>
    %78 = arith.subf %74, %77 : vector<16x16xf32>
    %79 = math.exp %78 : vector<16x16xf32>
    %cst_20 = arith.constant dense<0.000000e+00> : vector<16xf32>
    %80 = vector.multi_reduction <add>, %79, %cst_20 [1] : vector<16x16xf32> to vector<16xf32>
    %81 = vector.shape_cast %80 : vector<16xf32> to vector<16x1xf32>
    %82 = tpu.reciprocal %81 {approx = true} : vector<16x1xf32> -> vector<16x1xf32>
    %83 = vector.broadcast %82 : vector<16x1xf32> to vector<16x16xf32>
    %84 = arith.mulf %79, %83 : vector<16x16xf32>
    %85 = arith.truncf %84 : vector<16x16xf32> to vector<16x16xbf16>
    %cst_21 = arith.constant dense<0.000000e+00> : vector<16x32xf32>
    %86 = tpu.matmul %85, %73, %cst_21 {dimension_numbers = #tpu.dot_dimension_numbers<[1], [0], [0], [1], [0, 0, 1, 1], [], []>} : vector<16x16xbf16>, vector<16x32xbf16>, vector<16x32xf32> -> vector<16x32xf32>
    %87 = tpu.concatenate %29, %48, %67, %86 in 1 : vector<16x32xf32>, vector<16x32xf32>, vector<16x32xf32>, vector<16x32xf32> -> vector<16x128xf32>
    %88 = arith.truncf %87 : vector<16x128xf32> to vector<16x128xbf16>
    %c0_22 = arith.constant 0 : index
    %c0_23 = arith.constant 0 : index
    %89 = vector.load %arg4[%c0_22, %c0_23] : memref<128x128xbf16, #tpu.memory_space<vmem>>, vector<128x128xbf16>
    %cst_24 = arith.constant dense<0.000000e+00> : vector<16x128xf32>
    %90 = tpu.matmul %88, %89, %cst_24 {dimension_numbers = #tpu.dot_dimension_numbers<[1], [0], [0], [1], [0, 0, 1, 1], [], []>} : vector<16x128xbf16>, vector<128x128xbf16>, vector<16x128xf32> -> vector<16x128xf32>
    %91 = arith.addf %1, %90 : vector<16x128xf32>
    %c0_25 = arith.constant 0 : index
    %c0_26 = arith.constant 0 : index
    %92 = vector.load %arg5[%c0_25, %c0_26] : memref<1x128xf32, #tpu.memory_space<vmem>>, vector<1x128xf32>
    %93 = vector.broadcast %92 : vector<1x128xf32> to vector<16x128xf32>
    %94 = arith.addf %91, %93 : vector<16x128xf32>
    %c0_27 = arith.constant 0 : index
    %c0_28 = arith.constant 0 : index
    %95 = vector.load %arg6[%c0_27, %c0_28] : memref<1x128xf32, #tpu.memory_space<vmem>>, vector<1x128xf32>
    %c0_29 = arith.constant 0 : index
    %c0_30 = arith.constant 0 : index
    %96 = vector.load %arg7[%c0_29, %c0_30] : memref<1x128xf32, #tpu.memory_space<vmem>>, vector<1x128xf32>
    %cst_31 = arith.constant dense<0.000000e+00> : vector<16xf32>
    %97 = vector.multi_reduction <add>, %94, %cst_31 [1] : vector<16x128xf32> to vector<16xf32>
    %98 = vector.shape_cast %97 : vector<16xf32> to vector<16x1xf32>
    %cst_32 = arith.constant 1.280000e+02 : f32
    %99 = vector.broadcast %cst_32 : f32 to vector<16x1xf32>
    %100 = arith.divf %98, %99 : vector<16x1xf32>
    %101 = vector.broadcast %100 : vector<16x1xf32> to vector<16x128xf32>
    %102 = arith.subf %94, %101 : vector<16x128xf32>
    %103 = arith.mulf %102, %102 : vector<16x128xf32>
    %cst_33 = arith.constant dense<0.000000e+00> : vector<16xf32>
    %104 = vector.multi_reduction <add>, %103, %cst_33 [1] : vector<16x128xf32> to vector<16xf32>
    %105 = vector.shape_cast %104 : vector<16xf32> to vector<16x1xf32>
    %cst_34 = arith.constant 1.280000e+02 : f32
    %106 = vector.broadcast %cst_34 : f32 to vector<16x1xf32>
    %107 = arith.divf %105, %106 : vector<16x1xf32>
    %108 = vector.broadcast %100 : vector<16x1xf32> to vector<16x128xf32>
    %109 = arith.subf %94, %108 : vector<16x128xf32>
    %cst_35 = arith.constant 9.99999974E-6 : f32
    %110 = vector.broadcast %cst_35 : f32 to vector<16x1xf32>
    %111 = arith.addf %107, %110 : vector<16x1xf32>
    %112 = math.rsqrt %111 : vector<16x1xf32>
    %113 = vector.broadcast %112 : vector<16x1xf32> to vector<16x128xf32>
    %114 = arith.mulf %109, %113 : vector<16x128xf32>
    %115 = vector.broadcast %95 : vector<1x128xf32> to vector<16x128xf32>
    %116 = arith.mulf %114, %115 : vector<16x128xf32>
    %117 = vector.broadcast %96 : vector<1x128xf32> to vector<16x128xf32>
    %118 = arith.addf %116, %117 : vector<16x128xf32>
    %c0_36 = arith.constant 0 : index
    %c0_37 = arith.constant 0 : index
    %c0_38 = arith.constant 0 : index
    %119 = vector.load %arg8[%c0_36, %c0_37, %c0_38] : memref<1x16x128xf32, #tpu.memory_space<vmem>>, vector<1x16x128xf32>
    %120 = vector.shape_cast %119 : vector<1x16x128xf32> to vector<16x128xf32>
    %121 = vector.shape_cast %118 : vector<16x128xf32> to vector<1x16x128xf32>
    tpu.vector_store %arg8[%c0_36, %c0_37, %c0_38], %121 {strides = array<i32>} : memref<1x16x128xf32, #tpu.memory_space<vmem>>, vector<1x16x128xf32>,
    return
  }
  func.func @transform_0(%arg0: i32) -> (i32, i32, i32) {
    %c0_i32 = arith.constant 0 : i32
    %c0_i32_0 = arith.constant 0 : i32
    %c0_i32_1 = arith.constant 0 : i32
    return %arg0, %c0_i32, %c0_i32_0 : i32, i32, i32
  }
  func.func @transform_1(%arg0: i32) -> (i32, i32) {
    %c0_i32 = arith.constant 0 : i32
    %c0_i32_0 = arith.constant 0 : i32
    %c0_i32_1 = arith.constant 0 : i32
    return %c0_i32, %c0_i32_0 : i32, i32
  }
  func.func @transform_2(%arg0: i32) -> (i32, i32) {
    %c0_i32 = arith.constant 0 : i32
    %c0_i32_0 = arith.constant 0 : i32
    %c0_i32_1 = arith.constant 0 : i32
    return %c0_i32, %c0_i32_0 : i32, i32
  }
  func.func @transform_3(%arg0: i32) -> (i32, i32) {
    %c0_i32 = arith.constant 0 : i32
    %c0_i32_0 = arith.constant 0 : i32
    %c0_i32_1 = arith.constant 0 : i32
    return %c0_i32, %c0_i32_0 : i32, i32
  }
  func.func @transform_4(%arg0: i32) -> (i32, i32) {
    %c0_i32 = arith.constant 0 : i32
    %c0_i32_0 = arith.constant 0 : i32
    %c0_i32_1 = arith.constant 0 : i32
    return %c0_i32, %c0_i32_0 : i32, i32
  }
  func.func @transform_5(%arg0: i32) -> (i32, i32) {
    %c0_i32 = arith.constant 0 : i32
    %c0_i32_0 = arith.constant 0 : i32
    %c0_i32_1 = arith.constant 0 : i32
    return %c0_i32, %c0_i32_0 : i32, i32
  }
  func.func @transform_6(%arg0: i32) -> (i32, i32) {
    %c0_i32 = arith.constant 0 : i32
    %c0_i32_0 = arith.constant 0 : i32
    %c0_i32_1 = arith.constant 0 : i32
    return %c0_i32, %c0_i32_0 : i32, i32
  }
  func.func @transform_7(%arg0: i32) -> (i32, i32, i32) {
    %c0_i32 = arith.constant 0 : i32
    %c0_i32_0 = arith.constant 0 : i32
    %c0_i32_1 = arith.constant 0 : i32
    return %arg0, %c0_i32, %c0_i32_0 : i32, i32, i32
  }
}

module attributes {stable_mosaic.version = 11 : i64} {
  func.func @_out_proj_kernel(%arg0: i32, %arg1: memref<32x128xf32, #tpu.memory_space<vmem>>, %arg2: memref<128x128xbf16, #tpu.memory_space<vmem>>, %arg3: memref<1x128xf32, #tpu.memory_space<vmem>>, %arg4: memref<32x128xf32, #tpu.memory_space<vmem>>) attributes {dimension_semantics = [#tpu.dimension_semantics<parallel>], iteration_bounds = array<i64: 1>, scalar_prefetch = 0 : i64, scratch_operands = 0 : i64, tpu.core_type = #tpu.core_type<tc>, window_params = [{transform_indices = @transform_0, window_bounds = array<i64: 32, 128>}, {pipeline_mode = #tpu.pipeline_mode<synchronous>, transform_indices = @transform_1, window_bounds = array<i64: 128, 128>}, {pipeline_mode = #tpu.pipeline_mode<synchronous>, transform_indices = @transform_2, window_bounds = array<i64: 1, 128>}, {transform_indices = @transform_3, window_bounds = array<i64: 32, 128>}]} {
    %c0 = arith.constant 0 : index
    %c0_0 = arith.constant 0 : index
    %0 = vector.load %arg1[%c0, %c0_0] : memref<32x128xf32, #tpu.memory_space<vmem>>, vector<32x128xf32>
    %1 = arith.truncf %0 : vector<32x128xf32> to vector<32x128xbf16>
    %c0_1 = arith.constant 0 : index
    %c0_2 = arith.constant 0 : index
    %2 = vector.load %arg2[%c0_1, %c0_2] : memref<128x128xbf16, #tpu.memory_space<vmem>>, vector<128x128xbf16>
    %cst = arith.constant dense<0.000000e+00> : vector<32x128xf32>
    %3 = tpu.matmul %1, %2, %cst {dimension_numbers = #tpu.dot_dimension_numbers<[1], [0], [0], [1], [0, 0, 1, 1], [], []>} : vector<32x128xbf16>, vector<128x128xbf16>, vector<32x128xf32> -> vector<32x128xf32>
    %c0_3 = arith.constant 0 : index
    %c0_4 = arith.constant 0 : index
    %4 = vector.load %arg3[%c0_3, %c0_4] : memref<1x128xf32, #tpu.memory_space<vmem>>, vector<1x128xf32>
    %5 = vector.broadcast %4 : vector<1x128xf32> to vector<32x128xf32>
    %6 = arith.addf %3, %5 : vector<32x128xf32>
    %cst_5 = arith.constant dense<0xFF800000> : vector<32xf32>
    %7 = vector.multi_reduction <maximumf>, %6, %cst_5 [1] : vector<32x128xf32> to vector<32xf32>
    %8 = vector.shape_cast %7 : vector<32xf32> to vector<32x1xf32>
    %9 = vector.broadcast %8 : vector<32x1xf32> to vector<32x128xf32>
    %10 = arith.subf %6, %9 : vector<32x128xf32>
    %11 = math.exp %10 : vector<32x128xf32>
    %cst_6 = arith.constant dense<0.000000e+00> : vector<32xf32>
    %12 = vector.multi_reduction <add>, %11, %cst_6 [1] : vector<32x128xf32> to vector<32xf32>
    %13 = vector.shape_cast %12 : vector<32xf32> to vector<32x1xf32>
    %14 = vector.broadcast %13 : vector<32x1xf32> to vector<32x128xf32>
    %15 = arith.divf %11, %14 : vector<32x128xf32>
    %c0_7 = arith.constant 0 : index
    %c0_8 = arith.constant 0 : index
    %16 = vector.load %arg4[%c0_7, %c0_8] : memref<32x128xf32, #tpu.memory_space<vmem>>, vector<32x128xf32>
    tpu.vector_store %arg4[%c0_7, %c0_8], %15 {strides = array<i32>} : memref<32x128xf32, #tpu.memory_space<vmem>>, vector<32x128xf32>,
    return
  }
  func.func @transform_0(%arg0: i32) -> (i32, i32) {
    %c0_i32 = arith.constant 0 : i32
    %c0_i32_0 = arith.constant 0 : i32
    return %arg0, %c0_i32 : i32, i32
  }
  func.func @transform_1(%arg0: i32) -> (i32, i32) {
    %c0_i32 = arith.constant 0 : i32
    %c0_i32_0 = arith.constant 0 : i32
    %c0_i32_1 = arith.constant 0 : i32
    return %c0_i32, %c0_i32_0 : i32, i32
  }
  func.func @transform_2(%arg0: i32) -> (i32, i32) {
    %c0_i32 = arith.constant 0 : i32
    %c0_i32_0 = arith.constant 0 : i32
    %c0_i32_1 = arith.constant 0 : i32
    return %c0_i32, %c0_i32_0 : i32, i32
  }
  func.func @transform_3(%arg0: i32) -> (i32, i32) {
    %c0_i32 = arith.constant 0 : i32
    %c0_i32_0 = arith.constant 0 : i32
    return %arg0, %c0_i32 : i32, i32
  }
}

module attributes {stable_mosaic.version = 11 : i64} {
  func.func @_cross_attn_block_kernel(%arg0: i32, %arg1: memref<1x16x128xf32, #tpu.memory_space<vmem>>, %arg2: memref<1x16x128xf32, #tpu.memory_space<vmem>>, %arg3: memref<128x128xbf16, #tpu.memory_space<vmem>>, %arg4: memref<1x128xf32, #tpu.memory_space<vmem>>, %arg5: memref<128x256xbf16, #tpu.memory_space<vmem>>, %arg6: memref<1x256xf32, #tpu.memory_space<vmem>>, %arg7: memref<128x128xbf16, #tpu.memory_space<vmem>>, %arg8: memref<1x128xf32, #tpu.memory_space<vmem>>, %arg9: memref<1x128xf32, #tpu.memory_space<vmem>>, %arg10: memref<1x128xf32, #tpu.memory_space<vmem>>, %arg11: memref<1x16x128xf32, #tpu.memory_space<vmem>>) attributes {dimension_semantics = [#tpu.dimension_semantics<parallel>], iteration_bounds = array<i64: 2>, scalar_prefetch = 0 : i64, scratch_operands = 0 : i64, tpu.core_type = #tpu.core_type<tc>, window_params = [{transform_indices = @transform_0, window_bounds = array<i64: 1, 16, 128>}, {transform_indices = @transform_1, window_bounds = array<i64: 1, 16, 128>}, {pipeline_mode = #tpu.pipeline_mode<synchronous>, transform_indices = @transform_2, window_bounds = array<i64: 128, 128>}, {pipeline_mode = #tpu.pipeline_mode<synchronous>, transform_indices = @transform_3, window_bounds = array<i64: 1, 128>}, {pipeline_mode = #tpu.pipeline_mode<synchronous>, transform_indices = @transform_4, window_bounds = array<i64: 128, 256>}, {pipeline_mode = #tpu.pipeline_mode<synchronous>, transform_indices = @transform_5, window_bounds = array<i64: 1, 256>}, {pipeline_mode = #tpu.pipeline_mode<synchronous>, transform_indices = @transform_6, window_bounds = array<i64: 128, 128>}, {pipeline_mode = #tpu.pipeline_mode<synchronous>, transform_indices = @transform_7, window_bounds = array<i64: 1, 128>}, {pipeline_mode = #tpu.pipeline_mode<synchronous>, transform_indices = @transform_8, window_bounds = array<i64: 1, 128>}, {pipeline_mode = #tpu.pipeline_mode<synchronous>, transform_indices = @transform_9, window_bounds = array<i64: 1, 128>}, {transform_indices = @transform_10, window_bounds = array<i64: 1, 16, 128>}]} {
    %c0 = arith.constant 0 : index
    %c0_0 = arith.constant 0 : index
    %c0_1 = arith.constant 0 : index
    %0 = vector.load %arg1[%c0, %c0_0, %c0_1] : memref<1x16x128xf32, #tpu.memory_space<vmem>>, vector<1x16x128xf32>
    %1 = vector.shape_cast %0 : vector<1x16x128xf32> to vector<16x128xf32>
    %c0_2 = arith.constant 0 : index
    %c0_3 = arith.constant 0 : index
    %c0_4 = arith.constant 0 : index
    %2 = vector.load %arg2[%c0_2, %c0_3, %c0_4] : memref<1x16x128xf32, #tpu.memory_space<vmem>>, vector<1x16x128xf32>
    %3 = vector.shape_cast %2 : vector<1x16x128xf32> to vector<16x128xf32>
    %4 = arith.truncf %1 : vector<16x128xf32> to vector<16x128xbf16>
    %c0_5 = arith.constant 0 : index
    %c0_6 = arith.constant 0 : index
    %5 = vector.load %arg3[%c0_5, %c0_6] : memref<128x128xbf16, #tpu.memory_space<vmem>>, vector<128x128xbf16>
    %cst = arith.constant dense<0.000000e+00> : vector<16x128xf32>
    %6 = tpu.matmul %4, %5, %cst {dimension_numbers = #tpu.dot_dimension_numbers<[1], [0], [0], [1], [0, 0, 1, 1], [], []>} : vector<16x128xbf16>, vector<128x128xbf16>, vector<16x128xf32> -> vector<16x128xf32>
    %c0_7 = arith.constant 0 : index
    %c0_8 = arith.constant 0 : index
    %7 = vector.load %arg4[%c0_7, %c0_8] : memref<1x128xf32, #tpu.memory_space<vmem>>, vector<1x128xf32>
    %8 = vector.broadcast %7 : vector<1x128xf32> to vector<16x128xf32>
    %9 = arith.addf %6, %8 : vector<16x128xf32>
    %10 = arith.truncf %3 : vector<16x128xf32> to vector<16x128xbf16>
    %c0_9 = arith.constant 0 : index
    %c0_10 = arith.constant 0 : index
    %11 = vector.load %arg5[%c0_9, %c0_10] : memref<128x256xbf16, #tpu.memory_space<vmem>>, vector<128x256xbf16>
    %cst_11 = arith.constant dense<0.000000e+00> : vector<16x256xf32>
    %12 = tpu.matmul %10, %11, %cst_11 {dimension_numbers = #tpu.dot_dimension_numbers<[1], [0], [0], [1], [0, 0, 1, 1], [], []>} : vector<16x128xbf16>, vector<128x256xbf16>, vector<16x256xf32> -> vector<16x256xf32>
    %c0_12 = arith.constant 0 : index
    %c0_13 = arith.constant 0 : index
    %13 = vector.load %arg6[%c0_12, %c0_13] : memref<1x256xf32, #tpu.memory_space<vmem>>, vector<1x256xf32>
    %14 = vector.broadcast %13 : vector<1x256xf32> to vector<16x256xf32>
    %15 = arith.addf %12, %14 : vector<16x256xf32>
    %16 = vector.extract_strided_slice %15 {offsets = [0, 0], sizes = [16, 128], strides = [1, 1]} : vector<16x256xf32> to vector<16x128xf32>
    %17 = vector.extract_strided_slice %15 {offsets = [0, 128], sizes = [16, 128], strides = [1, 1]} : vector<16x256xf32> to vector<16x128xf32>
    %18 = vector.extract_strided_slice %9 {offsets = [0, 0], sizes = [16, 32], strides = [1, 1]} : vector<16x128xf32> to vector<16x32xf32>
    %19 = arith.truncf %18 : vector<16x32xf32> to vector<16x32xbf16>
    %20 = vector.extract_strided_slice %16 {offsets = [0, 0], sizes = [16, 32], strides = [1, 1]} : vector<16x128xf32> to vector<16x32xf32>
    %21 = arith.truncf %20 : vector<16x32xf32> to vector<16x32xbf16>
    %22 = vector.extract_strided_slice %17 {offsets = [0, 0], sizes = [16, 32], strides = [1, 1]} : vector<16x128xf32> to vector<16x32xf32>
    %23 = arith.truncf %22 : vector<16x32xf32> to vector<16x32xbf16>
    %cst_14 = arith.constant dense<0.000000e+00> : vector<16x16xf32>
    %24 = tpu.matmul %19, %21, %cst_14 {dimension_numbers = #tpu.dot_dimension_numbers<[1], [1], [0], [0], [0, 0, 1, 0], [], []>} : vector<16x32xbf16>, vector<16x32xbf16>, vector<16x16xf32> -> vector<16x16xf32>
    %cst_15 = arith.constant dense<0xFF800000> : vector<16xf32>
    %25 = vector.multi_reduction <maximumf>, %24, %cst_15 [1] : vector<16x16xf32> to vector<16xf32>
    %26 = vector.shape_cast %25 : vector<16xf32> to vector<16x1xf32>
    %27 = vector.broadcast %26 : vector<16x1xf32> to vector<16x16xf32>
    %28 = arith.subf %24, %27 : vector<16x16xf32>
    %29 = math.exp %28 : vector<16x16xf32>
    %cst_16 = arith.constant dense<0.000000e+00> : vector<16xf32>
    %30 = vector.multi_reduction <add>, %29, %cst_16 [1] : vector<16x16xf32> to vector<16xf32>
    %31 = vector.shape_cast %30 : vector<16xf32> to vector<16x1xf32>
    %32 = tpu.reciprocal %31 {approx = true} : vector<16x1xf32> -> vector<16x1xf32>
    %33 = vector.broadcast %32 : vector<16x1xf32> to vector<16x16xf32>
    %34 = arith.mulf %29, %33 : vector<16x16xf32>
    %35 = arith.truncf %34 : vector<16x16xf32> to vector<16x16xbf16>
    %cst_17 = arith.constant dense<0.000000e+00> : vector<16x32xf32>
    %36 = tpu.matmul %35, %23, %cst_17 {dimension_numbers = #tpu.dot_dimension_numbers<[1], [0], [0], [1], [0, 0, 1, 1], [], []>} : vector<16x16xbf16>, vector<16x32xbf16>, vector<16x32xf32> -> vector<16x32xf32>
    %37 = vector.extract_strided_slice %9 {offsets = [0, 32], sizes = [16, 32], strides = [1, 1]} : vector<16x128xf32> to vector<16x32xf32>
    %38 = arith.truncf %37 : vector<16x32xf32> to vector<16x32xbf16>
    %39 = vector.extract_strided_slice %16 {offsets = [0, 32], sizes = [16, 32], strides = [1, 1]} : vector<16x128xf32> to vector<16x32xf32>
    %40 = arith.truncf %39 : vector<16x32xf32> to vector<16x32xbf16>
    %41 = vector.extract_strided_slice %17 {offsets = [0, 32], sizes = [16, 32], strides = [1, 1]} : vector<16x128xf32> to vector<16x32xf32>
    %42 = arith.truncf %41 : vector<16x32xf32> to vector<16x32xbf16>
    %cst_18 = arith.constant dense<0.000000e+00> : vector<16x16xf32>
    %43 = tpu.matmul %38, %40, %cst_18 {dimension_numbers = #tpu.dot_dimension_numbers<[1], [1], [0], [0], [0, 0, 1, 0], [], []>} : vector<16x32xbf16>, vector<16x32xbf16>, vector<16x16xf32> -> vector<16x16xf32>
    %cst_19 = arith.constant dense<0xFF800000> : vector<16xf32>
    %44 = vector.multi_reduction <maximumf>, %43, %cst_19 [1] : vector<16x16xf32> to vector<16xf32>
    %45 = vector.shape_cast %44 : vector<16xf32> to vector<16x1xf32>
    %46 = vector.broadcast %45 : vector<16x1xf32> to vector<16x16xf32>
    %47 = arith.subf %43, %46 : vector<16x16xf32>
    %48 = math.exp %47 : vector<16x16xf32>
    %cst_20 = arith.constant dense<0.000000e+00> : vector<16xf32>
    %49 = vector.multi_reduction <add>, %48, %cst_20 [1] : vector<16x16xf32> to vector<16xf32>
    %50 = vector.shape_cast %49 : vector<16xf32> to vector<16x1xf32>
    %51 = tpu.reciprocal %50 {approx = true} : vector<16x1xf32> -> vector<16x1xf32>
    %52 = vector.broadcast %51 : vector<16x1xf32> to vector<16x16xf32>
    %53 = arith.mulf %48, %52 : vector<16x16xf32>
    %54 = arith.truncf %53 : vector<16x16xf32> to vector<16x16xbf16>
    %cst_21 = arith.constant dense<0.000000e+00> : vector<16x32xf32>
    %55 = tpu.matmul %54, %42, %cst_21 {dimension_numbers = #tpu.dot_dimension_numbers<[1], [0], [0], [1], [0, 0, 1, 1], [], []>} : vector<16x16xbf16>, vector<16x32xbf16>, vector<16x32xf32> -> vector<16x32xf32>
    %56 = vector.extract_strided_slice %9 {offsets = [0, 64], sizes = [16, 32], strides = [1, 1]} : vector<16x128xf32> to vector<16x32xf32>
    %57 = arith.truncf %56 : vector<16x32xf32> to vector<16x32xbf16>
    %58 = vector.extract_strided_slice %16 {offsets = [0, 64], sizes = [16, 32], strides = [1, 1]} : vector<16x128xf32> to vector<16x32xf32>
    %59 = arith.truncf %58 : vector<16x32xf32> to vector<16x32xbf16>
    %60 = vector.extract_strided_slice %17 {offsets = [0, 64], sizes = [16, 32], strides = [1, 1]} : vector<16x128xf32> to vector<16x32xf32>
    %61 = arith.truncf %60 : vector<16x32xf32> to vector<16x32xbf16>
    %cst_22 = arith.constant dense<0.000000e+00> : vector<16x16xf32>
    %62 = tpu.matmul %57, %59, %cst_22 {dimension_numbers = #tpu.dot_dimension_numbers<[1], [1], [0], [0], [0, 0, 1, 0], [], []>} : vector<16x32xbf16>, vector<16x32xbf16>, vector<16x16xf32> -> vector<16x16xf32>
    %cst_23 = arith.constant dense<0xFF800000> : vector<16xf32>
    %63 = vector.multi_reduction <maximumf>, %62, %cst_23 [1] : vector<16x16xf32> to vector<16xf32>
    %64 = vector.shape_cast %63 : vector<16xf32> to vector<16x1xf32>
    %65 = vector.broadcast %64 : vector<16x1xf32> to vector<16x16xf32>
    %66 = arith.subf %62, %65 : vector<16x16xf32>
    %67 = math.exp %66 : vector<16x16xf32>
    %cst_24 = arith.constant dense<0.000000e+00> : vector<16xf32>
    %68 = vector.multi_reduction <add>, %67, %cst_24 [1] : vector<16x16xf32> to vector<16xf32>
    %69 = vector.shape_cast %68 : vector<16xf32> to vector<16x1xf32>
    %70 = tpu.reciprocal %69 {approx = true} : vector<16x1xf32> -> vector<16x1xf32>
    %71 = vector.broadcast %70 : vector<16x1xf32> to vector<16x16xf32>
    %72 = arith.mulf %67, %71 : vector<16x16xf32>
    %73 = arith.truncf %72 : vector<16x16xf32> to vector<16x16xbf16>
    %cst_25 = arith.constant dense<0.000000e+00> : vector<16x32xf32>
    %74 = tpu.matmul %73, %61, %cst_25 {dimension_numbers = #tpu.dot_dimension_numbers<[1], [0], [0], [1], [0, 0, 1, 1], [], []>} : vector<16x16xbf16>, vector<16x32xbf16>, vector<16x32xf32> -> vector<16x32xf32>
    %75 = vector.extract_strided_slice %9 {offsets = [0, 96], sizes = [16, 32], strides = [1, 1]} : vector<16x128xf32> to vector<16x32xf32>
    %76 = arith.truncf %75 : vector<16x32xf32> to vector<16x32xbf16>
    %77 = vector.extract_strided_slice %16 {offsets = [0, 96], sizes = [16, 32], strides = [1, 1]} : vector<16x128xf32> to vector<16x32xf32>
    %78 = arith.truncf %77 : vector<16x32xf32> to vector<16x32xbf16>
    %79 = vector.extract_strided_slice %17 {offsets = [0, 96], sizes = [16, 32], strides = [1, 1]} : vector<16x128xf32> to vector<16x32xf32>
    %80 = arith.truncf %79 : vector<16x32xf32> to vector<16x32xbf16>
    %cst_26 = arith.constant dense<0.000000e+00> : vector<16x16xf32>
    %81 = tpu.matmul %76, %78, %cst_26 {dimension_numbers = #tpu.dot_dimension_numbers<[1], [1], [0], [0], [0, 0, 1, 0], [], []>} : vector<16x32xbf16>, vector<16x32xbf16>, vector<16x16xf32> -> vector<16x16xf32>
    %cst_27 = arith.constant dense<0xFF800000> : vector<16xf32>
    %82 = vector.multi_reduction <maximumf>, %81, %cst_27 [1] : vector<16x16xf32> to vector<16xf32>
    %83 = vector.shape_cast %82 : vector<16xf32> to vector<16x1xf32>
    %84 = vector.broadcast %83 : vector<16x1xf32> to vector<16x16xf32>
    %85 = arith.subf %81, %84 : vector<16x16xf32>
    %86 = math.exp %85 : vector<16x16xf32>
    %cst_28 = arith.constant dense<0.000000e+00> : vector<16xf32>
    %87 = vector.multi_reduction <add>, %86, %cst_28 [1] : vector<16x16xf32> to vector<16xf32>
    %88 = vector.shape_cast %87 : vector<16xf32> to vector<16x1xf32>
    %89 = tpu.reciprocal %88 {approx = true} : vector<16x1xf32> -> vector<16x1xf32>
    %90 = vector.broadcast %89 : vector<16x1xf32> to vector<16x16xf32>
    %91 = arith.mulf %86, %90 : vector<16x16xf32>
    %92 = arith.truncf %91 : vector<16x16xf32> to vector<16x16xbf16>
    %cst_29 = arith.constant dense<0.000000e+00> : vector<16x32xf32>
    %93 = tpu.matmul %92, %80, %cst_29 {dimension_numbers = #tpu.dot_dimension_numbers<[1], [0], [0], [1], [0, 0, 1, 1], [], []>} : vector<16x16xbf16>, vector<16x32xbf16>, vector<16x32xf32> -> vector<16x32xf32>
    %94 = tpu.concatenate %36, %55, %74, %93 in 1 : vector<16x32xf32>, vector<16x32xf32>, vector<16x32xf32>, vector<16x32xf32> -> vector<16x128xf32>
    %95 = arith.truncf %94 : vector<16x128xf32> to vector<16x128xbf16>
    %c0_30 = arith.constant 0 : index
    %c0_31 = arith.constant 0 : index
    %96 = vector.load %arg7[%c0_30, %c0_31] : memref<128x128xbf16, #tpu.memory_space<vmem>>, vector<128x128xbf16>
    %cst_32 = arith.constant dense<0.000000e+00> : vector<16x128xf32>
    %97 = tpu.matmul %95, %96, %cst_32 {dimension_numbers = #tpu.dot_dimension_numbers<[1], [0], [0], [1], [0, 0, 1, 1], [], []>} : vector<16x128xbf16>, vector<128x128xbf16>, vector<16x128xf32> -> vector<16x128xf32>
    %98 = arith.addf %1, %97 : vector<16x128xf32>
    %c0_33 = arith.constant 0 : index
    %c0_34 = arith.constant 0 : index
    %99 = vector.load %arg8[%c0_33, %c0_34] : memref<1x128xf32, #tpu.memory_space<vmem>>, vector<1x128xf32>
    %100 = vector.broadcast %99 : vector<1x128xf32> to vector<16x128xf32>
    %101 = arith.addf %98, %100 : vector<16x128xf32>
    %c0_35 = arith.constant 0 : index
    %c0_36 = arith.constant 0 : index
    %102 = vector.load %arg9[%c0_35, %c0_36] : memref<1x128xf32, #tpu.memory_space<vmem>>, vector<1x128xf32>
    %c0_37 = arith.constant 0 : index
    %c0_38 = arith.constant 0 : index
    %103 = vector.load %arg10[%c0_37, %c0_38] : memref<1x128xf32, #tpu.memory_space<vmem>>, vector<1x128xf32>
    %cst_39 = arith.constant dense<0.000000e+00> : vector<16xf32>
    %104 = vector.multi_reduction <add>, %101, %cst_39 [1] : vector<16x128xf32> to vector<16xf32>
    %105 = vector.shape_cast %104 : vector<16xf32> to vector<16x1xf32>
    %cst_40 = arith.constant 1.280000e+02 : f32
    %106 = vector.broadcast %cst_40 : f32 to vector<16x1xf32>
    %107 = arith.divf %105, %106 : vector<16x1xf32>
    %108 = vector.broadcast %107 : vector<16x1xf32> to vector<16x128xf32>
    %109 = arith.subf %101, %108 : vector<16x128xf32>
    %110 = arith.mulf %109, %109 : vector<16x128xf32>
    %cst_41 = arith.constant dense<0.000000e+00> : vector<16xf32>
    %111 = vector.multi_reduction <add>, %110, %cst_41 [1] : vector<16x128xf32> to vector<16xf32>
    %112 = vector.shape_cast %111 : vector<16xf32> to vector<16x1xf32>
    %cst_42 = arith.constant 1.280000e+02 : f32
    %113 = vector.broadcast %cst_42 : f32 to vector<16x1xf32>
    %114 = arith.divf %112, %113 : vector<16x1xf32>
    %115 = vector.broadcast %107 : vector<16x1xf32> to vector<16x128xf32>
    %116 = arith.subf %101, %115 : vector<16x128xf32>
    %cst_43 = arith.constant 9.99999974E-6 : f32
    %117 = vector.broadcast %cst_43 : f32 to vector<16x1xf32>
    %118 = arith.addf %114, %117 : vector<16x1xf32>
    %119 = math.rsqrt %118 : vector<16x1xf32>
    %120 = vector.broadcast %119 : vector<16x1xf32> to vector<16x128xf32>
    %121 = arith.mulf %116, %120 : vector<16x128xf32>
    %122 = vector.broadcast %102 : vector<1x128xf32> to vector<16x128xf32>
    %123 = arith.mulf %121, %122 : vector<16x128xf32>
    %124 = vector.broadcast %103 : vector<1x128xf32> to vector<16x128xf32>
    %125 = arith.addf %123, %124 : vector<16x128xf32>
    %c0_44 = arith.constant 0 : index
    %c0_45 = arith.constant 0 : index
    %c0_46 = arith.constant 0 : index
    %126 = vector.load %arg11[%c0_44, %c0_45, %c0_46] : memref<1x16x128xf32, #tpu.memory_space<vmem>>, vector<1x16x128xf32>
    %127 = vector.shape_cast %126 : vector<1x16x128xf32> to vector<16x128xf32>
    %128 = vector.shape_cast %125 : vector<16x128xf32> to vector<1x16x128xf32>
    tpu.vector_store %arg11[%c0_44, %c0_45, %c0_46], %128 {strides = array<i32>} : memref<1x16x128xf32, #tpu.memory_space<vmem>>, vector<1x16x128xf32>,
    return
  }
  func.func @transform_0(%arg0: i32) -> (i32, i32, i32) {
    %c0_i32 = arith.constant 0 : i32
    %c0_i32_0 = arith.constant 0 : i32
    %c0_i32_1 = arith.constant 0 : i32
    return %arg0, %c0_i32, %c0_i32_0 : i32, i32, i32
  }
  func.func @transform_1(%arg0: i32) -> (i32, i32, i32) {
    %c0_i32 = arith.constant 0 : i32
    %c0_i32_0 = arith.constant 0 : i32
    %c0_i32_1 = arith.constant 0 : i32
    return %arg0, %c0_i32, %c0_i32_0 : i32, i32, i32
  }
  func.func @transform_2(%arg0: i32) -> (i32, i32) {
    %c0_i32 = arith.constant 0 : i32
    %c0_i32_0 = arith.constant 0 : i32
    %c0_i32_1 = arith.constant 0 : i32
    return %c0_i32, %c0_i32_0 : i32, i32
  }
  func.func @transform_3(%arg0: i32) -> (i32, i32) {
    %c0_i32 = arith.constant 0 : i32
    %c0_i32_0 = arith.constant 0 : i32
    %c0_i32_1 = arith.constant 0 : i32
    return %c0_i32, %c0_i32_0 : i32, i32
  }
  func.func @transform_4(%arg0: i32) -> (i32, i32) {
    %c0_i32 = arith.constant 0 : i32
    %c0_i32_0 = arith.constant 0 : i32
    %c0_i32_1 = arith.constant 0 : i32
    return %c0_i32, %c0_i32_0 : i32, i32
  }
  func.func @transform_5(%arg0: i32) -> (i32, i32) {
    %c0_i32 = arith.constant 0 : i32
    %c0_i32_0 = arith.constant 0 : i32
    %c0_i32_1 = arith.constant 0 : i32
    return %c0_i32, %c0_i32_0 : i32, i32
  }
  func.func @transform_6(%arg0: i32) -> (i32, i32) {
    %c0_i32 = arith.constant 0 : i32
    %c0_i32_0 = arith.constant 0 : i32
    %c0_i32_1 = arith.constant 0 : i32
    return %c0_i32, %c0_i32_0 : i32, i32
  }
  func.func @transform_7(%arg0: i32) -> (i32, i32) {
    %c0_i32 = arith.constant 0 : i32
    %c0_i32_0 = arith.constant 0 : i32
    %c0_i32_1 = arith.constant 0 : i32
    return %c0_i32, %c0_i32_0 : i32, i32
  }
  func.func @transform_8(%arg0: i32) -> (i32, i32) {
    %c0_i32 = arith.constant 0 : i32
    %c0_i32_0 = arith.constant 0 : i32
    %c0_i32_1 = arith.constant 0 : i32
    return %c0_i32, %c0_i32_0 : i32, i32
  }
  func.func @transform_9(%arg0: i32) -> (i32, i32) {
    %c0_i32 = arith.constant 0 : i32
    %c0_i32_0 = arith.constant 0 : i32
    %c0_i32_1 = arith.constant 0 : i32
    return %c0_i32, %c0_i32_0 : i32, i32
  }
  func.func @transform_10(%arg0: i32) -> (i32, i32, i32) {
    %c0_i32 = arith.constant 0 : i32
    %c0_i32_0 = arith.constant 0 : i32
    %c0_i32_1 = arith.constant 0 : i32
    return %arg0, %c0_i32, %c0_i32_0 : i32, i32, i32
  }
}

</mosaic_0001>

<llo_original>
// kernel: transformer_forward.21
$region0: #{transformer_forward.21}
  #allocation0 [shape = 'u32[]', space=smem, size = 0x4, offset = 0x4, fixed_abs, tag = 'smem constant byte address 0x4 - core index']
  #allocation1 [shape = 'u32[144,128]{1,0:T(1,128)}', space=vmem, size = 0x12000, scoped, tag = 'internal scratch']
  %s0 = inlined_call_operand.vmem [shape: f32[32,128], index: 0, kind: input, shape index: {}]
  %s1 = inlined_call_operand.vmem [shape: bf16[128,128], index: 1, kind: input, shape index: {}]
  %s2 = inlined_call_operand.vmem [shape: f32[1,128], index: 2, kind: input, shape index: {}]
  %s3 = inlined_call_operand.hbm [shape: f32[32,128], index: 3, kind: output, shape index: {}]
  %s4 = sld [smem:[#allocation0]]
  $region22: #{transformer_forward.21} parent=0
    _
  %s6 = ssub.s32 1, %s4
  %s7 = scalar_select 0, %s6, %s4
  $region1: #{transformer_forward.21} parent=0
    #allocation2 [shape = 'u8[16384]{0}', space=vmem, size = 0x4000, scoped, tag = 'output window, operand 0, single buffered']
    #allocation3 [shape = 's32[1]{0}', space=sflag, size = 0x4, scoped, tag = 'scoped memory for transformer_forward.21']
    %8 = vsyncpa [#allocation3], 0
    // Predicated region
    $region2: #{transformer_forward.21} parent=1 // pred_check
      _
    $region3: #{transformer_forward.21} parent=1 // pred_check_branch
      %10 = sbr.rel (0) target = $region5
    $region4: #{transformer_forward.21} parent=1 // pred_region
      _
    $region5: #{transformer_forward.21} parent=1 // pred_fallthru
      _
    // Predicated region
    $region6: #{transformer_forward.21} parent=1 // pred_check
      _
    $region7: #{transformer_forward.21} parent=1 // pred_check_branch
      %12 = sbr.rel (0) target = $region9
    $region8: #{transformer_forward.21} parent=1 // pred_region
      _
    $region9: #{transformer_forward.21} parent=1 // pred_fallthru
      _
    // Predicated region
    $region10: #{transformer_forward.21} parent=1 // pred_check
      _
    $region11: #{transformer_forward.21} parent=1 // pred_check_branch
      %14 = sbr.rel (0) target = $region13
    $region12: #{transformer_forward.21} parent=1 // pred_region
      _
    $region13: #{transformer_forward.21} parent=1 // pred_fallthru
      _
    %v16 = vld [vmem:[%s0] sm:$0xff]
    %v17 = vld [vmem:[%s0 + $0x8] sm:$0xff]
    %v18 = vld [vmem:[%s0 + $0x10] sm:$0xff]
    %v19 = vld [vmem:[%s0 + $0x18] sm:$0xff]
    %v20 = vpack.c.bf16 %v17, %v16
    %v21 = vpack.c.bf16 %v19, %v18
    %v22 = vld [vmem:[%s1] sm:$0xf]
    %v23 = vld [vmem:[%s1 + $0x4] sm:$0xf]
    %v24 = vld [vmem:[%s1 + $0x8] sm:$0xf]
    %v25 = vld [vmem:[%s1 + $0xc] sm:$0xf]
    %v26 = vld [vmem:[%s1 + $0x10] sm:$0xf]
    %v27 = vld [vmem:[%s1 + $0x14] sm:$0xf]
    %v28 = vld [vmem:[%s1 + $0x18] sm:$0xf]
    %v29 = vld [vmem:[%s1 + $0x1c] sm:$0xf]
    %v30 = vld [vmem:[%s1 + $0x20] sm:$0xf]
    %v31 = vld [vmem:[%s1 + $0x24] sm:$0xf]
    %v32 = vld [vmem:[%s1 + $0x28] sm:$0xf]
    %v33 = vld [vmem:[%s1 + $0x2c] sm:$0xf]
    %v34 = vld [vmem:[%s1 + $0x30] sm:$0xf]
    %v35 = vld [vmem:[%s1 + $0x34] sm:$0xf]
    %v36 = vld [vmem:[%s1 + $0x38] sm:$0xf]
    %v37 = vld [vmem:[%s1 + $0x3c] sm:$0xf]
    %v38 = vld [vmem:[%s2] sm:$0x1]
    %v40 = vlaneseq
    %v41 = vshrl.u32 %v40, 7
    %v42 = vsub.s32 0, %v41
    %v43 = vrot.slane %v38, %v42
    %v61 = vunpack.c.l.b16 %v22
    %v62 = vunpack.c.l.b16 %v23
    %v63 = vunpack.c.l.b16 %v24
    %v64 = vunpack.c.l.b16 %v25
    %v65 = vunpack.c.l.b16 %v26
    %v66 = vunpack.c.l.b16 %v27
    %v67 = vunpack.c.l.b16 %v28
    %v68 = vunpack.c.l.b16 %v29
    %v69 = vunpack.c.l.b16 %v30
    %v70 = vunpack.c.l.b16 %v31
    %v71 = vunpack.c.l.b16 %v32
    %v72 = vunpack.c.l.b16 %v33
    %v73 = vunpack.c.l.b16 %v34
    %v74 = vunpack.c.l.b16 %v35
    %v75 = vunpack.c.l.b16 %v36
    %v76 = vunpack.c.l.b16 %v37
    %v77 = vpack.c.b16 %v62, %v61
    %v78 = vpack.c.b16 %v64, %v63
    %v79 = vpack.c.b16 %v66, %v65
    %v80 = vpack.c.b16 %v68, %v67
    %v81 = vpack.c.b16 %v70, %v69
    %v82 = vpack.c.b16 %v72, %v71
    %v83 = vpack.c.b16 %v74, %v73
    %v84 = vpack.c.b16 %v76, %v75
    %93 = vmatprep.subr.bf16.mxu0 0
    %94 = vmatpush1.bf16.msra.mxu0 %v77
    %95 = vmatprep.subr.bf16.mxu0 0
    %96 = vmatpush1.bf16.msra.mxu0 %v78
    %97 = vmatprep.subr.bf16.mxu0 0
    %98 = vmatpush1.bf16.msra.mxu0 %v79
    %99 = vmatprep.subr.bf16.mxu0 0
    %100 = vmatpush1.bf16.msra.mxu0 %v80
    %101 = vmatprep.subr.bf16.mxu0 0
    %102 = vmatpush1.bf16.msra.mxu0 %v81
    %103 = vmatprep.subr.bf16.mxu0 0
    %104 = vmatpush1.bf16.msra.mxu0 %v82
    %105 = vmatprep.subr.bf16.mxu0 0
    %106 = vmatpush1.bf16.msra.mxu0 %v83
    %107 = vmatprep.subr.bf16.mxu0 0
    %108 = vmatpush1.bf16.msra.mxu0 %v84
    %109 = vmatprep.subr.bf16.mxu0 0
    %110 = vmatpush1.bf16.msra.mxu0 0
    %111 = vmatprep.subr.bf16.mxu0 0
    %112 = vmatpush1.bf16.msra.mxu0 0
    %113 = vmatprep.subr.bf16.mxu0 0
    %114 = vmatpush1.bf16.msra.mxu0 0
    %115 = vmatprep.subr.bf16.mxu0 0
    %116 = vmatpush1.bf16.msra.mxu0 0
    %117 = vmatprep.subr.bf16.mxu0 0
    %118 = vmatpush1.bf16.msra.mxu0 0
    %119 = vmatprep.subr.bf16.mxu0 0
    %120 = vmatpush1.bf16.msra.mxu0 0
    %121 = vmatprep.subr.bf16.mxu0 0
    %122 = vmatpush1.bf16.msra.mxu0 0
    %123 = vmatprep.subr.bf16.mxu0 0
    %124 = vmatpush1.bf16.msra.mxu0 0
    %125 = vmatprep.mubr.bf16.mxu0 0
    %126 = vmatmul.mubr.bf16.gmra.mrb[0].mxu0 %v20
    %v127 = vpop.f32.mrb[0].mxu0
    %v128 = vadd.f32 %v43, %v127
    %v129 = vpop.f32.mrb[0].mxu0
    %v130 = vpop.f32.mrb[0].mxu0
    %v131 = vadd.f32 %v43, %v130
    %v132 = vpop.f32.mrb[0].mxu0
    %133 = vmatprep.mubr.bf16.mxu0 0
    %134 = vmatmul.mubr.bf16.gmra.mrb[0].mxu0 %v21
    %v135 = vpop.f32.mrb[0].mxu0
    %v136 = vadd.f32 %v43, %v135
    %v137 = vpop.f32.mrb[0].mxu0
    %v138 = vpop.f32.mrb[0].mxu0
    %v139 = vadd.f32 %v43, %v138
    %v140 = vpop.f32.mrb[0].mxu0
    %141 = vdwg.mxu0
    %142 = vmax.xlane.f32.xlu0 %v128
    %v143 = vpop.xlane.xlu0 %142
    %144 = vmax.xlane.f32.xlu0 %v131
    %v145 = vpop.xlane.xlu0 %144
    %146 = vmax.xlane.f32.xlu0 %v136
    %v147 = vpop.xlane.xlu0 %146
    %148 = vmax.xlane.f32.xlu0 %v139
    %v149 = vpop.xlane.xlu0 %148
    %v150 = vsub.f32 %v128, %v143
    %v151 = vsub.f32 %v131, %v145
    %v152 = vsub.f32 %v136, %v147
    %v153 = vsub.f32 %v139, %v149
    %v154 = vmul.f32 %v150, 1.442695
    %v155 = vpow.pop %v154
    %v156 = vmul.f32 %v151, 1.442695
    %v157 = vpow.pop %v156
    %v158 = vmul.f32 %v152, 1.442695
    %v159 = vpow.pop %v158
    %v160 = vmul.f32 %v153, 1.442695
    %v161 = vpow.pop %v160
    %162 = vadd.xlane.f32.xlu0 %v155
    %v163 = vpop.xlane.xlu0 %162
    %164 = vadd.xlane.f32.xlu0 %v157
    %v165 = vpop.xlane.xlu0 %164
    %166 = vadd.xlane.f32.xlu0 %v159
    %v167 = vpop.xlane.xlu0 %166
    %168 = vadd.xlane.f32.xlu0 %v161
    %v169 = vpop.xlane.xlu0 %168
    %v170 = vrcp.pop %v163
    %v171 = vmul.f32 %v155, %v170
    %v172 = vrcp.pop %v165
    %v173 = vmul.f32 %v157, %v172
    %v174 = vrcp.pop %v167
    %v175 = vmul.f32 %v159, %v174
    %v176 = vrcp.pop %v169
    %v177 = vmul.f32 %v161, %v176
    %178 = vst [vmem:[#allocation2] sm:$0xff] %v171
    %179 = vst [vmem:[#allocation2 + $0x8] sm:$0xff] %v173
    %180 = vst [vmem:[#allocation2 + $0x10] sm:$0xff] %v175
    %181 = vst [vmem:[#allocation2 + $0x18] sm:$0xff] %v177
    // Predicated region
    $region14: #{transformer_forward.21} parent=1 // pred_check
      _
    $region15: #{transformer_forward.21} parent=1 // pred_check_branch
      %183 = sbr.rel (0) target = $region17
    $region16: #{transformer_forward.21} parent=1 // pred_region
      %s185 = ssub.s32 512, 512
      %186 = vsyncadd [#allocation3], %s185
      %s187 = sshll.u32 [#allocation2], 4
      %s188 = int_to_ptr.vmem [resolvable:$true] %s187
      %193 = dma.vmem_to_hbm [thread:$0]  %s188, 512, %s3, [#allocation3], 128, 128, 8
    $region17: #{transformer_forward.21} parent=1 // pred_fallthru
      _
    // Predicated region
    $region18: #{transformer_forward.21} parent=1 // pred_check
      _
    $region19: #{transformer_forward.21} parent=1 // pred_check_branch
      %195 = sbr.rel (0) target = $region21
    $region20: #{transformer_forward.21} parent=1 // pred_region
      %196 = dma.done [#allocation3], 512
    $region21: #{transformer_forward.21} parent=1 // pred_fallthru
      _
    %197 = vsyncpa [#allocation3], 1

// kernel: transformer_forward.12
$region0: #{transformer_forward.12}
  #allocation0 [shape = 'u32[]', space=smem, size = 0x4, offset = 0x4, fixed_abs, tag = 'smem constant byte address 0x4 - core index']
  #allocation1 [shape = 'u32[144,128]{1,0:T(1,128)}', space=vmem, size = 0x12000, scoped, tag = 'internal scratch']
  %s0 = inlined_call_operand.vmem [shape: f32[32,128], index: 0, kind: input, shape index: {}]
  %s1 = inlined_call_operand.vmem [shape: bf16[128,256], index: 1, kind: input, shape index: {}]
  %s2 = inlined_call_operand.vmem [shape: f32[1,256], index: 2, kind: input, shape index: {}]
  %s3 = inlined_call_operand.vmem [shape: bf16[256,128], index: 3, kind: input, shape index: {}]
  %s4 = inlined_call_operand.vmem [shape: f32[1,128], index: 4, kind: input, shape index: {}]
  %s5 = inlined_call_operand.vmem [shape: f32[1,128], index: 5, kind: input, shape index: {}]
  %s6 = inlined_call_operand.vmem [shape: f32[1,128], index: 6, kind: input, shape index: {}]
  %s7 = inlined_call_operand.vmem [shape: f32[32,128], index: 7, kind: output, shape index: {}]
  %s8 = sld [smem:[#allocation0]]
  $region38: #{transformer_forward.12} parent=0
    _
  %s10 = ssub.s32 1, %s8
  %s11 = scalar_select 0, %s10, %s8
  // Predicated region
  $region2: #{transformer_forward.12} parent=0 // pred_check
    _
  $region3: #{transformer_forward.12} parent=0 // pred_check_branch
    %13 = sbr.rel (0) target = $region5
  $region4: #{transformer_forward.12} parent=0 // pred_region
    _
  $region5: #{transformer_forward.12} parent=0 // pred_fallthru
    _
  // Predicated region
  $region6: #{transformer_forward.12} parent=0 // pred_check
    _
  $region7: #{transformer_forward.12} parent=0 // pred_check_branch
    %15 = sbr.rel (0) target = $region9
  $region8: #{transformer_forward.12} parent=0 // pred_region
    _
  $region9: #{transformer_forward.12} parent=0 // pred_fallthru
    _
  // Predicated region
  $region10: #{transformer_forward.12} parent=0 // pred_check
    _
  $region11: #{transformer_forward.12} parent=0 // pred_check_branch
    %17 = sbr.rel (0) target = $region13
  $region12: #{transformer_forward.12} parent=0 // pred_region
    _
  $region13: #{transformer_forward.12} parent=0 // pred_fallthru
    _
  // Predicated region
  $region14: #{transformer_forward.12} parent=0 // pred_check
    _
  $region15: #{transformer_forward.12} parent=0 // pred_check_branch
    %19 = sbr.rel (0) target = $region17
  $region16: #{transformer_forward.12} parent=0 // pred_region
    _
  $region17: #{transformer_forward.12} parent=0 // pred_fallthru
    _
  // Predicated region
  $region18: #{transformer_forward.12} parent=0 // pred_check
    _
  $region19: #{transformer_forward.12} parent=0 // pred_check_branch
    %21 = sbr.rel (0) target = $region21
  $region20: #{transformer_forward.12} parent=0 // pred_region
    _
  $region21: #{transformer_forward.12} parent=0 // pred_fallthru
    _
  // Predicated region
  $region22: #{transformer_forward.12} parent=0 // pred_check
    _
  $region23: #{transformer_forward.12} parent=0 // pred_check_branch
    %23 = sbr.rel (0) target = $region25
  $region24: #{transformer_forward.12} parent=0 // pred_region
    _
  $region25: #{transformer_forward.12} parent=0 // pred_fallthru
    _
  // Predicated region
  $region26: #{transformer_forward.12} parent=0 // pred_check
    _
  $region27: #{transformer_forward.12} parent=0 // pred_check_branch
    %25 = sbr.rel (0) target = $region29
  $region28: #{transformer_forward.12} parent=0 // pred_region
    _
  $region29: #{transformer_forward.12} parent=0 // pred_fallthru
    _
  %v27 = vld [vmem:[%s0] sm:$0xff]
  %v28 = vld [vmem:[%s0 + $0x8] sm:$0xff]
  %v29 = vld [vmem:[%s0 + $0x10] sm:$0xff]
  %v30 = vld [vmem:[%s0 + $0x18] sm:$0xff]
  %v31 = vpack.c.bf16 %v28, %v27
  %v32 = vpack.c.bf16 %v30, %v29
  %v33 = vld [vmem:[%s1] sm:$0xff]
  %v34 = vld [vmem:[%s1 + $0x8] sm:$0xff]
  %v35 = vld [vmem:[%s1 + $0x10] sm:$0xff]
  %v36 = vld [vmem:[%s1 + $0x18] sm:$0xff]
  %v37 = vld [vmem:[%s1 + $0x20] sm:$0xff]
  %v38 = vld [vmem:[%s1 + $0x28] sm:$0xff]
  %v39 = vld [vmem:[%s1 + $0x30] sm:$0xff]
  %v40 = vld [vmem:[%s1 + $0x38] sm:$0xff]
  %v41 = vld [vmem:[%s1 + $0x40] sm:$0xff]
  %v42 = vld [vmem:[%s1 + $0x48] sm:$0xff]
  %v43 = vld [vmem:[%s1 + $0x50] sm:$0xff]
  %v44 = vld [vmem:[%s1 + $0x58] sm:$0xff]
  %v45 = vld [vmem:[%s1 + $0x60] sm:$0xff]
  %v46 = vld [vmem:[%s1 + $0x68] sm:$0xff]
  %v47 = vld [vmem:[%s1 + $0x70] sm:$0xff]
  %v48 = vld [vmem:[%s1 + $0x78] sm:$0xff]
  %v49 = vld [vmem:[%s2] sm:$0x3]
  %v51 = vlaneseq
  %v52 = vshrl.u32 %v51, 7
  %v53 = vsub.s32 0, %v52
  %v54 = vrot.slane %v49, %v53
  %v55 = vlaneseq
  %v56 = vshrl.u32 %v55, 7
  %v57 = vsub.s32 1, %v56
  %v58 = vrot.slane %v49, %v57
  %v77 = vunpack.c.l.b16 %v33
  %v78 = vunpack.c.h.b16 %v33
  %v79 = vunpack.c.l.b16 %v34
  %v80 = vunpack.c.h.b16 %v34
  %v81 = vunpack.c.l.b16 %v35
  %v82 = vunpack.c.h.b16 %v35
  %v83 = vunpack.c.l.b16 %v36
  %v84 = vunpack.c.h.b16 %v36
  %v85 = vunpack.c.l.b16 %v37
  %v86 = vunpack.c.h.b16 %v37
  %v87 = vunpack.c.l.b16 %v38
  %v88 = vunpack.c.h.b16 %v38
  %v89 = vunpack.c.l.b16 %v39
  %v90 = vunpack.c.h.b16 %v39
  %v91 = vunpack.c.l.b16 %v40
  %v92 = vunpack.c.h.b16 %v40
  %v93 = vunpack.c.l.b16 %v41
  %v94 = vunpack.c.h.b16 %v41
  %v95 = vunpack.c.l.b16 %v42
  %v96 = vunpack.c.h.b16 %v42
  %v97 = vunpack.c.l.b16 %v43
  %v98 = vunpack.c.h.b16 %v43
  %v99 = vunpack.c.l.b16 %v44
  %v100 = vunpack.c.h.b16 %v44
  %v101 = vunpack.c.l.b16 %v45
  %v102 = vunpack.c.h.b16 %v45
  %v103 = vunpack.c.l.b16 %v46
  %v104 = vunpack.c.h.b16 %v46
  %v105 = vunpack.c.l.b16 %v47
  %v106 = vunpack.c.h.b16 %v47
  %v107 = vunpack.c.l.b16 %v48
  %v108 = vunpack.c.h.b16 %v48
  %v109 = vpack.c.b16 %v79, %v77
  %v110 = vpack.c.b16 %v80, %v78
  %v111 = vpack.c.b16 %v83, %v81
  %v112 = vpack.c.b16 %v84, %v82
  %v113 = vpack.c.b16 %v87, %v85
  %v114 = vpack.c.b16 %v88, %v86
  %v115 = vpack.c.b16 %v91, %v89
  %v116 = vpack.c.b16 %v92, %v90
  %v117 = vpack.c.b16 %v95, %v93
  %v118 = vpack.c.b16 %v96, %v94
  %v119 = vpack.c.b16 %v99, %v97
  %v120 = vpack.c.b16 %v100, %v98
  %v121 = vpack.c.b16 %v103, %v101
  %v122 = vpack.c.b16 %v104, %v102
  %v123 = vpack.c.b16 %v107, %v105
  %v124 = vpack.c.b16 %v108, %v106
  %141 = vmatprep.subr.bf16.mxu0 %v110
  %142 = vmatpush1.bf16.msra.mxu0 %v109
  %143 = vmatprep.subr.bf16.mxu0 %v112
  %144 = vmatpush1.bf16.msra.mxu0 %v111
  %145 = vmatprep.subr.bf16.mxu0 %v114
  %146 = vmatpush1.bf16.msra.mxu0 %v113
  %147 = vmatprep.subr.bf16.mxu0 %v116
  %148 = vmatpush1.bf16.msra.mxu0 %v115
  %149 = vmatprep.subr.bf16.mxu0 %v118
  %150 = vmatpush1.bf16.msra.mxu0 %v117
  %151 = vmatprep.subr.bf16.mxu0 %v120
  %152 = vmatpush1.bf16.msra.mxu0 %v119
  %153 = vmatprep.subr.bf16.mxu0 %v122
  %154 = vmatpush1.bf16.msra.mxu0 %v121
  %155 = vmatprep.subr.bf16.mxu0 %v124
  %156 = vmatpush1.bf16.msra.mxu0 %v123
  %157 = vmatprep.subr.bf16.mxu0 0
  %158 = vmatpush1.bf16.msra.mxu0 0
  %159 = vmatprep.subr.bf16.mxu0 0
  %160 = vmatpush1.bf16.msra.mxu0 0
  %161 = vmatprep.subr.bf16.mxu0 0
  %162 = vmatpush1.bf16.msra.mxu0 0
  %163 = vmatprep.subr.bf16.mxu0 0
  %164 = vmatpush1.bf16.msra.mxu0 0
  %165 = vmatprep.subr.bf16.mxu0 0
  %166 = vmatpush1.bf16.msra.mxu0 0
  %167 = vmatprep.subr.bf16.mxu0 0
  %168 = vmatpush1.bf16.msra.mxu0 0
  %169 = vmatprep.subr.bf16.mxu0 0
  %170 = vmatpush1.bf16.msra.mxu0 0
  %171 = vmatprep.subr.bf16.mxu0 0
  %172 = vmatpush1.bf16.msra.mxu0 0
  %173 = vmatprep.mubr.bf16.mxu0 0
  %174 = vmatmul.mubr.bf16.gmra.mrb[0].mxu0 %v31
  %v175 = vpop.f32.mrb[0].mxu0
  %v176 = vadd.f32 %v54, %v175
  %v177 = vpop.f32.mrb[0].mxu0
  %v178 = vadd.f32 %v58, %v177
  %v179 = vpop.f32.mrb[0].mxu0
  %v180 = vadd.f32 %v54, %v179
  %v181 = vpop.f32.mrb[0].mxu0
  %v182 = vadd.f32 %v58, %v181
  %183 = vmatprep.mubr.bf16.mxu0 0
  %184 = vmatmul.mubr.bf16.gmra.mrb[0].mxu0 %v32
  %v185 = vpop.f32.mrb[0].mxu0
  %v186 = vadd.f32 %v54, %v185
  %v187 = vpop.f32.mrb[0].mxu0
  %v188 = vadd.f32 %v58, %v187
  %v189 = vpop.f32.mrb[0].mxu0
  %v190 = vadd.f32 %v54, %v189
  %v191 = vpop.f32.mrb[0].mxu0
  %v192 = vadd.f32 %v58, %v191
  %193 = vdwg.mxu0
  %v194 = vmax.f32 %v176, 0.0
  %v195 = vmax.f32 %v178, 0.0
  %v196 = vmax.f32 %v180, 0.0
  %v197 = vmax.f32 %v182, 0.0
  %v198 = vmax.f32 %v186, 0.0
  %v199 = vmax.f32 %v188, 0.0
  %v200 = vmax.f32 %v190, 0.0
  %v201 = vmax.f32 %v192, 0.0
  %v202 = vpack.c.bf16 %v196, %v194
  %v203 = vpack.c.bf16 %v197, %v195
  %v204 = vpack.c.bf16 %v200, %v198
  %v205 = vpack.c.bf16 %v201, %v199
  %v206 = vld [vmem:[%s3] sm:$0xf]
  %v207 = vld [vmem:[%s3 + $0x4] sm:$0xf]
  %v208 = vld [vmem:[%s3 + $0x8] sm:$0xf]
  %v209 = vld [vmem:[%s3 + $0xc] sm:$0xf]
  %v210 = vld [vmem:[%s3 + $0x10] sm:$0xf]
  %v211 = vld [vmem:[%s3 + $0x14] sm:$0xf]
  %v212 = vld [vmem:[%s3 + $0x18] sm:$0xf]
  %v213 = vld [vmem:[%s3 + $0x1c] sm:$0xf]
  %v214 = vld [vmem:[%s3 + $0x20] sm:$0xf]
  %v215 = vld [vmem:[%s3 + $0x24] sm:$0xf]
  %v216 = vld [vmem:[%s3 + $0x28] sm:$0xf]
  %v217 = vld [vmem:[%s3 + $0x2c] sm:$0xf]
  %v218 = vld [vmem:[%s3 + $0x30] sm:$0xf]
  %v219 = vld [vmem:[%s3 + $0x34] sm:$0xf]
  %v220 = vld [vmem:[%s3 + $0x38] sm:$0xf]
  %v221 = vld [vmem:[%s3 + $0x3c] sm:$0xf]
  %v222 = vld [vmem:[%s3 + $0x40] sm:$0xf]
  %v223 = vld [vmem:[%s3 + $0x44] sm:$0xf]
  %v224 = vld [vmem:[%s3 + $0x48] sm:$0xf]
  %v225 = vld [vmem:[%s3 + $0x4c] sm:$0xf]
  %v226 = vld [vmem:[%s3 + $0x50] sm:$0xf]
  %v227 = vld [vmem:[%s3 + $0x54] sm:$0xf]
  %v228 = vld [vmem:[%s3 + $0x58] sm:$0xf]
  %v229 = vld [vmem:[%s3 + $0x5c] sm:$0xf]
  %v230 = vld [vmem:[%s3 + $0x60] sm:$0xf]
  %v231 = vld [vmem:[%s3 + $0x64] sm:$0xf]
  %v232 = vld [vmem:[%s3 + $0x68] sm:$0xf]
  %v233 = vld [vmem:[%s3 + $0x6c] sm:$0xf]
  %v234 = vld [vmem:[%s3 + $0x70] sm:$0xf]
  %v235 = vld [vmem:[%s3 + $0x74] sm:$0xf]
  %v236 = vld [vmem:[%s3 + $0x78] sm:$0xf]
  %v237 = vld [vmem:[%s3 + $0x7c] sm:$0xf]
  %v270 = vunpack.c.l.b16 %v206
  %v271 = vunpack.c.l.b16 %v207
  %v272 = vunpack.c.l.b16 %v208
  %v273 = vunpack.c.l.b16 %v209
  %v274 = vunpack.c.l.b16 %v210
  %v275 = vunpack.c.l.b16 %v211
  %v276 = vunpack.c.l.b16 %v212
  %v277 = vunpack.c.l.b16 %v213
  %v278 = vunpack.c.l.b16 %v214
  %v279 = vunpack.c.l.b16 %v215
  %v280 = vunpack.c.l.b16 %v216
  %v281 = vunpack.c.l.b16 %v217
  %v282 = vunpack.c.l.b16 %v218
  %v283 = vunpack.c.l.b16 %v219
  %v284 = vunpack.c.l.b16 %v220
  %v285 = vunpack.c.l.b16 %v221
  %v286 = vunpack.c.l.b16 %v222
  %v287 = vunpack.c.l.b16 %v223
  %v288 = vunpack.c.l.b16 %v224
  %v289 = vunpack.c.l.b16 %v225
  %v290 = vunpack.c.l.b16 %v226
  %v291 = vunpack.c.l.b16 %v227
  %v292 = vunpack.c.l.b16 %v228
  %v293 = vunpack.c.l.b16 %v229
  %v294 = vunpack.c.l.b16 %v230
  %v295 = vunpack.c.l.b16 %v231
  %v296 = vunpack.c.l.b16 %v232
  %v297 = vunpack.c.l.b16 %v233
  %v298 = vunpack.c.l.b16 %v234
  %v299 = vunpack.c.l.b16 %v235
  %v300 = vunpack.c.l.b16 %v236
  %v301 = vunpack.c.l.b16 %v237
  %v302 = vpack.c.b16 %v271, %v270
  %v303 = vpack.c.b16 %v273, %v272
  %v304 = vpack.c.b16 %v275, %v274
  %v305 = vpack.c.b16 %v277, %v276
  %v306 = vpack.c.b16 %v279, %v278
  %v307 = vpack.c.b16 %v281, %v280
  %v308 = vpack.c.b16 %v283, %v282
  %v309 = vpack.c.b16 %v285, %v284
  %v310 = vpack.c.b16 %v287, %v286
  %v311 = vpack.c.b16 %v289, %v288
  %v312 = vpack.c.b16 %v291, %v290
  %v313 = vpack.c.b16 %v293, %v292
  %v314 = vpack.c.b16 %v295, %v294
  %v315 = vpack.c.b16 %v297, %v296
  %v316 = vpack.c.b16 %v299, %v298
  %v317 = vpack.c.b16 %v301, %v300
  %334 = vmatprep.subr.bf16.mxu0 0
  %335 = vmatpush1.bf16.msra.mxu0 %v302
  %336 = vmatprep.subr.bf16.mxu0 0
  %337 = vmatpush1.bf16.msra.mxu0 %v303
  %338 = vmatprep.subr.bf16.mxu0 0
  %339 = vmatpush1.bf16.msra.mxu0 %v304
  %340 = vmatprep.subr.bf16.mxu0 0
  %341 = vmatpush1.bf16.msra.mxu0 %v305
  %342 = vmatprep.subr.bf16.mxu0 0
  %343 = vmatpush1.bf16.msra.mxu0 %v306
  %344 = vmatprep.subr.bf16.mxu0 0
  %345 = vmatpush1.bf16.msra.mxu0 %v307
  %346 = vmatprep.subr.bf16.mxu0 0
  %347 = vmatpush1.bf16.msra.mxu0 %v308
  %348 = vmatprep.subr.bf16.mxu0 0
  %349 = vmatpush1.bf16.msra.mxu0 %v309
  %350 = vmatprep.subr.bf16.mxu0 0
  %351 = vmatpush1.bf16.msra.mxu0 %v310
  %352 = vmatprep.subr.bf16.mxu0 0
  %353 = vmatpush1.bf16.msra.mxu0 %v311
  %354 = vmatprep.subr.bf16.mxu0 0
  %355 = vmatpush1.bf16.msra.mxu0 %v312
  %356 = vmatprep.subr.bf16.mxu0 0
  %357 = vmatpush1.bf16.msra.mxu0 %v313
  %358 = vmatprep.subr.bf16.mxu0 0
  %359 = vmatpush1.bf16.msra.mxu0 %v314
  %360 = vmatprep.subr.bf16.mxu0 0
  %361 = vmatpush1.bf16.msra.mxu0 %v315
  %362 = vmatprep.subr.bf16.mxu0 0
  %363 = vmatpush1.bf16.msra.mxu0 %v316
  %364 = vmatprep.subr.bf16.mxu0 0
  %365 = vmatpush1.bf16.msra.mxu0 %v317
  %366 = vmatprep.mubr.bf16.mxu0 %v203
  %367 = vmatmul.mubr.bf16.gmra.mrb[0].mxu0 %v202
  %v368 = vpop.f32.mrb[0].mxu0
  %v369 = vadd.f32 0.0, %v368
  %v370 = vpop.f32.mrb[0].mxu0
  %v371 = vpop.f32.mrb[0].mxu0
  %v372 = vadd.f32 0.0, %v371
  %v373 = vpop.f32.mrb[0].mxu0
  %374 = vmatprep.mubr.bf16.mxu0 %v205
  %375 = vmatmul.mubr.bf16.gmra.mrb[0].mxu0 %v204
  %v376 = vpop.f32.mrb[0].mxu0
  %v377 = vadd.f32 0.0, %v376
  %v378 = vpop.f32.mrb[0].mxu0
  %v379 = vpop.f32.mrb[0].mxu0
  %v380 = vadd.f32 0.0, %v379
  %v381 = vpop.f32.mrb[0].mxu0
  %382 = vdwg.mxu0
  %v383 = vadd.f32 %v27, %v369
  %v384 = vadd.f32 %v28, %v372
  %v385 = vadd.f32 %v29, %v377
  %v386 = vadd.f32 %v30, %v380
  %v387 = vld [vmem:[%s4] sm:$0x1]
  %v389 = vlaneseq
  %v390 = vshrl.u32 %v389, 7
  %v391 = vsub.s32 0, %v390
  %v392 = vrot.slane %v387, %v391
  %v394 = vadd.f32 %v383, %v392
  %v395 = vadd.f32 %v384, %v392
  %v396 = vadd.f32 %v385, %v392
  %v397 = vadd.f32 %v386, %v392
  %v398 = vld [vmem:[%s5] sm:$0x1]
  %v399 = vld [vmem:[%s6] sm:$0x1]
  %400 = vadd.xlane.f32.xlu0 %v394
  %v401 = vpop.xlane.xlu0 %400
  %402 = vadd.xlane.f32.xlu0 %v395
  %v403 = vpop.xlane.xlu0 %402
  %404 = vadd.xlane.f32.xlu0 %v396
  %v405 = vpop.xlane.xlu0 %404
  %406 = vadd.xlane.f32.xlu0 %v397
  %v407 = vpop.xlane.xlu0 %406
  %v408 = vrcp.pop 128.0
  %v409 = vmul.f32 %v401, %v408
  %v410 = vmul.f32 %v403, %v408
  %v411 = vmul.f32 %v405, %v408
  %v412 = vmul.f32 %v407, %v408
  %v413 = vsub.f32 %v394, %v409
  %v414 = vsub.f32 %v395, %v410
  %v415 = vsub.f32 %v396, %v411
  %v416 = vsub.f32 %v397, %v412
  %v417 = vmul.f32 %v413, %v413
  %v418 = vmul.f32 %v414, %v414
  %v419 = vmul.f32 %v415, %v415
  %v420 = vmul.f32 %v416, %v416
  %421 = vadd.xlane.f32.xlu0 %v417
  %v422 = vpop.xlane.xlu0 %421
  %423 = vadd.xlane.f32.xlu0 %v418
  %v424 = vpop.xlane.xlu0 %423
  %425 = vadd.xlane.f32.xlu0 %v419
  %v426 = vpop.xlane.xlu0 %425
  %427 = vadd.xlane.f32.xlu0 %v420
  %v428 = vpop.xlane.xlu0 %427
  %v429 = vmul.f32 %v422, %v408
  %v430 = vmul.f32 %v424, %v408
  %v431 = vmul.f32 %v426, %v408
  %v432 = vmul.f32 %v428, %v408
  %v433 = vadd.f32 %v429, 1e-05
  %v434 = vadd.f32 %v430, 1e-05
  %v435 = vadd.f32 %v431, 1e-05
  %v436 = vadd.f32 %v432, 1e-05
  %v437 = vrsqrt.pop %v433
  %v438 = vrsqrt.pop %v434
  %v439 = vrsqrt.pop %v435
  %v440 = vrsqrt.pop %v436
  %v441 = vmul.f32 %v413, %v437
  %v442 = vmul.f32 %v414, %v438
  %v443 = vmul.f32 %v415, %v439
  %v444 = vmul.f32 %v416, %v440
  %v446 = vlaneseq
  %v447 = vshrl.u32 %v446, 7
  %v448 = vsub.s32 0, %v447
  %v449 = vrot.slane %v398, %v448
  %v451 = vmul.f32 %v441, %v449
  %v452 = vmul.f32 %v442, %v449
  %v453 = vmul.f32 %v443, %v449
  %v454 = vmul.f32 %v444, %v449
  %v456 = vlaneseq
  %v457 = vshrl.u32 %v456, 7
  %v458 = vsub.s32 0, %v457
  %v459 = vrot.slane %v399, %v458
  %v461 = vadd.f32 %v451, %v459
  %v462 = vadd.f32 %v452, %v459
  %v463 = vadd.f32 %v453, %v459
  %v464 = vadd.f32 %v454, %v459
  %465 = vst [vmem:[%s7] sm:$0xff] %v461
  %466 = vst [vmem:[%s7 + $0x8] sm:$0xff] %v462
  %467 = vst [vmem:[%s7 + $0x10] sm:$0xff] %v463
  %468 = vst [vmem:[%s7 + $0x18] sm:$0xff] %v464
  // Predicated region
  $region30: #{transformer_forward.12} parent=0 // pred_check
    _
  $region31: #{transformer_forward.12} parent=0 // pred_check_branch
    %470 = sbr.rel (0) target = $region33
  $region32: #{transformer_forward.12} parent=0 // pred_region
    _
  $region33: #{transformer_forward.12} parent=0 // pred_fallthru
    _
  // Predicated region
  $region34: #{transformer_forward.12} parent=0 // pred_check
    _
  $region35: #{transformer_forward.12} parent=0 // pred_check_branch
    %472 = sbr.rel (0) target = $region37
  $region36: #{transformer_forward.12} parent=0 // pred_region
    _
  $region37: #{transformer_forward.12} parent=0 // pred_fallthru
    _

// kernel: transformer_forward.11
$region0: #{transformer_forward.11}
  #allocation0 [shape = 'u32[]', space=smem, size = 0x4, offset = 0x4, fixed_abs, tag = 'smem constant byte address 0x4 - core index']
  #allocation1 [shape = 'u32[144,128]{1,0:T(1,128)}', space=vmem, size = 0x12000, scoped, tag = 'internal scratch']
  %s0 = inlined_call_operand.vmem [shape: f32[2,16,128], index: 0, kind: input, shape index: {}]
  %s1 = inlined_call_operand.vmem [shape: bf16[128,384], index: 1, kind: input, shape index: {}]
  %s2 = inlined_call_operand.vmem [shape: f32[1,384], index: 2, kind: input, shape index: {}]
  %s3 = inlined_call_operand.vmem [shape: bf16[128,128], index: 3, kind: input, shape index: {}]
  %s4 = inlined_call_operand.vmem [shape: f32[1,128], index: 4, kind: input, shape index: {}]
  %s5 = inlined_call_operand.vmem [shape: f32[1,128], index: 5, kind: input, shape index: {}]
  %s6 = inlined_call_operand.vmem [shape: f32[1,128], index: 6, kind: input, shape index: {}]
  %s7 = inlined_call_operand.vmem [shape: f32[2,16,128], index: 7, kind: output, shape index: {}]
  %s8 = sld [smem:[#allocation0]]
  $region61: #{transformer_forward.11} parent=0
    _
  %s10 = ssub.s32 1, %s8
  %s11 = scalar_select 0, %s10, %s8
  loop: start=0, step=1, limit=4
  $region2: #{transformer_forward.11} parent=0 // loop_pre_header
    _
  $region3: #{transformer_forward.11} parent=0 // loop_header
    %s13 = sphi 0, %s17
    %p14 = scmp.ge.s32.totalorder %s13, 4
    %s23 = sphi 0, %s25
    %s26 = sphi 0, %s23
    %s27 = sphi 0, %s26
    %s43 = sphi 0, %s27
    %s47 = sphi 0, %s47
    %s49 = sphi 0, %s47
    %s50 = sphi 0, %s49
    %s64 = sphi 0, %s50
    %s68 = sphi 0, %s68
    %s70 = sphi 0, %s68
    %s71 = sphi 0, %s70
    %s85 = sphi 0, %s71
    %s89 = sphi 0, %s89
    %s91 = sphi 0, %s89
    %s92 = sphi 0, %s91
    %s106 = sphi 0, %s92
    %s110 = sphi 0, %s110
    %s112 = sphi 0, %s110
    %s113 = sphi 0, %s112
    %s127 = sphi 0, %s113
    %s131 = sphi 0, %s131
    %s133 = sphi 0, %s131
    %s134 = sphi 0, %s133
    %s148 = sphi 0, %s134
    %s152 = sphi 0, %s152
    %s154 = sphi 0, %s152
    %s155 = sphi 0, %s154
    %s169 = sphi 0, %s155
    %s175 = sphi 0, %s177
    %s178 = sphi 0, %s175
    %s179 = sphi 0, %s178
    %s195 = sphi 0, %s179
  $region4: #{transformer_forward.11} parent=0 // loop_header_branch
    %16 = sbr.rel (%p14) target = $region8
  $region5: #{transformer_forward.11} parent=0 // loop_body
    %s18 = ssub.s32 %s13, 1
    %s19 = ssub.s32 %s13, 2
    %s20 = sadd.s32 %s13, 1
    %s21 = ssub.s32 %s13, %s20
    %p22 = scmp.eq.s32.totalorder %s21, 0
    %s24 = sadd.s32 %s23, 1
    %s25 = scalar_select %p22, %s23, %s24
    %p28 = pneg %p22
    %p29 = scmp.eq.s32.totalorder %s13, 1
    %p30 = por %p28, %p29
    %p31 = scmp.ne.s32.totalorder %s23, %s26
    %p32 = scmp.eq.s32.totalorder %s13, 0
    %p33 = por %p31, %p32
    %p34 = scmp.ne.s32.totalorder %s23, %s26
    %p35 = scmp.eq.s32.totalorder %s18, 1
    %p36 = por %p34, %p35
    %p37 = scmp.ne.s32.totalorder %s26, %s27
    %p38 = scmp.eq.s32.totalorder %s18, 0
    %p39 = por %p37, %p38
    %p40 = scmp.ne.s32.totalorder %s26, %s27
    %p41 = scmp.eq.s32.totalorder %s19, 1
    %p42 = por %p40, %p41
    %p44 = scmp.ne.s32.totalorder %s27, %s43
    %p45 = scmp.eq.s32.totalorder %s19, 0
    %p46 = por %p44, %p45
    %s48 = sadd.s32 %s47, 1
    %p51 = scmp.eq.s32.totalorder %s13, 1
    %p52 = scmp.ne.s32.totalorder %s47, %s49
    %p53 = scmp.eq.s32.totalorder %s13, 0
    %p54 = por %p52, %p53
    %p55 = scmp.ne.s32.totalorder %s47, %s49
    %p56 = scmp.eq.s32.totalorder %s18, 1
    %p57 = por %p55, %p56
    %p58 = scmp.ne.s32.totalorder %s49, %s50
    %p59 = scmp.eq.s32.totalorder %s18, 0
    %p60 = por %p58, %p59
    %p61 = scmp.ne.s32.totalorder %s49, %s50
    %p62 = scmp.eq.s32.totalorder %s19, 1
    %p63 = por %p61, %p62
    %p65 = scmp.ne.s32.totalorder %s50, %s64
    %p66 = scmp.eq.s32.totalorder %s19, 0
    %p67 = por %p65, %p66
    %s69 = sadd.s32 %s68, 1
    %p72 = scmp.eq.s32.totalorder %s13, 1
    %p73 = scmp.ne.s32.totalorder %s68, %s70
    %p74 = scmp.eq.s32.totalorder %s13, 0
    %p75 = por %p73, %p74
    %p76 = scmp.ne.s32.totalorder %s68, %s70
    %p77 = scmp.eq.s32.totalorder %s18, 1
    %p78 = por %p76, %p77
    %p79 = scmp.ne.s32.totalorder %s70, %s71
    %p80 = scmp.eq.s32.totalorder %s18, 0
    %p81 = por %p79, %p80
    %p82 = scmp.ne.s32.totalorder %s70, %s71
    %p83 = scmp.eq.s32.totalorder %s19, 1
    %p84 = por %p82, %p83
    %p86 = scmp.ne.s32.totalorder %s71, %s85
    %p87 = scmp.eq.s32.totalorder %s19, 0
    %p88 = por %p86, %p87
    %s90 = sadd.s32 %s89, 1
    %p93 = scmp.eq.s32.totalorder %s13, 1
    %p94 = scmp.ne.s32.totalorder %s89, %s91
    %p95 = scmp.eq.s32.totalorder %s13, 0
    %p96 = por %p94, %p95
    %p97 = scmp.ne.s32.totalorder %s89, %s91
    %p98 = scmp.eq.s32.totalorder %s18, 1
    %p99 = por %p97, %p98
    %p100 = scmp.ne.s32.totalorder %s91, %s92
    %p101 = scmp.eq.s32.totalorder %s18, 0
    %p102 = por %p100, %p101
    %p103 = scmp.ne.s32.totalorder %s91, %s92
    %p104 = scmp.eq.s32.totalorder %s19, 1
    %p105 = por %p103, %p104
    %p107 = scmp.ne.s32.totalorder %s92, %s106
    %p108 = scmp.eq.s32.totalorder %s19, 0
    %p109 = por %p107, %p108
    %s111 = sadd.s32 %s110, 1
    %p114 = scmp.eq.s32.totalorder %s13, 1
    %p115 = scmp.ne.s32.totalorder %s110, %s112
    %p116 = scmp.eq.s32.totalorder %s13, 0
    %p117 = por %p115, %p116
    %p118 = scmp.ne.s32.totalorder %s110, %s112
    %p119 = scmp.eq.s32.totalorder %s18, 1
    %p120 = por %p118, %p119
    %p121 = scmp.ne.s32.totalorder %s112, %s113
    %p122 = scmp.eq.s32.totalorder %s18, 0
    %p123 = por %p121, %p122
    %p124 = scmp.ne.s32.totalorder %s112, %s113
    %p125 = scmp.eq.s32.totalorder %s19, 1
    %p126 = por %p124, %p125
    %p128 = scmp.ne.s32.totalorder %s113, %s127
    %p129 = scmp.eq.s32.totalorder %s19, 0
    %p130 = por %p128, %p129
    %s132 = sadd.s32 %s131, 1
    %p135 = scmp.eq.s32.totalorder %s13, 1
    %p136 = scmp.ne.s32.totalorder %s131, %s133
    %p137 = scmp.eq.s32.totalorder %s13, 0
    %p138 = por %p136, %p137
    %p139 = scmp.ne.s32.totalorder %s131, %s133
    %p140 = scmp.eq.s32.totalorder %s18, 1
    %p141 = por %p139, %p140
    %p142 = scmp.ne.s32.totalorder %s133, %s134
    %p143 = scmp.eq.s32.totalorder %s18, 0
    %p144 = por %p142, %p143
    %p145 = scmp.ne.s32.totalorder %s133, %s134
    %p146 = scmp.eq.s32.totalorder %s19, 1
    %p147 = por %p145, %p146
    %p149 = scmp.ne.s32.totalorder %s134, %s148
    %p150 = scmp.eq.s32.totalorder %s19, 0
    %p151 = por %p149, %p150
    %s153 = sadd.s32 %s152, 1
    %p156 = scmp.eq.s32.totalorder %s13, 1
    %p157 = scmp.ne.s32.totalorder %s152, %s154
    %p158 = scmp.eq.s32.totalorder %s13, 0
    %p159 = por %p157, %p158
    %p160 = scmp.ne.s32.totalorder %s152, %s154
    %p161 = scmp.eq.s32.totalorder %s18, 1
    %p162 = por %p160, %p161
    %p163 = scmp.ne.s32.totalorder %s154, %s155
    %p164 = scmp.eq.s32.totalorder %s18, 0
    %p165 = por %p163, %p164
    %p166 = scmp.ne.s32.totalorder %s154, %s155
    %p167 = scmp.eq.s32.totalorder %s19, 1
    %p168 = por %p166, %p167
    %p170 = scmp.ne.s32.totalorder %s155, %s169
    %p171 = scmp.eq.s32.totalorder %s19, 0
    %p172 = por %p170, %p171
    %s173 = ssub.s32 %s13, %s20
    %p174 = scmp.eq.s32.totalorder %s173, 0
    %s176 = sadd.s32 %s175, 1
    %s177 = scalar_select %p174, %s175, %s176
    %p180 = pneg %p174
    %p181 = scmp.eq.s32.totalorder %s13, 1
    %p182 = por %p180, %p181
    %p183 = scmp.ne.s32.totalorder %s175, %s178
    %p184 = scmp.eq.s32.totalorder %s13, 0
    %p185 = por %p183, %p184
    %p186 = scmp.ne.s32.totalorder %s175, %s178
    %p187 = scmp.eq.s32.totalorder %s18, 1
    %p188 = por %p186, %p187
    %p189 = scmp.ne.s32.totalorder %s178, %s179
    %p190 = scmp.eq.s32.totalorder %s18, 0
    %p191 = por %p189, %p190
    %p192 = scmp.ne.s32.totalorder %s178, %s179
    %p193 = scmp.eq.s32.totalorder %s19, 1
    %p194 = por %p192, %p193
    %p196 = scmp.ne.s32.totalorder %s179, %s195
    %p197 = scmp.eq.s32.totalorder %s19, 0
    %p198 = por %p196, %p197
    %p199 = scmp.le.s32.totalorder 1, %s13
    %p200 = scmp.lt.s32.totalorder %s13, 3
    %p201 = pnand %p199, %p200
    %p202 = pneg %p201
    // Predicated region
    $region9: #{transformer_forward.11} parent=5 // pred_check
      _
    $region10: #{transformer_forward.11} parent=5 // pred_check_branch
      %204 = sbr.rel (%p201) target = $region12
    $region11: #{transformer_forward.11} parent=5 // pred_region
      %s205 = ssub.s32 %s13, 1
      // Predicated region
      $region13: #{transformer_forward.11} parent=11 // pred_check
        %p206 = pneg %p60
      $region14: #{transformer_forward.11} parent=11 // pred_check_branch
        %208 = sbr.rel (%p206) target = $region16
      $region15: #{transformer_forward.11} parent=11 // pred_region
        _
      $region16: #{transformer_forward.11} parent=11 // pred_fallthru
        _
      // Predicated region
      $region17: #{transformer_forward.11} parent=11 // pred_check
        %p209 = pneg %p81
      $region18: #{transformer_forward.11} parent=11 // pred_check_branch
        %211 = sbr.rel (%p209) target = $region20
      $region19: #{transformer_forward.11} parent=11 // pred_region
        _
      $region20: #{transformer_forward.11} parent=11 // pred_fallthru
        _
      // Predicated region
      $region21: #{transformer_forward.11} parent=11 // pred_check
        %p212 = pneg %p102
      $region22: #{transformer_forward.11} parent=11 // pred_check_branch
        %214 = sbr.rel (%p212) target = $region24
      $region23: #{transformer_forward.11} parent=11 // pred_region
        _
      $region24: #{transformer_forward.11} parent=11 // pred_fallthru
        _
      // Predicated region
      $region25: #{transformer_forward.11} parent=11 // pred_check
        %p215 = pneg %p123
      $region26: #{transformer_forward.11} parent=11 // pred_check_branch
        %217 = sbr.rel (%p215) target = $region28
      $region27: #{transformer_forward.11} parent=11 // pred_region
        _
      $region28: #{transformer_forward.11} parent=11 // pred_fallthru
        _
      // Predicated region
      $region29: #{transformer_forward.11} parent=11 // pred_check
        %p218 = pneg %p144
      $region30: #{transformer_forward.11} parent=11 // pred_check_branch
        %220 = sbr.rel (%p218) target = $region32
      $region31: #{transformer_forward.11} parent=11 // pred_region
        _
      $region32: #{transformer_forward.11} parent=11 // pred_fallthru
        _
      // Predicated region
      $region33: #{transformer_forward.11} parent=11 // pred_check
        %p221 = pneg %p165
      $region34: #{transformer_forward.11} parent=11 // pred_check_branch
        %223 = sbr.rel (%p221) target = $region36
      $region35: #{transformer_forward.11} parent=11 // pred_region
        _
      $region36: #{transformer_forward.11} parent=11 // pred_fallthru
        _
    $region12: #{transformer_forward.11} parent=5 // pred_fallthru
      _
    %p224 = scmp.lt.s32.totalorder %s13, 2
    // Predicated region
    $region37: #{transformer_forward.11} parent=5 // pred_check
      %p225 = pneg %p224
    $region38: #{transformer_forward.11} parent=5 // pred_check_branch
      %227 = sbr.rel (%p225) target = $region40
    $region39: #{transformer_forward.11} parent=5 // pred_region
      // Predicated region
      $region41: #{transformer_forward.11} parent=39 // pred_check
        %p228 = pneg %p33
      $region42: #{transformer_forward.11} parent=39 // pred_check_branch
        %230 = sbr.rel (%p228) target = $region44
      $region43: #{transformer_forward.11} parent=39 // pred_region
        %p231 = scmp.lt.s32.totalorder %s13, 1
        %s232 = scalar_select %p231, %s13, 1
        %s233 = smul.addr %s232, 2
        %s234 = smul.addr %s233, 8
        %s235 = scalar_lea.vmem %s0, %s234
      $region44: #{transformer_forward.11} parent=39 // pred_fallthru
        _
    $region40: #{transformer_forward.11} parent=5 // pred_fallthru
      _
    %p236 = scmp.le.s32.totalorder 1, %s13
    %p237 = scmp.lt.s32.totalorder %s13, 3
    %p238 = pnand %p236, %p237
    %p239 = pneg %p238
    // Predicated region
    $region45: #{transformer_forward.11} parent=5 // pred_check
      _
    $region46: #{transformer_forward.11} parent=5 // pred_check_branch
      %241 = sbr.rel (%p238) target = $region48
    $region47: #{transformer_forward.11} parent=5 // pred_region
      %s242 = ssub.s32 %s13, 1
      %p243 = scmp.lt.s32.totalorder %s18, 1
      %s244 = scalar_select %p243, %s18, 1
      %s245 = smul.addr %s244, 2
      %s246 = smul.addr %s245, 8
      %s247 = scalar_lea.vmem %s0, %s246
      %p248 = pneg %p39
      %p249 = pneg %p36
      %p250 = pneg %p60
      %p251 = pneg %p57
      %p252 = pneg %p81
      %p253 = pneg %p78
      %p254 = pneg %p102
      %p255 = pneg %p99
      %p256 = pneg %p123
      %p257 = pneg %p120
      %p258 = pneg %p144
      %p259 = pneg %p141
      %p260 = pneg %p165
      %p261 = pneg %p162
      %p262 = pneg %p191
      %p263 = pneg %p188
      %p264 = scmp.lt.s32.totalorder %s18, 1
      %s265 = scalar_select %p264, %s18, 1
      %s266 = smul.addr %s265, 2
      %s267 = smul.addr %s266, 8
      %s268 = scalar_lea.vmem %s7, %s267
      %p269 = scmp.lt.s32.totalorder %s18, 1
      %s270 = scalar_select %p269, %s18, 1
      %s271 = smul.addr %s270, 2
      %s272 = smul.addr %s271, 8
      %s273 = scalar_lea.vmem %s0, %s272
      %p274 = scmp.lt.s32.totalorder %s18, 1
      %s275 = scalar_select %p274, %s18, 1
      %s276 = smul.addr %s275, 2
      %s277 = smul.addr %s276, 8
      %s278 = scalar_lea.vmem %s7, %s277
      %v280 = vld [vmem:[%s273] sm:$0xff]
      %v281 = vld [vmem:[%s273 + $0x8] sm:$0xff]
      %v282 = vpack.c.bf16 %v281, %v280
      %v283 = vld [vmem:[%s1] sm:$0xff]
      %v284 = vld [vmem:[%s1 + $0x8] sm:$0xf]
      %v285 = vld [vmem:[%s1 + $0xc] sm:$0xff]
      %v286 = vld [vmem:[%s1 + $0x14] sm:$0xf]
      %v287 = vld [vmem:[%s1 + $0x18] sm:$0xff]
      %v288 = vld [vmem:[%s1 + $0x20] sm:$0xf]
      %v289 = vld [vmem:[%s1 + $0x24] sm:$0xff]
      %v290 = vld [vmem:[%s1 + $0x2c] sm:$0xf]
      %v291 = vld [vmem:[%s1 + $0x30] sm:$0xff]
      %v292 = vld [vmem:[%s1 + $0x38] sm:$0xf]
      %v293 = vld [vmem:[%s1 + $0x3c] sm:$0xff]
      %v294 = vld [vmem:[%s1 + $0x44] sm:$0xf]
      %v295 = vld [vmem:[%s1 + $0x48] sm:$0xff]
      %v296 = vld [vmem:[%s1 + $0x50] sm:$0xf]
      %v297 = vld [vmem:[%s1 + $0x54] sm:$0xff]
      %v298 = vld [vmem:[%s1 + $0x5c] sm:$0xf]
      %v299 = vld [vmem:[%s1 + $0x60] sm:$0xff]
      %v300 = vld [vmem:[%s1 + $0x68] sm:$0xf]
      %v301 = vld [vmem:[%s1 + $0x6c] sm:$0xff]
      %v302 = vld [vmem:[%s1 + $0x74] sm:$0xf]
      %v303 = vld [vmem:[%s1 + $0x78] sm:$0xff]
      %v304 = vld [vmem:[%s1 + $0x80] sm:$0xf]
      %v305 = vld [vmem:[%s1 + $0x84] sm:$0xff]
      %v306 = vld [vmem:[%s1 + $0x8c] sm:$0xf]
      %v307 = vld [vmem:[%s1 + $0x90] sm:$0xff]
      %v308 = vld [vmem:[%s1 + $0x98] sm:$0xf]
      %v309 = vld [vmem:[%s1 + $0x9c] sm:$0xff]
      %v310 = vld [vmem:[%s1 + $0xa4] sm:$0xf]
      %v311 = vld [vmem:[%s1 + $0xa8] sm:$0xff]
      %v312 = vld [vmem:[%s1 + $0xb0] sm:$0xf]
      %v313 = vld [vmem:[%s1 + $0xb4] sm:$0xff]
      %v314 = vld [vmem:[%s1 + $0xbc] sm:$0xf]
      %v315 = vld [vmem:[%s2] sm:$0x7]
      %v317 = vlaneseq
      %v318 = vshrl.u32 %v317, 7
      %v319 = vsub.s32 0, %v318
      %v320 = vrot.slane %v315, %v319
      %v321 = vlaneseq
      %v322 = vshrl.u32 %v321, 7
      %v323 = vsub.s32 1, %v322
      %v324 = vrot.slane %v315, %v323
      %v325 = vlaneseq
      %v326 = vshrl.u32 %v325, 7
      %v327 = vsub.s32 2, %v326
      %v328 = vrot.slane %v315, %v327
      %v364 = vunpack.c.l.b16 %v283
      %v365 = vunpack.c.h.b16 %v283
      %v366 = vunpack.c.l.b16 %v284
      %v367 = vunpack.c.l.b16 %v285
      %v368 = vunpack.c.h.b16 %v285
      %v369 = vunpack.c.l.b16 %v286
      %v370 = vunpack.c.l.b16 %v287
      %v371 = vunpack.c.h.b16 %v287
      %v372 = vunpack.c.l.b16 %v288
      %v373 = vunpack.c.l.b16 %v289
      %v374 = vunpack.c.h.b16 %v289
      %v375 = vunpack.c.l.b16 %v290
      %v376 = vunpack.c.l.b16 %v291
      %v377 = vunpack.c.h.b16 %v291
      %v378 = vunpack.c.l.b16 %v292
      %v379 = vunpack.c.l.b16 %v293
      %v380 = vunpack.c.h.b16 %v293
      %v381 = vunpack.c.l.b16 %v294
      %v382 = vunpack.c.l.b16 %v295
      %v383 = vunpack.c.h.b16 %v295
      %v384 = vunpack.c.l.b16 %v296
      %v385 = vunpack.c.l.b16 %v297
      %v386 = vunpack.c.h.b16 %v297
      %v387 = vunpack.c.l.b16 %v298
      %v388 = vunpack.c.l.b16 %v299
      %v389 = vunpack.c.h.b16 %v299
      %v390 = vunpack.c.l.b16 %v300
      %v391 = vunpack.c.l.b16 %v301
      %v392 = vunpack.c.h.b16 %v301
      %v393 = vunpack.c.l.b16 %v302
      %v394 = vunpack.c.l.b16 %v303
      %v395 = vunpack.c.h.b16 %v303
      %v396 = vunpack.c.l.b16 %v304
      %v397 = vunpack.c.l.b16 %v305
      %v398 = vunpack.c.h.b16 %v305
      %v399 = vunpack.c.l.b16 %v306
      %v400 = vunpack.c.l.b16 %v307
      %v401 = vunpack.c.h.b16 %v307
      %v402 = vunpack.c.l.b16 %v308
      %v403 = vunpack.c.l.b16 %v309
      %v404 = vunpack.c.h.b16 %v309
      %v405 = vunpack.c.l.b16 %v310
      %v406 = vunpack.c.l.b16 %v311
      %v407 = vunpack.c.h.b16 %v311
      %v408 = vunpack.c.l.b16 %v312
      %v409 = vunpack.c.l.b16 %v313
      %v410 = vunpack.c.h.b16 %v313
      %v411 = vunpack.c.l.b16 %v314
      %v412 = vpack.c.b16 %v367, %v364
      %v413 = vpack.c.b16 %v368, %v365
      %v414 = vpack.c.b16 %v369, %v366
      %v415 = vpack.c.b16 %v373, %v370
      %v416 = vpack.c.b16 %v374, %v371
      %v417 = vpack.c.b16 %v375, %v372
      %v418 = vpack.c.b16 %v379, %v376
      %v419 = vpack.c.b16 %v380, %v377
      %v420 = vpack.c.b16 %v381, %v378
      %v421 = vpack.c.b16 %v385, %v382
      %v422 = vpack.c.b16 %v386, %v383
      %v423 = vpack.c.b16 %v387, %v384
      %v424 = vpack.c.b16 %v391, %v388
      %v425 = vpack.c.b16 %v392, %v389
      %v426 = vpack.c.b16 %v393, %v390
      %v427 = vpack.c.b16 %v397, %v394
      %v428 = vpack.c.b16 %v398, %v395
      %v429 = vpack.c.b16 %v399, %v396
      %v430 = vpack.c.b16 %v403, %v400
      %v431 = vpack.c.b16 %v404, %v401
      %v432 = vpack.c.b16 %v405, %v402
      %v433 = vpack.c.b16 %v409, %v406
      %v434 = vpack.c.b16 %v410, %v407
      %v435 = vpack.c.b16 %v411, %v408
      %460 = vmatprep.subr.bf16.mxu0 %v413
      %461 = vmatpush1.bf16.msra.mxu0 %v412
      %462 = vmatprep.subr.bf16.mxu0 %v416
      %463 = vmatpush1.bf16.msra.mxu0 %v415
      %464 = vmatprep.subr.bf16.mxu0 %v419
      %465 = vmatpush1.bf16.msra.mxu0 %v418
      %466 = vmatprep.subr.bf16.mxu0 %v422
      %467 = vmatpush1.bf16.msra.mxu0 %v421
      %468 = vmatprep.subr.bf16.mxu0 %v425
      %469 = vmatpush1.bf16.msra.mxu0 %v424
      %470 = vmatprep.subr.bf16.mxu0 %v428
      %471 = vmatpush1.bf16.msra.mxu0 %v427
      %472 = vmatprep.subr.bf16.mxu0 %v431
      %473 = vmatpush1.bf16.msra.mxu0 %v430
      %474 = vmatprep.subr.bf16.mxu0 %v434
      %475 = vmatpush1.bf16.msra.mxu0 %v433
      %476 = vmatprep.subr.bf16.mxu0 0
      %477 = vmatpush1.bf16.msra.mxu0 0
      %478 = vmatprep.subr.bf16.mxu0 0
      %479 = vmatpush1.bf16.msra.mxu0 0
      %480 = vmatprep.subr.bf16.mxu0 0
      %481 = vmatpush1.bf16.msra.mxu0 0
      %482 = vmatprep.subr.bf16.mxu0 0
      %483 = vmatpush1.bf16.msra.mxu0 0
      %484 = vmatprep.subr.bf16.mxu0 0
      %485 = vmatpush1.bf16.msra.mxu0 0
      %486 = vmatprep.subr.bf16.mxu0 0
      %487 = vmatpush1.bf16.msra.mxu0 0
      %488 = vmatprep.subr.bf16.mxu0 0
      %489 = vmatpush1.bf16.msra.mxu0 0
      %490 = vmatprep.subr.bf16.mxu0 0
      %491 = vmatpush1.bf16.msra.mxu0 0
      %492 = vmatprep.mubr.bf16.mxu0 0
      %493 = vmatmul.mubr.bf16.gmra.mrb[0].mxu0 %v282
      %v494 = vpop.f32.mrb[0].mxu0
      %v495 = vadd.f32 %v320, %v494
      %v496 = vpop.f32.mrb[0].mxu0
      %v497 = vadd.f32 %v324, %v496
      %v498 = vpop.f32.mrb[0].mxu0
      %v499 = vadd.f32 %v320, %v498
      %v500 = vpop.f32.mrb[0].mxu0
      %v501 = vadd.f32 %v324, %v500
      %502 = vdwg.mxu0
      %503 = vmatprep.subr.bf16.mxu0 0
      %504 = vmatpush1.bf16.msra.mxu0 %v414
      %505 = vmatprep.subr.bf16.mxu0 0
      %506 = vmatpush1.bf16.msra.mxu0 %v417
      %507 = vmatprep.subr.bf16.mxu0 0
      %508 = vmatpush1.bf16.msra.mxu0 %v420
      %509 = vmatprep.subr.bf16.mxu0 0
      %510 = vmatpush1.bf16.msra.mxu0 %v423
      %511 = vmatprep.subr.bf16.mxu0 0
      %512 = vmatpush1.bf16.msra.mxu0 %v426
      %513 = vmatprep.subr.bf16.mxu0 0
      %514 = vmatpush1.bf16.msra.mxu0 %v429
      %515 = vmatprep.subr.bf16.mxu0 0
      %516 = vmatpush1.bf16.msra.mxu0 %v432
      %517 = vmatprep.subr.bf16.mxu0 0
      %518 = vmatpush1.bf16.msra.mxu0 %v435
      %519 = vmatprep.subr.bf16.mxu0 0
      %520 = vmatpush1.bf16.msra.mxu0 0
      %521 = vmatprep.subr.bf16.mxu0 0
      %522 = vmatpush1.bf16.msra.mxu0 0
      %523 = vmatprep.subr.bf16.mxu0 0
      %524 = vmatpush1.bf16.msra.mxu0 0
      %525 = vmatprep.subr.bf16.mxu0 0
      %526 = vmatpush1.bf16.msra.mxu0 0
      %527 = vmatprep.subr.bf16.mxu0 0
      %528 = vmatpush1.bf16.msra.mxu0 0
      %529 = vmatprep.subr.bf16.mxu0 0
      %530 = vmatpush1.bf16.msra.mxu0 0
      %531 = vmatprep.subr.bf16.mxu0 0
      %532 = vmatpush1.bf16.msra.mxu0 0
      %533 = vmatprep.subr.bf16.mxu0 0
      %534 = vmatpush1.bf16.msra.mxu0 0
      %535 = vmatprep.mubr.bf16.mxu0 0
      %536 = vmatmul.mubr.bf16.gmra.mrb[0].mxu0 %v282
      %v537 = vpop.f32.mrb[0].mxu0
      %v538 = vadd.f32 %v328, %v537
      %v539 = vpop.f32.mrb[0].mxu0
      %v540 = vpop.f32.mrb[0].mxu0
      %v541 = vadd.f32 %v328, %v540
      %v542 = vpop.f32.mrb[0].mxu0
      %543 = vdwg.mxu0
      %v544 = vpack.c.bf16 %v499, %v495
      %v545 = vpack.c.bf16 %v501, %v497
      %v546 = vpack.c.bf16 %v541, %v538
      %vm547 = vcmask 261120
      %v549 = vsel %vm547, %v544, 0
      %v552 = vsel %vm547, %v545, 0
      %554 = vmatprep.subr.bf16.mxu0 0
      %555 = vmatpush1.bf16.xpose.msra.mxu0 %v552
      %556 = vmatprep.subr.bf16.mxu0 0
      %557 = vmatpush1.bf16.xpose.msra.mxu0 0
      %558 = vmatprep.subr.bf16.mxu0 0
      %559 = vmatpush1.bf16.xpose.msra.mxu0 0
      %560 = vmatprep.subr.bf16.mxu0 0
      %561 = vmatpush1.bf16.xpose.msra.mxu0 0
      %562 = vmatprep.subr.bf16.mxu0 0
      %563 = vmatpush1.bf16.xpose.msra.mxu0 0
      %564 = vmatprep.subr.bf16.mxu0 0
      %565 = vmatpush1.bf16.xpose.msra.mxu0 0
      %566 = vmatprep.subr.bf16.mxu0 0
      %567 = vmatpush1.bf16.xpose.msra.mxu0 0
      %568 = vmatprep.subr.bf16.mxu0 0
      %569 = vmatpush1.bf16.xpose.msra.mxu0 0
      %570 = vmatprep.subr.bf16.mxu0 0
      %571 = vmatpush1.bf16.xpose.msra.mxu0 0
      %572 = vmatprep.subr.bf16.mxu0 0
      %573 = vmatpush1.bf16.xpose.msra.mxu0 0
      %574 = vmatprep.subr.bf16.mxu0 0
      %575 = vmatpush1.bf16.xpose.msra.mxu0 0
      %576 = vmatprep.subr.bf16.mxu0 0
      %577 = vmatpush1.bf16.xpose.msra.mxu0 0
      %578 = vmatprep.subr.bf16.mxu0 0
      %579 = vmatpush1.bf16.xpose.msra.mxu0 0
      %580 = vmatprep.subr.bf16.mxu0 0
      %581 = vmatpush1.bf16.xpose.msra.mxu0 0
      %582 = vmatprep.subr.bf16.mxu0 0
      %583 = vmatpush1.bf16.xpose.msra.mxu0 0
      %584 = vmatprep.subr.bf16.mxu0 0
      %585 = vmatpush1.bf16.xpose.msra.mxu0 0
      %586 = vmatprep.mubr.bf16.mxu0 0
      %587 = vmatmul.mubr.bf16.gmra.mrb[0].mxu0 %v549
      %v588 = vpop.f32.mrb[0].mxu0
      %v589 = vadd.f32 0.0, %v588
      %v590 = vpop.f32.mrb[0].mxu0
      %v591 = vpop.f32.mrb[0].mxu0
      %v592 = vadd.f32 0.0, %v591
      %v593 = vpop.f32.mrb[0].mxu0
      %594 = vdwg.mxu0
      %vm595 = vcmask 130048
      %v596 = vsel %vm595, %v589, -inf
      %597 = vmax.xlane.f32.xlu0 %v596
      %v598 = vpop.xlane.xlu0 %597
      %v599 = vsel %vm595, %v592, -inf
      %600 = vmax.xlane.f32.xlu0 %v599
      %v601 = vpop.xlane.xlu0 %600
      %v602 = vsub.f32 %v589, %v598
      %v603 = vsub.f32 %v592, %v601
      %v604 = vmul.f32 %v602, 1.442695
      %v605 = vpow.pop %v604
      %v606 = vmul.f32 %v603, 1.442695
      %v607 = vpow.pop %v606
      %v608 = vsel %vm595, %v605, 0.0
      %609 = vadd.xlane.f32.xlu0 %v608
      %v610 = vpop.xlane.xlu0 %609
      %v611 = vsel %vm595, %v607, 0.0
      %612 = vadd.xlane.f32.xlu0 %v611
      %v613 = vpop.xlane.xlu0 %612
      %v614 = vrcp.pop %v610
      %v615 = vrcp.pop %v613
      %v616 = vmul.f32 %v605, %v614
      %v617 = vmul.f32 %v607, %v615
      %v618 = vpack.c.bf16 %v617, %v616
      %v620 = vsel %vm595, %v618, 0
      %622 = vmatprep.subr.bf16.mxu0 0
      %623 = vmatpush1.bf16.msra.mxu0 %v546
      %624 = vmatprep.subr.bf16.mxu0 0
      %625 = vmatpush1.bf16.msra.mxu0 0
      %626 = vmatprep.subr.bf16.mxu0 0
      %627 = vmatpush1.bf16.msra.mxu0 0
      %628 = vmatprep.subr.bf16.mxu0 0
      %629 = vmatpush1.bf16.msra.mxu0 0
      %630 = vmatprep.subr.bf16.mxu0 0
      %631 = vmatpush1.bf16.msra.mxu0 0
      %632 = vmatprep.subr.bf16.mxu0 0
      %633 = vmatpush1.bf16.msra.mxu0 0
      %634 = vmatprep.subr.bf16.mxu0 0
      %635 = vmatpush1.bf16.msra.mxu0 0
      %636 = vmatprep.subr.bf16.mxu0 0
      %637 = vmatpush1.bf16.msra.mxu0 0
      %638 = vmatprep.subr.bf16.mxu0 0
      %639 = vmatpush1.bf16.msra.mxu0 0
      %640 = vmatprep.subr.bf16.mxu0 0
      %641 = vmatpush1.bf16.msra.mxu0 0
      %642 = vmatprep.subr.bf16.mxu0 0
      %643 = vmatpush1.bf16.msra.mxu0 0
      %644 = vmatprep.subr.bf16.mxu0 0
      %645 = vmatpush1.bf16.msra.mxu0 0
      %646 = vmatprep.subr.bf16.mxu0 0
      %647 = vmatpush1.bf16.msra.mxu0 0
      %648 = vmatprep.subr.bf16.mxu0 0
      %649 = vmatpush1.bf16.msra.mxu0 0
      %650 = vmatprep.subr.bf16.mxu0 0
      %651 = vmatpush1.bf16.msra.mxu0 0
      %652 = vmatprep.subr.bf16.mxu0 0
      %653 = vmatpush1.bf16.msra.mxu0 0
      %654 = vmatprep.mubr.bf16.mxu0 0
      %655 = vmatmul.mubr.bf16.gmra.mrb[0].mxu0 %v620
      %v656 = vpop.f32.mrb[0].mxu0
      %v657 = vadd.f32 0.0, %v656
      %v658 = vpop.f32.mrb[0].mxu0
      %v659 = vpop.f32.mrb[0].mxu0
      %v660 = vadd.f32 0.0, %v659
      %v661 = vpop.f32.mrb[0].mxu0
      %662 = vdwg.mxu0
      %664 = vrot.lane.b32.xlu0 %v544, 96
      %v665 = vpop.permute.xlu0 %664
      %667 = vrot.lane.b32.xlu0 %v545, 96
      %v668 = vpop.permute.xlu0 %667
      %v670 = vsel %vm547, %v665, 0
      %v673 = vsel %vm547, %v668, 0
      %675 = vmatprep.subr.bf16.mxu0 0
      %676 = vmatpush1.bf16.xpose.msra.mxu0 %v673
      %677 = vmatprep.subr.bf16.mxu0 0
      %678 = vmatpush1.bf16.xpose.msra.mxu0 0
      %679 = vmatprep.subr.bf16.mxu0 0
      %680 = vmatpush1.bf16.xpose.msra.mxu0 0
      %681 = vmatprep.subr.bf16.mxu0 0
      %682 = vmatpush1.bf16.xpose.msra.mxu0 0
      %683 = vmatprep.subr.bf16.mxu0 0
      %684 = vmatpush1.bf16.xpose.msra.mxu0 0
      %685 = vmatprep.subr.bf16.mxu0 0
      %686 = vmatpush1.bf16.xpose.msra.mxu0 0
      %687 = vmatprep.subr.bf16.mxu0 0
      %688 = vmatpush1.bf16.xpose.msra.mxu0 0
      %689 = vmatprep.subr.bf16.mxu0 0
      %690 = vmatpush1.bf16.xpose.msra.mxu0 0
      %691 = vmatprep.subr.bf16.mxu0 0
      %692 = vmatpush1.bf16.xpose.msra.mxu0 0
      %693 = vmatprep.subr.bf16.mxu0 0
      %694 = vmatpush1.bf16.xpose.msra.mxu0 0
      %695 = vmatprep.subr.bf16.mxu0 0
      %696 = vmatpush1.bf16.xpose.msra.mxu0 0
      %697 = vmatprep.subr.bf16.mxu0 0
      %698 = vmatpush1.bf16.xpose.msra.mxu0 0
      %699 = vmatprep.subr.bf16.mxu0 0
      %700 = vmatpush1.bf16.xpose.msra.mxu0 0
      %701 = vmatprep.subr.bf16.mxu0 0
      %702 = vmatpush1.bf16.xpose.msra.mxu0 0
      %703 = vmatprep.subr.bf16.mxu0 0
      %704 = vmatpush1.bf16.xpose.msra.mxu0 0
      %705 = vmatprep.subr.bf16.mxu0 0
      %706 = vmatpush1.bf16.xpose.msra.mxu0 0
      %707 = vmatprep.mubr.bf16.mxu0 0
      %708 = vmatmul.mubr.bf16.gmra.mrb[0].mxu0 %v670
      %v709 = vpop.f32.mrb[0].mxu0
      %v710 = vadd.f32 0.0, %v709
      %v711 = vpop.f32.mrb[0].mxu0
      %v712 = vpop.f32.mrb[0].mxu0
      %v713 = vadd.f32 0.0, %v712
      %v714 = vpop.f32.mrb[0].mxu0
      %715 = vdwg.mxu0
      %v716 = vsel %vm595, %v710, -inf
      %717 = vmax.xlane.f32.xlu0 %v716
      %v718 = vpop.xlane.xlu0 %717
      %v719 = vsel %vm595, %v713, -inf
      %720 = vmax.xlane.f32.xlu0 %v719
      %v721 = vpop.xlane.xlu0 %720
      %v722 = vsub.f32 %v710, %v718
      %v723 = vsub.f32 %v713, %v721
      %v724 = vmul.f32 %v722, 1.442695
      %v725 = vpow.pop %v724
      %v726 = vmul.f32 %v723, 1.442695
      %v727 = vpow.pop %v726
      %v728 = vsel %vm595, %v725, 0.0
      %729 = vadd.xlane.f32.xlu0 %v728
      %v730 = vpop.xlane.xlu0 %729
      %v731 = vsel %vm595, %v727, 0.0
      %732 = vadd.xlane.f32.xlu0 %v731
      %v733 = vpop.xlane.xlu0 %732
      %v734 = vrcp.pop %v730
      %v735 = vrcp.pop %v733
      %v736 = vmul.f32 %v725, %v734
      %v737 = vmul.f32 %v727, %v735
      %v738 = vpack.c.bf16 %v737, %v736
      %740 = vrot.lane.b32.xlu0 %v546, 96
      %v741 = vpop.permute.xlu0 %740
      %v744 = vsel %vm595, %v738, 0
      %746 = vmatprep.subr.bf16.mxu0 0
      %747 = vmatpush1.bf16.msra.mxu0 %v741
      %748 = vmatprep.subr.bf16.mxu0 0
      %749 = vmatpush1.bf16.msra.mxu0 0
      %750 = vmatprep.subr.bf16.mxu0 0
      %751 = vmatpush1.bf16.msra.mxu0 0
      %752 = vmatprep.subr.bf16.mxu0 0
      %753 = vmatpush1.bf16.msra.mxu0 0
      %754 = vmatprep.subr.bf16.mxu0 0
      %755 = vmatpush1.bf16.msra.mxu0 0
      %756 = vmatprep.subr.bf16.mxu0 0
      %757 = vmatpush1.bf16.msra.mxu0 0
      %758 = vmatprep.subr.bf16.mxu0 0
      %759 = vmatpush1.bf16.msra.mxu0 0
      %760 = vmatprep.subr.bf16.mxu0 0
      %761 = vmatpush1.bf16.msra.mxu0 0
      %762 = vmatprep.subr.bf16.mxu0 0
      %763 = vmatpush1.bf16.msra.mxu0 0
      %764 = vmatprep.subr.bf16.mxu0 0
      %765 = vmatpush1.bf16.msra.mxu0 0
      %766 = vmatprep.subr.bf16.mxu0 0
      %767 = vmatpush1.bf16.msra.mxu0 0
      %768 = vmatprep.subr.bf16.mxu0 0
      %769 = vmatpush1.bf16.msra.mxu0 0
      %770 = vmatprep.subr.bf16.mxu0 0
      %771 = vmatpush1.bf16.msra.mxu0 0
      %772 = vmatprep.subr.bf16.mxu0 0
      %773 = vmatpush1.bf16.msra.mxu0 0
      %774 = vmatprep.subr.bf16.mxu0 0
      %775 = vmatpush1.bf16.msra.mxu0 0
      %776 = vmatprep.subr.bf16.mxu0 0
      %777 = vmatpush1.bf16.msra.mxu0 0
      %778 = vmatprep.mubr.bf16.mxu0 0
      %779 = vmatmul.mubr.bf16.gmra.mrb[0].mxu0 %v744
      %v780 = vpop.f32.mrb[0].mxu0
      %v781 = vadd.f32 0.0, %v780
      %v782 = vpop.f32.mrb[0].mxu0
      %v783 = vpop.f32.mrb[0].mxu0
      %v784 = vadd.f32 0.0, %v783
      %v785 = vpop.f32.mrb[0].mxu0
      %786 = vdwg.mxu0
      %787 = vrot.lane.b32.xlu0 %v544, 64
      %v788 = vpop.permute.xlu0 %787
      %789 = vrot.lane.b32.xlu0 %v545, 64
      %v790 = vpop.permute.xlu0 %789
      %v792 = vsel %vm547, %v788, 0
      %v795 = vsel %vm547, %v790, 0
      %797 = vmatprep.subr.bf16.mxu0 0
      %798 = vmatpush1.bf16.xpose.msra.mxu0 %v795
      %799 = vmatprep.subr.bf16.mxu0 0
      %800 = vmatpush1.bf16.xpose.msra.mxu0 0
      %801 = vmatprep.subr.bf16.mxu0 0
      %802 = vmatpush1.bf16.xpose.msra.mxu0 0
      %803 = vmatprep.subr.bf16.mxu0 0
      %804 = vmatpush1.bf16.xpose.msra.mxu0 0
      %805 = vmatprep.subr.bf16.mxu0 0
      %806 = vmatpush1.bf16.xpose.msra.mxu0 0
      %807 = vmatprep.subr.bf16.mxu0 0
      %808 = vmatpush1.bf16.xpose.msra.mxu0 0
      %809 = vmatprep.subr.bf16.mxu0 0
      %810 = vmatpush1.bf16.xpose.msra.mxu0 0
      %811 = vmatprep.subr.bf16.mxu0 0
      %812 = vmatpush1.bf16.xpose.msra.mxu0 0
      %813 = vmatprep.subr.bf16.mxu0 0
      %814 = vmatpush1.bf16.xpose.msra.mxu0 0
      %815 = vmatprep.subr.bf16.mxu0 0
      %816 = vmatpush1.bf16.xpose.msra.mxu0 0
      %817 = vmatprep.subr.bf16.mxu0 0
      %818 = vmatpush1.bf16.xpose.msra.mxu0 0
      %819 = vmatprep.subr.bf16.mxu0 0
      %820 = vmatpush1.bf16.xpose.msra.mxu0 0
      %821 = vmatprep.subr.bf16.mxu0 0
      %822 = vmatpush1.bf16.xpose.msra.mxu0 0
      %823 = vmatprep.subr.bf16.mxu0 0
      %824 = vmatpush1.bf16.xpose.msra.mxu0 0
      %825 = vmatprep.subr.bf16.mxu0 0
      %826 = vmatpush1.bf16.xpose.msra.mxu0 0
      %827 = vmatprep.subr.bf16.mxu0 0
      %828 = vmatpush1.bf16.xpose.msra.mxu0 0
      %829 = vmatprep.mubr.bf16.mxu0 0
      %830 = vmatmul.mubr.bf16.gmra.mrb[0].mxu0 %v792
      %v831 = vpop.f32.mrb[0].mxu0
      %v832 = vadd.f32 0.0, %v831
      %v833 = vpop.f32.mrb[0].mxu0
      %v834 = vpop.f32.mrb[0].mxu0
      %v835 = vadd.f32 0.0, %v834
      %v836 = vpop.f32.mrb[0].mxu0
      %837 = vdwg.mxu0
      %v838 = vsel %vm595, %v832, -inf
      %839 = vmax.xlane.f32.xlu0 %v838
      %v840 = vpop.xlane.xlu0 %839
      %v841 = vsel %vm595, %v835, -inf
      %842 = vmax.xlane.f32.xlu0 %v841
      %v843 = vpop.xlane.xlu0 %842
      %v844 = vsub.f32 %v832, %v840
      %v845 = vsub.f32 %v835, %v843
      %v846 = vmul.f32 %v844, 1.442695
      %v847 = vpow.pop %v846
      %v848 = vmul.f32 %v845, 1.442695
      %v849 = vpow.pop %v848
      %v850 = vsel %vm595, %v847, 0.0
      %851 = vadd.xlane.f32.xlu0 %v850
      %v852 = vpop.xlane.xlu0 %851
      %v853 = vsel %vm595, %v849, 0.0
      %854 = vadd.xlane.f32.xlu0 %v853
      %v855 = vpop.xlane.xlu0 %854
      %v856 = vrcp.pop %v852
      %v857 = vrcp.pop %v855
      %v858 = vmul.f32 %v847, %v856
      %v859 = vmul.f32 %v849, %v857
      %v860 = vpack.c.bf16 %v859, %v858
      %861 = vrot.lane.b32.xlu0 %v546, 64
      %v862 = vpop.permute.xlu0 %861
      %v865 = vsel %vm595, %v860, 0
      %867 = vmatprep.subr.bf16.mxu0 0
      %868 = vmatpush1.bf16.msra.mxu0 %v862
      %869 = vmatprep.subr.bf16.mxu0 0
      %870 = vmatpush1.bf16.msra.mxu0 0
      %871 = vmatprep.subr.bf16.mxu0 0
      %872 = vmatpush1.bf16.msra.mxu0 0
      %873 = vmatprep.subr.bf16.mxu0 0
      %874 = vmatpush1.bf16.msra.mxu0 0
      %875 = vmatprep.subr.bf16.mxu0 0
      %876 = vmatpush1.bf16.msra.mxu0 0
      %877 = vmatprep.subr.bf16.mxu0 0
      %878 = vmatpush1.bf16.msra.mxu0 0
      %879 = vmatprep.subr.bf16.mxu0 0
      %880 = vmatpush1.bf16.msra.mxu0 0
      %881 = vmatprep.subr.bf16.mxu0 0
      %882 = vmatpush1.bf16.msra.mxu0 0
      %883 = vmatprep.subr.bf16.mxu0 0
      %884 = vmatpush1.bf16.msra.mxu0 0
      %885 = vmatprep.subr.bf16.mxu0 0
      %886 = vmatpush1.bf16.msra.mxu0 0
      %887 = vmatprep.subr.bf16.mxu0 0
      %888 = vmatpush1.bf16.msra.mxu0 0
      %889 = vmatprep.subr.bf16.mxu0 0
      %890 = vmatpush1.bf16.msra.mxu0 0
      %891 = vmatprep.subr.bf16.mxu0 0
      %892 = vmatpush1.bf16.msra.mxu0 0
      %893 = vmatprep.subr.bf16.mxu0 0
      %894 = vmatpush1.bf16.msra.mxu0 0
      %895 = vmatprep.subr.bf16.mxu0 0
      %896 = vmatpush1.bf16.msra.mxu0 0
      %897 = vmatprep.subr.bf16.mxu0 0
      %898 = vmatpush1.bf16.msra.mxu0 0
      %899 = vmatprep.mubr.bf16.mxu0 0
      %900 = vmatmul.mubr.bf16.gmra.mrb[0].mxu0 %v865
      %v901 = vpop.f32.mrb[0].mxu0
      %v902 = vadd.f32 0.0, %v901
      %v903 = vpop.f32.mrb[0].mxu0
      %v904 = vpop.f32.mrb[0].mxu0
      %v905 = vadd.f32 0.0, %v904
      %v906 = vpop.f32.mrb[0].mxu0
      %907 = vdwg.mxu0
      %908 = vrot.lane.b32.xlu0 %v544, 32
      %v909 = vpop.permute.xlu0 %908
      %910 = vrot.lane.b32.xlu0 %v545, 32
      %v911 = vpop.permute.xlu0 %910
      %v913 = vsel %vm547, %v909, 0
      %v916 = vsel %vm547, %v911, 0
      %918 = vmatprep.subr.bf16.mxu0 0
      %919 = vmatpush1.bf16.xpose.msra.mxu0 %v916
      %920 = vmatprep.subr.bf16.mxu0 0
      %921 = vmatpush1.bf16.xpose.msra.mxu0 0
      %922 = vmatprep.subr.bf16.mxu0 0
      %923 = vmatpush1.bf16.xpose.msra.mxu0 0
      %924 = vmatprep.subr.bf16.mxu0 0
      %925 = vmatpush1.bf16.xpose.msra.mxu0 0
      %926 = vmatprep.subr.bf16.mxu0 0
      %927 = vmatpush1.bf16.xpose.msra.mxu0 0
      %928 = vmatprep.subr.bf16.mxu0 0
      %929 = vmatpush1.bf16.xpose.msra.mxu0 0
      %930 = vmatprep.subr.bf16.mxu0 0
      %931 = vmatpush1.bf16.xpose.msra.mxu0 0
      %932 = vmatprep.subr.bf16.mxu0 0
      %933 = vmatpush1.bf16.xpose.msra.mxu0 0
      %934 = vmatprep.subr.bf16.mxu0 0
      %935 = vmatpush1.bf16.xpose.msra.mxu0 0
      %936 = vmatprep.subr.bf16.mxu0 0
      %937 = vmatpush1.bf16.xpose.msra.mxu0 0
      %938 = vmatprep.subr.bf16.mxu0 0
      %939 = vmatpush1.bf16.xpose.msra.mxu0 0
      %940 = vmatprep.subr.bf16.mxu0 0
      %941 = vmatpush1.bf16.xpose.msra.mxu0 0
      %942 = vmatprep.subr.bf16.mxu0 0
      %943 = vmatpush1.bf16.xpose.msra.mxu0 0
      %944 = vmatprep.subr.bf16.mxu0 0
      %945 = vmatpush1.bf16.xpose.msra.mxu0 0
      %946 = vmatprep.subr.bf16.mxu0 0
      %947 = vmatpush1.bf16.xpose.msra.mxu0 0
      %948 = vmatprep.subr.bf16.mxu0 0
      %949 = vmatpush1.bf16.xpose.msra.mxu0 0
      %950 = vmatprep.mubr.bf16.mxu0 0
      %951 = vmatmul.mubr.bf16.gmra.mrb[0].mxu0 %v913
      %v952 = vpop.f32.mrb[0].mxu0
      %v953 = vadd.f32 0.0, %v952
      %v954 = vpop.f32.mrb[0].mxu0
      %v955 = vpop.f32.mrb[0].mxu0
      %v956 = vadd.f32 0.0, %v955
      %v957 = vpop.f32.mrb[0].mxu0
      %958 = vdwg.mxu0
      %v959 = vsel %vm595, %v953, -inf
      %960 = vmax.xlane.f32.xlu0 %v959
      %v961 = vpop.xlane.xlu0 %960
      %v962 = vsel %vm595, %v956, -inf
      %963 = vmax.xlane.f32.xlu0 %v962
      %v964 = vpop.xlane.xlu0 %963
      %v965 = vsub.f32 %v953, %v961
      %v966 = vsub.f32 %v956, %v964
      %v967 = vmul.f32 %v965, 1.442695
      %v968 = vpow.pop %v967
      %v969 = vmul.f32 %v966, 1.442695
      %v970 = vpow.pop %v969
      %v971 = vsel %vm595, %v968, 0.0
      %972 = vadd.xlane.f32.xlu0 %v971
      %v973 = vpop.xlane.xlu0 %972
      %v974 = vsel %vm595, %v970, 0.0
      %975 = vadd.xlane.f32.xlu0 %v974
      %v976 = vpop.xlane.xlu0 %975
      %v977 = vrcp.pop %v973
      %v978 = vrcp.pop %v976
      %v979 = vmul.f32 %v968, %v977
      %v980 = vmul.f32 %v970, %v978
      %v981 = vpack.c.bf16 %v980, %v979
      %982 = vrot.lane.b32.xlu0 %v546, 32
      %v983 = vpop.permute.xlu0 %982
      %v986 = vsel %vm595, %v981, 0
      %988 = vmatprep.subr.bf16.mxu0 0
      %989 = vmatpush1.bf16.msra.mxu0 %v983
      %990 = vmatprep.subr.bf16.mxu0 0
      %991 = vmatpush1.bf16.msra.mxu0 0
      %992 = vmatprep.subr.bf16.mxu0 0
      %993 = vmatpush1.bf16.msra.mxu0 0
      %994 = vmatprep.subr.bf16.mxu0 0
      %995 = vmatpush1.bf16.msra.mxu0 0
      %996 = vmatprep.subr.bf16.mxu0 0
      %997 = vmatpush1.bf16.msra.mxu0 0
      %998 = vmatprep.subr.bf16.mxu0 0
      %999 = vmatpush1.bf16.msra.mxu0 0
      %1000 = vmatprep.subr.bf16.mxu0 0
      %1001 = vmatpush1.bf16.msra.mxu0 0
      %1002 = vmatprep.subr.bf16.mxu0 0
      %1003 = vmatpush1.bf16.msra.mxu0 0
      %1004 = vmatprep.subr.bf16.mxu0 0
      %1005 = vmatpush1.bf16.msra.mxu0 0
      %1006 = vmatprep.subr.bf16.mxu0 0
      %1007 = vmatpush1.bf16.msra.mxu0 0
      %1008 = vmatprep.subr.bf16.mxu0 0
      %1009 = vmatpush1.bf16.msra.mxu0 0
      %1010 = vmatprep.subr.bf16.mxu0 0
      %1011 = vmatpush1.bf16.msra.mxu0 0
      %1012 = vmatprep.subr.bf16.mxu0 0
      %1013 = vmatpush1.bf16.msra.mxu0 0
      %1014 = vmatprep.subr.bf16.mxu0 0
      %1015 = vmatpush1.bf16.msra.mxu0 0
      %1016 = vmatprep.subr.bf16.mxu0 0
      %1017 = vmatpush1.bf16.msra.mxu0 0
      %1018 = vmatprep.subr.bf16.mxu0 0
      %1019 = vmatpush1.bf16.msra.mxu0 0
      %1020 = vmatprep.mubr.bf16.mxu0 0
      %1021 = vmatmul.mubr.bf16.gmra.mrb[0].mxu0 %v986
      %v1022 = vpop.f32.mrb[0].mxu0
      %v1023 = vadd.f32 0.0, %v1022
      %v1024 = vpop.f32.mrb[0].mxu0
      %v1025 = vpop.f32.mrb[0].mxu0
      %v1026 = vadd.f32 0.0, %v1025
      %v1027 = vpop.f32.mrb[0].mxu0
      %1028 = vdwg.mxu0
      %1031 = vrot.lane.b32.xlu0 %v781, 32
      %v1032 = vpop.permute.xlu0 %1031
      %1033 = vrot.lane.b32.xlu0 %v784, 32
      %v1034 = vpop.permute.xlu0 %1033
      %1039 = vrot.lane.b32.xlu0 %v902, 64
      %v1040 = vpop.permute.xlu0 %1039
      %1041 = vrot.lane.b32.xlu0 %v905, 64
      %v1042 = vpop.permute.xlu0 %1041
      %1047 = vrot.lane.b32.xlu0 %v1023, 96
      %v1048 = vpop.permute.xlu0 %1047
      %1049 = vrot.lane.b32.xlu0 %v1026, 96
      %v1050 = vpop.permute.xlu0 %1049
      %v1053 = vsel %vm547, %v657, %v1032
      %v1054 = vsel %vm547, %v660, %v1034
      %vm1055 = vcmask 523264
      %v1056 = vsel %vm1055, %v1053, %v1040
      %v1057 = vsel %vm1055, %v1054, %v1042
      %vm1058 = vcmask 785408
      %v1059 = vsel %vm1058, %v1056, %v1048
      %v1060 = vsel %vm1058, %v1057, %v1050
      %v1061 = vpack.c.bf16 %v1060, %v1059
      %v1062 = vld [vmem:[%s3] sm:$0xf]
      %v1063 = vld [vmem:[%s3 + $0x4] sm:$0xf]
      %v1064 = vld [vmem:[%s3 + $0x8] sm:$0xf]
      %v1065 = vld [vmem:[%s3 + $0xc] sm:$0xf]
      %v1066 = vld [vmem:[%s3 + $0x10] sm:$0xf]
      %v1067 = vld [vmem:[%s3 + $0x14] sm:$0xf]
      %v1068 = vld [vmem:[%s3 + $0x18] sm:$0xf]
      %v1069 = vld [vmem:[%s3 + $0x1c] sm:$0xf]
      %v1070 = vld [vmem:[%s3 + $0x20] sm:$0xf]
      %v1071 = vld [vmem:[%s3 + $0x24] sm:$0xf]
      %v1072 = vld [vmem:[%s3 + $0x28] sm:$0xf]
      %v1073 = vld [vmem:[%s3 + $0x2c] sm:$0xf]
      %v1074 = vld [vmem:[%s3 + $0x30] sm:$0xf]
      %v1075 = vld [vmem:[%s3 + $0x34] sm:$0xf]
      %v1076 = vld [vmem:[%s3 + $0x38] sm:$0xf]
      %v1077 = vld [vmem:[%s3 + $0x3c] sm:$0xf]
      %v1094 = vunpack.c.l.b16 %v1062
      %v1095 = vunpack.c.l.b16 %v1063
      %v1096 = vunpack.c.l.b16 %v1064
      %v1097 = vunpack.c.l.b16 %v1065
      %v1098 = vunpack.c.l.b16 %v1066
      %v1099 = vunpack.c.l.b16 %v1067
      %v1100 = vunpack.c.l.b16 %v1068
      %v1101 = vunpack.c.l.b16 %v1069
      %v1102 = vunpack.c.l.b16 %v1070
      %v1103 = vunpack.c.l.b16 %v1071
      %v1104 = vunpack.c.l.b16 %v1072
      %v1105 = vunpack.c.l.b16 %v1073
      %v1106 = vunpack.c.l.b16 %v1074
      %v1107 = vunpack.c.l.b16 %v1075
      %v1108 = vunpack.c.l.b16 %v1076
      %v1109 = vunpack.c.l.b16 %v1077
      %v1110 = vpack.c.b16 %v1095, %v1094
      %v1111 = vpack.c.b16 %v1097, %v1096
      %v1112 = vpack.c.b16 %v1099, %v1098
      %v1113 = vpack.c.b16 %v1101, %v1100
      %v1114 = vpack.c.b16 %v1103, %v1102
      %v1115 = vpack.c.b16 %v1105, %v1104
      %v1116 = vpack.c.b16 %v1107, %v1106
      %v1117 = vpack.c.b16 %v1109, %v1108
      %1126 = vmatprep.subr.bf16.mxu0 0
      %1127 = vmatpush1.bf16.msra.mxu0 %v1110
      %1128 = vmatprep.subr.bf16.mxu0 0
      %1129 = vmatpush1.bf16.msra.mxu0 %v1111
      %1130 = vmatprep.subr.bf16.mxu0 0
      %1131 = vmatpush1.bf16.msra.mxu0 %v1112
      %1132 = vmatprep.subr.bf16.mxu0 0
      %1133 = vmatpush1.bf16.msra.mxu0 %v1113
      %1134 = vmatprep.subr.bf16.mxu0 0
      %1135 = vmatpush1.bf16.msra.mxu0 %v1114
      %1136 = vmatprep.subr.bf16.mxu0 0
      %1137 = vmatpush1.bf16.msra.mxu0 %v1115
      %1138 = vmatprep.subr.bf16.mxu0 0
      %1139 = vmatpush1.bf16.msra.mxu0 %v1116
      %1140 = vmatprep.subr.bf16.mxu0 0
      %1141 = vmatpush1.bf16.msra.mxu0 %v1117
      %1142 = vmatprep.subr.bf16.mxu0 0
      %1143 = vmatpush1.bf16.msra.mxu0 0
      %1144 = vmatprep.subr.bf16.mxu0 0
      %1145 = vmatpush1.bf16.msra.mxu0 0
      %1146 = vmatprep.subr.bf16.mxu0 0
      %1147 = vmatpush1.bf16.msra.mxu0 0
      %1148 = vmatprep.subr.bf16.mxu0 0
      %1149 = vmatpush1.bf16.msra.mxu0 0
      %1150 = vmatprep.subr.bf16.mxu0 0
      %1151 = vmatpush1.bf16.msra.mxu0 0
      %1152 = vmatprep.subr.bf16.mxu0 0
      %1153 = vmatpush1.bf16.msra.mxu0 0
      %1154 = vmatprep.subr.bf16.mxu0 0
      %1155 = vmatpush1.bf16.msra.mxu0 0
      %1156 = vmatprep.subr.bf16.mxu0 0
      %1157 = vmatpush1.bf16.msra.mxu0 0
      %1158 = vmatprep.mubr.bf16.mxu0 0
      %1159 = vmatmul.mubr.bf16.gmra.mrb[0].mxu0 %v1061
      %v1160 = vpop.f32.mrb[0].mxu0
      %v1161 = vadd.f32 0.0, %v1160
      %v1162 = vpop.f32.mrb[0].mxu0
      %v1163 = vpop.f32.mrb[0].mxu0
      %v1164 = vadd.f32 0.0, %v1163
      %v1165 = vpop.f32.mrb[0].mxu0
      %1166 = vdwg.mxu0
      %v1167 = vadd.f32 %v280, %v1161
      %v1168 = vadd.f32 %v281, %v1164
      %v1169 = vld [vmem:[%s4] sm:$0x1]
      %v1171 = vlaneseq
      %v1172 = vshrl.u32 %v1171, 7
      %v1173 = vsub.s32 0, %v1172
      %v1174 = vrot.slane %v1169, %v1173
      %v1176 = vadd.f32 %v1167, %v1174
      %v1177 = vadd.f32 %v1168, %v1174
      %v1178 = vld [vmem:[%s5] sm:$0x1]
      %v1179 = vld [vmem:[%s6] sm:$0x1]
      %1180 = vadd.xlane.f32.xlu0 %v1176
      %v1181 = vpop.xlane.xlu0 %1180
      %1182 = vadd.xlane.f32.xlu0 %v1177
      %v1183 = vpop.xlane.xlu0 %1182
      %v1184 = vrcp.pop 128.0
      %v1185 = vmul.f32 %v1181, %v1184
      %v1186 = vmul.f32 %v1183, %v1184
      %v1187 = vsub.f32 %v1176, %v1185
      %v1188 = vsub.f32 %v1177, %v1186
      %v1189 = vmul.f32 %v1187, %v1187
      %v1190 = vmul.f32 %v1188, %v1188
      %1191 = vadd.xlane.f32.xlu0 %v1189
      %v1192 = vpop.xlane.xlu0 %1191
      %1193 = vadd.xlane.f32.xlu0 %v1190
      %v1194 = vpop.xlane.xlu0 %1193
      %v1195 = vmul.f32 %v1192, %v1184
      %v1196 = vmul.f32 %v1194, %v1184
      %v1197 = vadd.f32 %v1195, 1e-05
      %v1198 = vadd.f32 %v1196, 1e-05
      %v1199 = vrsqrt.pop %v1197
      %v1200 = vrsqrt.pop %v1198
      %v1201 = vmul.f32 %v1187, %v1199
      %v1202 = vmul.f32 %v1188, %v1200
      %v1204 = vlaneseq
      %v1205 = vshrl.u32 %v1204, 7
      %v1206 = vsub.s32 0, %v1205
      %v1207 = vrot.slane %v1178, %v1206
      %v1209 = vmul.f32 %v1201, %v1207
      %v1210 = vmul.f32 %v1202, %v1207
      %v1212 = vlaneseq
      %v1213 = vshrl.u32 %v1212, 7
      %v1214 = vsub.s32 0, %v1213
      %v1215 = vrot.slane %v1179, %v1214
      %v1217 = vadd.f32 %v1209, %v1215
      %v1218 = vadd.f32 %v1210, %v1215
      %1219 = vst [vmem:[%s278] sm:$0xff] %v1217
      %1220 = vst [vmem:[%s278 + $0x8] sm:$0xff] %v1218
      %p1221 = scmp.lt.s32.totalorder %s18, 1
      %s1222 = scalar_select %p1221, %s18, 1
      %s1223 = smul.addr %s1222, 2
      %s1224 = smul.addr %s1223, 8
      %s1225 = scalar_lea.vmem %s7, %s1224
      // Predicated region
      $region49: #{transformer_forward.11} parent=47 // pred_check
        %p1226 = pneg %p188
      $region50: #{transformer_forward.11} parent=47 // pred_check_branch
        %1228 = sbr.rel (%p1226) target = $region52
      $region51: #{transformer_forward.11} parent=47 // pred_region
        _
      $region52: #{transformer_forward.11} parent=47 // pred_fallthru
        _
    $region48: #{transformer_forward.11} parent=5 // pred_fallthru
      _
    %p1229 = scmp.le.s32.totalorder 2, %s13
    // Predicated region
    $region53: #{transformer_forward.11} parent=5 // pred_check
      %p1230 = pneg %p1229
    $region54: #{transformer_forward.11} parent=5 // pred_check_branch
      %1232 = sbr.rel (%p1230) target = $region56
    $region55: #{transformer_forward.11} parent=5 // pred_region
      %s1233 = ssub.s32 %s13, 2
      // Predicated region
      $region57: #{transformer_forward.11} parent=55 // pred_check
        %p1234 = pneg %p194
      $region58: #{transformer_forward.11} parent=55 // pred_check_branch
        %1236 = sbr.rel (%p1234) target = $region60
      $region59: #{transformer_forward.11} parent=55 // pred_region
        %p1237 = scmp.lt.s32.totalorder %s19, 1
        %s1238 = scalar_select %p1237, %s19, 1
        %s1239 = smul.addr %s1238, 2
        %s1240 = smul.addr %s1239, 8
        %s1241 = scalar_lea.vmem %s7, %s1240
      $region60: #{transformer_forward.11} parent=55 // pred_fallthru
        _
    $region56: #{transformer_forward.11} parent=5 // pred_fallthru
      _
  $region6: #{transformer_forward.11} parent=0 // loop_footer
    %s17 = sadd.s32 1, %s13
  $region7: #{transformer_forward.11} parent=0 // loop_footer_branch
    %12 = sbr.rel target = $region3
  $region8: #{transformer_forward.11} parent=0 // loop_exit
    _

// kernel: transformer_forward.16
$region0: #{transformer_forward.16}
  #allocation0 [shape = 'u32[]', space=smem, size = 0x4, offset = 0x4, fixed_abs, tag = 'smem constant byte address 0x4 - core index']
  #allocation1 [shape = 'u32[144,128]{1,0:T(1,128)}', space=vmem, size = 0x12000, scoped, tag = 'internal scratch']
  %s0 = inlined_call_operand.vmem [shape: f32[2,16,128], index: 0, kind: input, shape index: {}]
  %s1 = inlined_call_operand.vmem [shape: f32[2,16,128], index: 1, kind: input, shape index: {}]
  %s2 = inlined_call_operand.vmem [shape: bf16[128,128], index: 2, kind: input, shape index: {}]
  %s3 = inlined_call_operand.vmem [shape: f32[1,128], index: 3, kind: input, shape index: {}]
  %s4 = inlined_call_operand.vmem [shape: bf16[128,256], index: 4, kind: input, shape index: {}]
  %s5 = inlined_call_operand.vmem [shape: f32[1,256], index: 5, kind: input, shape index: {}]
  %s6 = inlined_call_operand.vmem [shape: bf16[128,128], index: 6, kind: input, shape index: {}]
  %s7 = inlined_call_operand.vmem [shape: f32[1,128], index: 7, kind: input, shape index: {}]
  %s8 = inlined_call_operand.vmem [shape: f32[1,128], index: 8, kind: input, shape index: {}]
  %s9 = inlined_call_operand.vmem [shape: f32[1,128], index: 9, kind: input, shape index: {}]
  %s10 = inlined_call_operand.vmem [shape: f32[2,16,128], index: 10, kind: output, shape index: {}]
  %s11 = sld [smem:[#allocation0]]
  $region73: #{transformer_forward.16} parent=0
    _
  %s13 = ssub.s32 1, %s11
  %s14 = scalar_select 0, %s13, %s11
  loop: start=0, step=1, limit=4
  $region2: #{transformer_forward.16} parent=0 // loop_pre_header
    _
  $region3: #{transformer_forward.16} parent=0 // loop_header
    %s16 = sphi 0, %s20
    %p17 = scmp.ge.s32.totalorder %s16, 4
    %s26 = sphi 0, %s28
    %s29 = sphi 0, %s26
    %s30 = sphi 0, %s29
    %s46 = sphi 0, %s30
    %s52 = sphi 0, %s54
    %s55 = sphi 0, %s52
    %s56 = sphi 0, %s55
    %s72 = sphi 0, %s56
    %s76 = sphi 0, %s76
    %s78 = sphi 0, %s76
    %s79 = sphi 0, %s78
    %s93 = sphi 0, %s79
    %s97 = sphi 0, %s97
    %s99 = sphi 0, %s97
    %s100 = sphi 0, %s99
    %s114 = sphi 0, %s100
    %s118 = sphi 0, %s118
    %s120 = sphi 0, %s118
    %s121 = sphi 0, %s120
    %s135 = sphi 0, %s121
    %s139 = sphi 0, %s139
    %s141 = sphi 0, %s139
    %s142 = sphi 0, %s141
    %s156 = sphi 0, %s142
    %s160 = sphi 0, %s160
    %s162 = sphi 0, %s160
    %s163 = sphi 0, %s162
    %s177 = sphi 0, %s163
    %s181 = sphi 0, %s181
    %s183 = sphi 0, %s181
    %s184 = sphi 0, %s183
    %s198 = sphi 0, %s184
    %s202 = sphi 0, %s202
    %s204 = sphi 0, %s202
    %s205 = sphi 0, %s204
    %s219 = sphi 0, %s205
    %s223 = sphi 0, %s223
    %s225 = sphi 0, %s223
    %s226 = sphi 0, %s225
    %s240 = sphi 0, %s226
    %s246 = sphi 0, %s248
    %s249 = sphi 0, %s246
    %s250 = sphi 0, %s249
    %s266 = sphi 0, %s250
  $region4: #{transformer_forward.16} parent=0 // loop_header_branch
    %19 = sbr.rel (%p17) target = $region8
  $region5: #{transformer_forward.16} parent=0 // loop_body
    %s21 = ssub.s32 %s16, 1
    %s22 = ssub.s32 %s16, 2
    %s23 = sadd.s32 %s16, 1
    %s24 = ssub.s32 %s16, %s23
    %p25 = scmp.eq.s32.totalorder %s24, 0
    %s27 = sadd.s32 %s26, 1
    %s28 = scalar_select %p25, %s26, %s27
    %p31 = pneg %p25
    %p32 = scmp.eq.s32.totalorder %s16, 1
    %p33 = por %p31, %p32
    %p34 = scmp.ne.s32.totalorder %s26, %s29
    %p35 = scmp.eq.s32.totalorder %s16, 0
    %p36 = por %p34, %p35
    %p37 = scmp.ne.s32.totalorder %s26, %s29
    %p38 = scmp.eq.s32.totalorder %s21, 1
    %p39 = por %p37, %p38
    %p40 = scmp.ne.s32.totalorder %s29, %s30
    %p41 = scmp.eq.s32.totalorder %s21, 0
    %p42 = por %p40, %p41
    %p43 = scmp.ne.s32.totalorder %s29, %s30
    %p44 = scmp.eq.s32.totalorder %s22, 1
    %p45 = por %p43, %p44
    %p47 = scmp.ne.s32.totalorder %s30, %s46
    %p48 = scmp.eq.s32.totalorder %s22, 0
    %p49 = por %p47, %p48
    %s50 = ssub.s32 %s16, %s23
    %p51 = scmp.eq.s32.totalorder %s50, 0
    %s53 = sadd.s32 %s52, 1
    %s54 = scalar_select %p51, %s52, %s53
    %p57 = pneg %p51
    %p58 = scmp.eq.s32.totalorder %s16, 1
    %p59 = por %p57, %p58
    %p60 = scmp.ne.s32.totalorder %s52, %s55
    %p61 = scmp.eq.s32.totalorder %s16, 0
    %p62 = por %p60, %p61
    %p63 = scmp.ne.s32.totalorder %s52, %s55
    %p64 = scmp.eq.s32.totalorder %s21, 1
    %p65 = por %p63, %p64
    %p66 = scmp.ne.s32.totalorder %s55, %s56
    %p67 = scmp.eq.s32.totalorder %s21, 0
    %p68 = por %p66, %p67
    %p69 = scmp.ne.s32.totalorder %s55, %s56
    %p70 = scmp.eq.s32.totalorder %s22, 1
    %p71 = por %p69, %p70
    %p73 = scmp.ne.s32.totalorder %s56, %s72
    %p74 = scmp.eq.s32.totalorder %s22, 0
    %p75 = por %p73, %p74
    %s77 = sadd.s32 %s76, 1
    %p80 = scmp.eq.s32.totalorder %s16, 1
    %p81 = scmp.ne.s32.totalorder %s76, %s78
    %p82 = scmp.eq.s32.totalorder %s16, 0
    %p83 = por %p81, %p82
    %p84 = scmp.ne.s32.totalorder %s76, %s78
    %p85 = scmp.eq.s32.totalorder %s21, 1
    %p86 = por %p84, %p85
    %p87 = scmp.ne.s32.totalorder %s78, %s79
    %p88 = scmp.eq.s32.totalorder %s21, 0
    %p89 = por %p87, %p88
    %p90 = scmp.ne.s32.totalorder %s78, %s79
    %p91 = scmp.eq.s32.totalorder %s22, 1
    %p92 = por %p90, %p91
    %p94 = scmp.ne.s32.totalorder %s79, %s93
    %p95 = scmp.eq.s32.totalorder %s22, 0
    %p96 = por %p94, %p95
    %s98 = sadd.s32 %s97, 1
    %p101 = scmp.eq.s32.totalorder %s16, 1
    %p102 = scmp.ne.s32.totalorder %s97, %s99
    %p103 = scmp.eq.s32.totalorder %s16, 0
    %p104 = por %p102, %p103
    %p105 = scmp.ne.s32.totalorder %s97, %s99
    %p106 = scmp.eq.s32.totalorder %s21, 1
    %p107 = por %p105, %p106
    %p108 = scmp.ne.s32.totalorder %s99, %s100
    %p109 = scmp.eq.s32.totalorder %s21, 0
    %p110 = por %p108, %p109
    %p111 = scmp.ne.s32.totalorder %s99, %s100
    %p112 = scmp.eq.s32.totalorder %s22, 1
    %p113 = por %p111, %p112
    %p115 = scmp.ne.s32.totalorder %s100, %s114
    %p116 = scmp.eq.s32.totalorder %s22, 0
    %p117 = por %p115, %p116
    %s119 = sadd.s32 %s118, 1
    %p122 = scmp.eq.s32.totalorder %s16, 1
    %p123 = scmp.ne.s32.totalorder %s118, %s120
    %p124 = scmp.eq.s32.totalorder %s16, 0
    %p125 = por %p123, %p124
    %p126 = scmp.ne.s32.totalorder %s118, %s120
    %p127 = scmp.eq.s32.totalorder %s21, 1
    %p128 = por %p126, %p127
    %p129 = scmp.ne.s32.totalorder %s120, %s121
    %p130 = scmp.eq.s32.totalorder %s21, 0
    %p131 = por %p129, %p130
    %p132 = scmp.ne.s32.totalorder %s120, %s121
    %p133 = scmp.eq.s32.totalorder %s22, 1
    %p134 = por %p132, %p133
    %p136 = scmp.ne.s32.totalorder %s121, %s135
    %p137 = scmp.eq.s32.totalorder %s22, 0
    %p138 = por %p136, %p137
    %s140 = sadd.s32 %s139, 1
    %p143 = scmp.eq.s32.totalorder %s16, 1
    %p144 = scmp.ne.s32.totalorder %s139, %s141
    %p145 = scmp.eq.s32.totalorder %s16, 0
    %p146 = por %p144, %p145
    %p147 = scmp.ne.s32.totalorder %s139, %s141
    %p148 = scmp.eq.s32.totalorder %s21, 1
    %p149 = por %p147, %p148
    %p150 = scmp.ne.s32.totalorder %s141, %s142
    %p151 = scmp.eq.s32.totalorder %s21, 0
    %p152 = por %p150, %p151
    %p153 = scmp.ne.s32.totalorder %s141, %s142
    %p154 = scmp.eq.s32.totalorder %s22, 1
    %p155 = por %p153, %p154
    %p157 = scmp.ne.s32.totalorder %s142, %s156
    %p158 = scmp.eq.s32.totalorder %s22, 0
    %p159 = por %p157, %p158
    %s161 = sadd.s32 %s160, 1
    %p164 = scmp.eq.s32.totalorder %s16, 1
    %p165 = scmp.ne.s32.totalorder %s160, %s162
    %p166 = scmp.eq.s32.totalorder %s16, 0
    %p167 = por %p165, %p166
    %p168 = scmp.ne.s32.totalorder %s160, %s162
    %p169 = scmp.eq.s32.totalorder %s21, 1
    %p170 = por %p168, %p169
    %p171 = scmp.ne.s32.totalorder %s162, %s163
    %p172 = scmp.eq.s32.totalorder %s21, 0
    %p173 = por %p171, %p172
    %p174 = scmp.ne.s32.totalorder %s162, %s163
    %p175 = scmp.eq.s32.totalorder %s22, 1
    %p176 = por %p174, %p175
    %p178 = scmp.ne.s32.totalorder %s163, %s177
    %p179 = scmp.eq.s32.totalorder %s22, 0
    %p180 = por %p178, %p179
    %s182 = sadd.s32 %s181, 1
    %p185 = scmp.eq.s32.totalorder %s16, 1
    %p186 = scmp.ne.s32.totalorder %s181, %s183
    %p187 = scmp.eq.s32.totalorder %s16, 0
    %p188 = por %p186, %p187
    %p189 = scmp.ne.s32.totalorder %s181, %s183
    %p190 = scmp.eq.s32.totalorder %s21, 1
    %p191 = por %p189, %p190
    %p192 = scmp.ne.s32.totalorder %s183, %s184
    %p193 = scmp.eq.s32.totalorder %s21, 0
    %p194 = por %p192, %p193
    %p195 = scmp.ne.s32.totalorder %s183, %s184
    %p196 = scmp.eq.s32.totalorder %s22, 1
    %p197 = por %p195, %p196
    %p199 = scmp.ne.s32.totalorder %s184, %s198
    %p200 = scmp.eq.s32.totalorder %s22, 0
    %p201 = por %p199, %p200
    %s203 = sadd.s32 %s202, 1
    %p206 = scmp.eq.s32.totalorder %s16, 1
    %p207 = scmp.ne.s32.totalorder %s202, %s204
    %p208 = scmp.eq.s32.totalorder %s16, 0
    %p209 = por %p207, %p208
    %p210 = scmp.ne.s32.totalorder %s202, %s204
    %p211 = scmp.eq.s32.totalorder %s21, 1
    %p212 = por %p210, %p211
    %p213 = scmp.ne.s32.totalorder %s204, %s205
    %p214 = scmp.eq.s32.totalorder %s21, 0
    %p215 = por %p213, %p214
    %p216 = scmp.ne.s32.totalorder %s204, %s205
    %p217 = scmp.eq.s32.totalorder %s22, 1
    %p218 = por %p216, %p217
    %p220 = scmp.ne.s32.totalorder %s205, %s219
    %p221 = scmp.eq.s32.totalorder %s22, 0
    %p222 = por %p220, %p221
    %s224 = sadd.s32 %s223, 1
    %p227 = scmp.eq.s32.totalorder %s16, 1
    %p228 = scmp.ne.s32.totalorder %s223, %s225
    %p229 = scmp.eq.s32.totalorder %s16, 0
    %p230 = por %p228, %p229
    %p231 = scmp.ne.s32.totalorder %s223, %s225
    %p232 = scmp.eq.s32.totalorder %s21, 1
    %p233 = por %p231, %p232
    %p234 = scmp.ne.s32.totalorder %s225, %s226
    %p235 = scmp.eq.s32.totalorder %s21, 0
    %p236 = por %p234, %p235
    %p237 = scmp.ne.s32.totalorder %s225, %s226
    %p238 = scmp.eq.s32.totalorder %s22, 1
    %p239 = por %p237, %p238
    %p241 = scmp.ne.s32.totalorder %s226, %s240
    %p242 = scmp.eq.s32.totalorder %s22, 0
    %p243 = por %p241, %p242
    %s244 = ssub.s32 %s16, %s23
    %p245 = scmp.eq.s32.totalorder %s244, 0
    %s247 = sadd.s32 %s246, 1
    %s248 = scalar_select %p245, %s246, %s247
    %p251 = pneg %p245
    %p252 = scmp.eq.s32.totalorder %s16, 1
    %p253 = por %p251, %p252
    %p254 = scmp.ne.s32.totalorder %s246, %s249
    %p255 = scmp.eq.s32.totalorder %s16, 0
    %p256 = por %p254, %p255
    %p257 = scmp.ne.s32.totalorder %s246, %s249
    %p258 = scmp.eq.s32.totalorder %s21, 1
    %p259 = por %p257, %p258
    %p260 = scmp.ne.s32.totalorder %s249, %s250
    %p261 = scmp.eq.s32.totalorder %s21, 0
    %p262 = por %p260, %p261
    %p263 = scmp.ne.s32.totalorder %s249, %s250
    %p264 = scmp.eq.s32.totalorder %s22, 1
    %p265 = por %p263, %p264
    %p267 = scmp.ne.s32.totalorder %s250, %s266
    %p268 = scmp.eq.s32.totalorder %s22, 0
    %p269 = por %p267, %p268
    %p270 = scmp.le.s32.totalorder 1, %s16
    %p271 = scmp.lt.s32.totalorder %s16, 3
    %p272 = pnand %p270, %p271
    %p273 = pneg %p272
    // Predicated region
    $region9: #{transformer_forward.16} parent=5 // pred_check
      _
    $region10: #{transformer_forward.16} parent=5 // pred_check_branch
      %275 = sbr.rel (%p272) target = $region12
    $region11: #{transformer_forward.16} parent=5 // pred_region
      %s276 = ssub.s32 %s16, 1
      // Predicated region
      $region13: #{transformer_forward.16} parent=11 // pred_check
        %p277 = pneg %p89
      $region14: #{transformer_forward.16} parent=11 // pred_check_branch
        %279 = sbr.rel (%p277) target = $region16
      $region15: #{transformer_forward.16} parent=11 // pred_region
        _
      $region16: #{transformer_forward.16} parent=11 // pred_fallthru
        _
      // Predicated region
      $region17: #{transformer_forward.16} parent=11 // pred_check
        %p280 = pneg %p110
      $region18: #{transformer_forward.16} parent=11 // pred_check_branch
        %282 = sbr.rel (%p280) target = $region20
      $region19: #{transformer_forward.16} parent=11 // pred_region
        _
      $region20: #{transformer_forward.16} parent=11 // pred_fallthru
        _
      // Predicated region
      $region21: #{transformer_forward.16} parent=11 // pred_check
        %p283 = pneg %p131
      $region22: #{transformer_forward.16} parent=11 // pred_check_branch
        %285 = sbr.rel (%p283) target = $region24
      $region23: #{transformer_forward.16} parent=11 // pred_region
        _
      $region24: #{transformer_forward.16} parent=11 // pred_fallthru
        _
      // Predicated region
      $region25: #{transformer_forward.16} parent=11 // pred_check
        %p286 = pneg %p152
      $region26: #{transformer_forward.16} parent=11 // pred_check_branch
        %288 = sbr.rel (%p286) target = $region28
      $region27: #{transformer_forward.16} parent=11 // pred_region
        _
      $region28: #{transformer_forward.16} parent=11 // pred_fallthru
        _
      // Predicated region
      $region29: #{transformer_forward.16} parent=11 // pred_check
        %p289 = pneg %p173
      $region30: #{transformer_forward.16} parent=11 // pred_check_branch
        %291 = sbr.rel (%p289) target = $region32
      $region31: #{transformer_forward.16} parent=11 // pred_region
        _
      $region32: #{transformer_forward.16} parent=11 // pred_fallthru
        _
      // Predicated region
      $region33: #{transformer_forward.16} parent=11 // pred_check
        %p292 = pneg %p194
      $region34: #{transformer_forward.16} parent=11 // pred_check_branch
        %294 = sbr.rel (%p292) target = $region36
      $region35: #{transformer_forward.16} parent=11 // pred_region
        _
      $region36: #{transformer_forward.16} parent=11 // pred_fallthru
        _
      // Predicated region
      $region37: #{transformer_forward.16} parent=11 // pred_check
        %p295 = pneg %p215
      $region38: #{transformer_forward.16} parent=11 // pred_check_branch
        %297 = sbr.rel (%p295) target = $region40
      $region39: #{transformer_forward.16} parent=11 // pred_region
        _
      $region40: #{transformer_forward.16} parent=11 // pred_fallthru
        _
      // Predicated region
      $region41: #{transformer_forward.16} parent=11 // pred_check
        %p298 = pneg %p236
      $region42: #{transformer_forward.16} parent=11 // pred_check_branch
        %300 = sbr.rel (%p298) target = $region44
      $region43: #{transformer_forward.16} parent=11 // pred_region
        _
      $region44: #{transformer_forward.16} parent=11 // pred_fallthru
        _
    $region12: #{transformer_forward.16} parent=5 // pred_fallthru
      _
    %p301 = scmp.lt.s32.totalorder %s16, 2
    // Predicated region
    $region45: #{transformer_forward.16} parent=5 // pred_check
      %p302 = pneg %p301
    $region46: #{transformer_forward.16} parent=5 // pred_check_branch
      %304 = sbr.rel (%p302) target = $region48
    $region47: #{transformer_forward.16} parent=5 // pred_region
      // Predicated region
      $region49: #{transformer_forward.16} parent=47 // pred_check
        %p305 = pneg %p36
      $region50: #{transformer_forward.16} parent=47 // pred_check_branch
        %307 = sbr.rel (%p305) target = $region52
      $region51: #{transformer_forward.16} parent=47 // pred_region
        %p308 = scmp.lt.s32.totalorder %s16, 1
        %s309 = scalar_select %p308, %s16, 1
        %s310 = smul.addr %s309, 2
        %s311 = smul.addr %s310, 8
        %s312 = scalar_lea.vmem %s0, %s311
      $region52: #{transformer_forward.16} parent=47 // pred_fallthru
        _
      // Predicated region
      $region53: #{transformer_forward.16} parent=47 // pred_check
        %p313 = pneg %p62
      $region54: #{transformer_forward.16} parent=47 // pred_check_branch
        %315 = sbr.rel (%p313) target = $region56
      $region55: #{transformer_forward.16} parent=47 // pred_region
        %p316 = scmp.lt.s32.totalorder %s16, 1
        %s317 = scalar_select %p316, %s16, 1
        %s318 = smul.addr %s317, 2
        %s319 = smul.addr %s318, 8
        %s320 = scalar_lea.vmem %s1, %s319
      $region56: #{transformer_forward.16} parent=47 // pred_fallthru
        _
    $region48: #{transformer_forward.16} parent=5 // pred_fallthru
      _
    %p321 = scmp.le.s32.totalorder 1, %s16
    %p322 = scmp.lt.s32.totalorder %s16, 3
    %p323 = pnand %p321, %p322
    %p324 = pneg %p323
    // Predicated region
    $region57: #{transformer_forward.16} parent=5 // pred_check
      _
    $region58: #{transformer_forward.16} parent=5 // pred_check_branch
      %326 = sbr.rel (%p323) target = $region60
    $region59: #{transformer_forward.16} parent=5 // pred_region
      %s327 = ssub.s32 %s16, 1
      %p328 = scmp.lt.s32.totalorder %s21, 1
      %s329 = scalar_select %p328, %s21, 1
      %s330 = smul.addr %s329, 2
      %s331 = smul.addr %s330, 8
      %s332 = scalar_lea.vmem %s0, %s331
      %p333 = pneg %p42
      %p334 = pneg %p39
      %p335 = scmp.lt.s32.totalorder %s21, 1
      %s336 = scalar_select %p335, %s21, 1
      %s337 = smul.addr %s336, 2
      %s338 = smul.addr %s337, 8
      %s339 = scalar_lea.vmem %s1, %s338
      %p340 = pneg %p68
      %p341 = pneg %p65
      %p342 = pneg %p89
      %p343 = pneg %p86
      %p344 = pneg %p110
      %p345 = pneg %p107
      %p346 = pneg %p131
      %p347 = pneg %p128
      %p348 = pneg %p152
      %p349 = pneg %p149
      %p350 = pneg %p173
      %p351 = pneg %p170
      %p352 = pneg %p194
      %p353 = pneg %p191
      %p354 = pneg %p215
      %p355 = pneg %p212
      %p356 = pneg %p236
      %p357 = pneg %p233
      %p358 = pneg %p262
      %p359 = pneg %p259
      %p360 = scmp.lt.s32.totalorder %s21, 1
      %s361 = scalar_select %p360, %s21, 1
      %s362 = smul.addr %s361, 2
      %s363 = smul.addr %s362, 8
      %s364 = scalar_lea.vmem %s10, %s363
      %p365 = scmp.lt.s32.totalorder %s21, 1
      %s366 = scalar_select %p365, %s21, 1
      %s367 = smul.addr %s366, 2
      %s368 = smul.addr %s367, 8
      %s369 = scalar_lea.vmem %s0, %s368
      %p370 = scmp.lt.s32.totalorder %s21, 1
      %s371 = scalar_select %p370, %s21, 1
      %s372 = smul.addr %s371, 2
      %s373 = smul.addr %s372, 8
      %s374 = scalar_lea.vmem %s1, %s373
      %p375 = scmp.lt.s32.totalorder %s21, 1
      %s376 = scalar_select %p375, %s21, 1
      %s377 = smul.addr %s376, 2
      %s378 = smul.addr %s377, 8
      %s379 = scalar_lea.vmem %s10, %s378
      %v381 = vld [vmem:[%s369] sm:$0xff]
      %v382 = vld [vmem:[%s369 + $0x8] sm:$0xff]
      %v383 = vld [vmem:[%s374] sm:$0xff]
      %v384 = vld [vmem:[%s374 + $0x8] sm:$0xff]
      %v385 = vpack.c.bf16 %v382, %v381
      %v386 = vld [vmem:[%s2] sm:$0xf]
      %v387 = vld [vmem:[%s2 + $0x4] sm:$0xf]
      %v388 = vld [vmem:[%s2 + $0x8] sm:$0xf]
      %v389 = vld [vmem:[%s2 + $0xc] sm:$0xf]
      %v390 = vld [vmem:[%s2 + $0x10] sm:$0xf]
      %v391 = vld [vmem:[%s2 + $0x14] sm:$0xf]
      %v392 = vld [vmem:[%s2 + $0x18] sm:$0xf]
      %v393 = vld [vmem:[%s2 + $0x1c] sm:$0xf]
      %v394 = vld [vmem:[%s2 + $0x20] sm:$0xf]
      %v395 = vld [vmem:[%s2 + $0x24] sm:$0xf]
      %v396 = vld [vmem:[%s2 + $0x28] sm:$0xf]
      %v397 = vld [vmem:[%s2 + $0x2c] sm:$0xf]
      %v398 = vld [vmem:[%s2 + $0x30] sm:$0xf]
      %v399 = vld [vmem:[%s2 + $0x34] sm:$0xf]
      %v400 = vld [vmem:[%s2 + $0x38] sm:$0xf]
      %v401 = vld [vmem:[%s2 + $0x3c] sm:$0xf]
      %v402 = vld [vmem:[%s3] sm:$0x1]
      %v404 = vlaneseq
      %v405 = vshrl.u32 %v404, 7
      %v406 = vsub.s32 0, %v405
      %v407 = vrot.slane %v402, %v406
      %v425 = vunpack.c.l.b16 %v386
      %v426 = vunpack.c.l.b16 %v387
      %v427 = vunpack.c.l.b16 %v388
      %v428 = vunpack.c.l.b16 %v389
      %v429 = vunpack.c.l.b16 %v390
      %v430 = vunpack.c.l.b16 %v391
      %v431 = vunpack.c.l.b16 %v392
      %v432 = vunpack.c.l.b16 %v393
      %v433 = vunpack.c.l.b16 %v394
      %v434 = vunpack.c.l.b16 %v395
      %v435 = vunpack.c.l.b16 %v396
      %v436 = vunpack.c.l.b16 %v397
      %v437 = vunpack.c.l.b16 %v398
      %v438 = vunpack.c.l.b16 %v399
      %v439 = vunpack.c.l.b16 %v400
      %v440 = vunpack.c.l.b16 %v401
      %v441 = vpack.c.b16 %v426, %v425
      %v442 = vpack.c.b16 %v428, %v427
      %v443 = vpack.c.b16 %v430, %v429
      %v444 = vpack.c.b16 %v432, %v431
      %v445 = vpack.c.b16 %v434, %v433
      %v446 = vpack.c.b16 %v436, %v435
      %v447 = vpack.c.b16 %v438, %v437
      %v448 = vpack.c.b16 %v440, %v439
      %457 = vmatprep.subr.bf16.mxu0 0
      %458 = vmatpush1.bf16.msra.mxu0 %v441
      %459 = vmatprep.subr.bf16.mxu0 0
      %460 = vmatpush1.bf16.msra.mxu0 %v442
      %461 = vmatprep.subr.bf16.mxu0 0
      %462 = vmatpush1.bf16.msra.mxu0 %v443
      %463 = vmatprep.subr.bf16.mxu0 0
      %464 = vmatpush1.bf16.msra.mxu0 %v444
      %465 = vmatprep.subr.bf16.mxu0 0
      %466 = vmatpush1.bf16.msra.mxu0 %v445
      %467 = vmatprep.subr.bf16.mxu0 0
      %468 = vmatpush1.bf16.msra.mxu0 %v446
      %469 = vmatprep.subr.bf16.mxu0 0
      %470 = vmatpush1.bf16.msra.mxu0 %v447
      %471 = vmatprep.subr.bf16.mxu0 0
      %472 = vmatpush1.bf16.msra.mxu0 %v448
      %473 = vmatprep.subr.bf16.mxu0 0
      %474 = vmatpush1.bf16.msra.mxu0 0
      %475 = vmatprep.subr.bf16.mxu0 0
      %476 = vmatpush1.bf16.msra.mxu0 0
      %477 = vmatprep.subr.bf16.mxu0 0
      %478 = vmatpush1.bf16.msra.mxu0 0
      %479 = vmatprep.subr.bf16.mxu0 0
      %480 = vmatpush1.bf16.msra.mxu0 0
      %481 = vmatprep.subr.bf16.mxu0 0
      %482 = vmatpush1.bf16.msra.mxu0 0
      %483 = vmatprep.subr.bf16.mxu0 0
      %484 = vmatpush1.bf16.msra.mxu0 0
      %485 = vmatprep.subr.bf16.mxu0 0
      %486 = vmatpush1.bf16.msra.mxu0 0
      %487 = vmatprep.subr.bf16.mxu0 0
      %488 = vmatpush1.bf16.msra.mxu0 0
      %489 = vmatprep.mubr.bf16.mxu0 0
      %490 = vmatmul.mubr.bf16.gmra.mrb[0].mxu0 %v385
      %v491 = vpop.f32.mrb[0].mxu0
      %v492 = vadd.f32 %v407, %v491
      %v493 = vpop.f32.mrb[0].mxu0
      %v494 = vpop.f32.mrb[0].mxu0
      %v495 = vadd.f32 %v407, %v494
      %v496 = vpop.f32.mrb[0].mxu0
      %497 = vdwg.mxu0
      %v498 = vpack.c.bf16 %v384, %v383
      %v499 = vld [vmem:[%s4] sm:$0xff]
      %v500 = vld [vmem:[%s4 + $0x8] sm:$0xff]
      %v501 = vld [vmem:[%s4 + $0x10] sm:$0xff]
      %v502 = vld [vmem:[%s4 + $0x18] sm:$0xff]
      %v503 = vld [vmem:[%s4 + $0x20] sm:$0xff]
      %v504 = vld [vmem:[%s4 + $0x28] sm:$0xff]
      %v505 = vld [vmem:[%s4 + $0x30] sm:$0xff]
      %v506 = vld [vmem:[%s4 + $0x38] sm:$0xff]
      %v507 = vld [vmem:[%s4 + $0x40] sm:$0xff]
      %v508 = vld [vmem:[%s4 + $0x48] sm:$0xff]
      %v509 = vld [vmem:[%s4 + $0x50] sm:$0xff]
      %v510 = vld [vmem:[%s4 + $0x58] sm:$0xff]
      %v511 = vld [vmem:[%s4 + $0x60] sm:$0xff]
      %v512 = vld [vmem:[%s4 + $0x68] sm:$0xff]
      %v513 = vld [vmem:[%s4 + $0x70] sm:$0xff]
      %v514 = vld [vmem:[%s4 + $0x78] sm:$0xff]
      %v515 = vld [vmem:[%s5] sm:$0x3]
      %v517 = vlaneseq
      %v518 = vshrl.u32 %v517, 7
      %v519 = vsub.s32 0, %v518
      %v520 = vrot.slane %v515, %v519
      %v521 = vlaneseq
      %v522 = vshrl.u32 %v521, 7
      %v523 = vsub.s32 1, %v522
      %v524 = vrot.slane %v515, %v523
      %v543 = vunpack.c.l.b16 %v499
      %v544 = vunpack.c.h.b16 %v499
      %v545 = vunpack.c.l.b16 %v500
      %v546 = vunpack.c.h.b16 %v500
      %v547 = vunpack.c.l.b16 %v501
      %v548 = vunpack.c.h.b16 %v501
      %v549 = vunpack.c.l.b16 %v502
      %v550 = vunpack.c.h.b16 %v502
      %v551 = vunpack.c.l.b16 %v503
      %v552 = vunpack.c.h.b16 %v503
      %v553 = vunpack.c.l.b16 %v504
      %v554 = vunpack.c.h.b16 %v504
      %v555 = vunpack.c.l.b16 %v505
      %v556 = vunpack.c.h.b16 %v505
      %v557 = vunpack.c.l.b16 %v506
      %v558 = vunpack.c.h.b16 %v506
      %v559 = vunpack.c.l.b16 %v507
      %v560 = vunpack.c.h.b16 %v507
      %v561 = vunpack.c.l.b16 %v508
      %v562 = vunpack.c.h.b16 %v508
      %v563 = vunpack.c.l.b16 %v509
      %v564 = vunpack.c.h.b16 %v509
      %v565 = vunpack.c.l.b16 %v510
      %v566 = vunpack.c.h.b16 %v510
      %v567 = vunpack.c.l.b16 %v511
      %v568 = vunpack.c.h.b16 %v511
      %v569 = vunpack.c.l.b16 %v512
      %v570 = vunpack.c.h.b16 %v512
      %v571 = vunpack.c.l.b16 %v513
      %v572 = vunpack.c.h.b16 %v513
      %v573 = vunpack.c.l.b16 %v514
      %v574 = vunpack.c.h.b16 %v514
      %v575 = vpack.c.b16 %v545, %v543
      %v576 = vpack.c.b16 %v546, %v544
      %v577 = vpack.c.b16 %v549, %v547
      %v578 = vpack.c.b16 %v550, %v548
      %v579 = vpack.c.b16 %v553, %v551
      %v580 = vpack.c.b16 %v554, %v552
      %v581 = vpack.c.b16 %v557, %v555
      %v582 = vpack.c.b16 %v558, %v556
      %v583 = vpack.c.b16 %v561, %v559
      %v584 = vpack.c.b16 %v562, %v560
      %v585 = vpack.c.b16 %v565, %v563
      %v586 = vpack.c.b16 %v566, %v564
      %v587 = vpack.c.b16 %v569, %v567
      %v588 = vpack.c.b16 %v570, %v568
      %v589 = vpack.c.b16 %v573, %v571
      %v590 = vpack.c.b16 %v574, %v572
      %607 = vmatprep.subr.bf16.mxu0 %v576
      %608 = vmatpush1.bf16.msra.mxu0 %v575
      %609 = vmatprep.subr.bf16.mxu0 %v578
      %610 = vmatpush1.bf16.msra.mxu0 %v577
      %611 = vmatprep.subr.bf16.mxu0 %v580
      %612 = vmatpush1.bf16.msra.mxu0 %v579
      %613 = vmatprep.subr.bf16.mxu0 %v582
      %614 = vmatpush1.bf16.msra.mxu0 %v581
      %615 = vmatprep.subr.bf16.mxu0 %v584
      %616 = vmatpush1.bf16.msra.mxu0 %v583
      %617 = vmatprep.subr.bf16.mxu0 %v586
      %618 = vmatpush1.bf16.msra.mxu0 %v585
      %619 = vmatprep.subr.bf16.mxu0 %v588
      %620 = vmatpush1.bf16.msra.mxu0 %v587
      %621 = vmatprep.subr.bf16.mxu0 %v590
      %622 = vmatpush1.bf16.msra.mxu0 %v589
      %623 = vmatprep.subr.bf16.mxu0 0
      %624 = vmatpush1.bf16.msra.mxu0 0
      %625 = vmatprep.subr.bf16.mxu0 0
      %626 = vmatpush1.bf16.msra.mxu0 0
      %627 = vmatprep.subr.bf16.mxu0 0
      %628 = vmatpush1.bf16.msra.mxu0 0
      %629 = vmatprep.subr.bf16.mxu0 0
      %630 = vmatpush1.bf16.msra.mxu0 0
      %631 = vmatprep.subr.bf16.mxu0 0
      %632 = vmatpush1.bf16.msra.mxu0 0
      %633 = vmatprep.subr.bf16.mxu0 0
      %634 = vmatpush1.bf16.msra.mxu0 0
      %635 = vmatprep.subr.bf16.mxu0 0
      %636 = vmatpush1.bf16.msra.mxu0 0
      %637 = vmatprep.subr.bf16.mxu0 0
      %638 = vmatpush1.bf16.msra.mxu0 0
      %639 = vmatprep.mubr.bf16.mxu0 0
      %640 = vmatmul.mubr.bf16.gmra.mrb[0].mxu0 %v498
      %v641 = vpop.f32.mrb[0].mxu0
      %v642 = vadd.f32 %v520, %v641
      %v643 = vpop.f32.mrb[0].mxu0
      %v644 = vadd.f32 %v524, %v643
      %v645 = vpop.f32.mrb[0].mxu0
      %v646 = vadd.f32 %v520, %v645
      %v647 = vpop.f32.mrb[0].mxu0
      %v648 = vadd.f32 %v524, %v647
      %649 = vdwg.mxu0
      %v650 = vpack.c.bf16 %v495, %v492
      %v651 = vpack.c.bf16 %v646, %v642
      %v652 = vpack.c.bf16 %v648, %v644
      %vm653 = vcmask 261120
      %v655 = vsel %vm653, %v650, 0
      %v658 = vsel %vm653, %v651, 0
      %660 = vmatprep.subr.bf16.mxu0 0
      %661 = vmatpush1.bf16.xpose.msra.mxu0 %v658
      %662 = vmatprep.subr.bf16.mxu0 0
      %663 = vmatpush1.bf16.xpose.msra.mxu0 0
      %664 = vmatprep.subr.bf16.mxu0 0
      %665 = vmatpush1.bf16.xpose.msra.mxu0 0
      %666 = vmatprep.subr.bf16.mxu0 0
      %667 = vmatpush1.bf16.xpose.msra.mxu0 0
      %668 = vmatprep.subr.bf16.mxu0 0
      %669 = vmatpush1.bf16.xpose.msra.mxu0 0
      %670 = vmatprep.subr.bf16.mxu0 0
      %671 = vmatpush1.bf16.xpose.msra.mxu0 0
      %672 = vmatprep.subr.bf16.mxu0 0
      %673 = vmatpush1.bf16.xpose.msra.mxu0 0
      %674 = vmatprep.subr.bf16.mxu0 0
      %675 = vmatpush1.bf16.xpose.msra.mxu0 0
      %676 = vmatprep.subr.bf16.mxu0 0
      %677 = vmatpush1.bf16.xpose.msra.mxu0 0
      %678 = vmatprep.subr.bf16.mxu0 0
      %679 = vmatpush1.bf16.xpose.msra.mxu0 0
      %680 = vmatprep.subr.bf16.mxu0 0
      %681 = vmatpush1.bf16.xpose.msra.mxu0 0
      %682 = vmatprep.subr.bf16.mxu0 0
      %683 = vmatpush1.bf16.xpose.msra.mxu0 0
      %684 = vmatprep.subr.bf16.mxu0 0
      %685 = vmatpush1.bf16.xpose.msra.mxu0 0
      %686 = vmatprep.subr.bf16.mxu0 0
      %687 = vmatpush1.bf16.xpose.msra.mxu0 0
      %688 = vmatprep.subr.bf16.mxu0 0
      %689 = vmatpush1.bf16.xpose.msra.mxu0 0
      %690 = vmatprep.subr.bf16.mxu0 0
      %691 = vmatpush1.bf16.xpose.msra.mxu0 0
      %692 = vmatprep.mubr.bf16.mxu0 0
      %693 = vmatmul.mubr.bf16.gmra.mrb[0].mxu0 %v655
      %v694 = vpop.f32.mrb[0].mxu0
      %v695 = vadd.f32 0.0, %v694
      %v696 = vpop.f32.mrb[0].mxu0
      %v697 = vpop.f32.mrb[0].mxu0
      %v698 = vadd.f32 0.0, %v697
      %v699 = vpop.f32.mrb[0].mxu0
      %700 = vdwg.mxu0
      %vm701 = vcmask 130048
      %v702 = vsel %vm701, %v695, -inf
      %703 = vmax.xlane.f32.xlu0 %v702
      %v704 = vpop.xlane.xlu0 %703
      %v705 = vsel %vm701, %v698, -inf
      %706 = vmax.xlane.f32.xlu0 %v705
      %v707 = vpop.xlane.xlu0 %706
      %v708 = vsub.f32 %v695, %v704
      %v709 = vsub.f32 %v698, %v707
      %v710 = vmul.f32 %v708, 1.442695
      %v711 = vpow.pop %v710
      %v712 = vmul.f32 %v709, 1.442695
      %v713 = vpow.pop %v712
      %v714 = vsel %vm701, %v711, 0.0
      %715 = vadd.xlane.f32.xlu0 %v714
      %v716 = vpop.xlane.xlu0 %715
      %v717 = vsel %vm701, %v713, 0.0
      %718 = vadd.xlane.f32.xlu0 %v717
      %v719 = vpop.xlane.xlu0 %718
      %v720 = vrcp.pop %v716
      %v721 = vrcp.pop %v719
      %v722 = vmul.f32 %v711, %v720
      %v723 = vmul.f32 %v713, %v721
      %v724 = vpack.c.bf16 %v723, %v722
      %v726 = vsel %vm701, %v724, 0
      %728 = vmatprep.subr.bf16.mxu0 0
      %729 = vmatpush1.bf16.msra.mxu0 %v652
      %730 = vmatprep.subr.bf16.mxu0 0
      %731 = vmatpush1.bf16.msra.mxu0 0
      %732 = vmatprep.subr.bf16.mxu0 0
      %733 = vmatpush1.bf16.msra.mxu0 0
      %734 = vmatprep.subr.bf16.mxu0 0
      %735 = vmatpush1.bf16.msra.mxu0 0
      %736 = vmatprep.subr.bf16.mxu0 0
      %737 = vmatpush1.bf16.msra.mxu0 0
      %738 = vmatprep.subr.bf16.mxu0 0
      %739 = vmatpush1.bf16.msra.mxu0 0
      %740 = vmatprep.subr.bf16.mxu0 0
      %741 = vmatpush1.bf16.msra.mxu0 0
      %742 = vmatprep.subr.bf16.mxu0 0
      %743 = vmatpush1.bf16.msra.mxu0 0
      %744 = vmatprep.subr.bf16.mxu0 0
      %745 = vmatpush1.bf16.msra.mxu0 0
      %746 = vmatprep.subr.bf16.mxu0 0
      %747 = vmatpush1.bf16.msra.mxu0 0
      %748 = vmatprep.subr.bf16.mxu0 0
      %749 = vmatpush1.bf16.msra.mxu0 0
      %750 = vmatprep.subr.bf16.mxu0 0
      %751 = vmatpush1.bf16.msra.mxu0 0
      %752 = vmatprep.subr.bf16.mxu0 0
      %753 = vmatpush1.bf16.msra.mxu0 0
      %754 = vmatprep.subr.bf16.mxu0 0
      %755 = vmatpush1.bf16.msra.mxu0 0
      %756 = vmatprep.subr.bf16.mxu0 0
      %757 = vmatpush1.bf16.msra.mxu0 0
      %758 = vmatprep.subr.bf16.mxu0 0
      %759 = vmatpush1.bf16.msra.mxu0 0
      %760 = vmatprep.mubr.bf16.mxu0 0
      %761 = vmatmul.mubr.bf16.gmra.mrb[0].mxu0 %v726
      %v762 = vpop.f32.mrb[0].mxu0
      %v763 = vadd.f32 0.0, %v762
      %v764 = vpop.f32.mrb[0].mxu0
      %v765 = vpop.f32.mrb[0].mxu0
      %v766 = vadd.f32 0.0, %v765
      %v767 = vpop.f32.mrb[0].mxu0
      %768 = vdwg.mxu0
      %770 = vrot.lane.b32.xlu0 %v650, 96
      %v771 = vpop.permute.xlu0 %770
      %773 = vrot.lane.b32.xlu0 %v651, 96
      %v774 = vpop.permute.xlu0 %773
      %v776 = vsel %vm653, %v771, 0
      %v779 = vsel %vm653, %v774, 0
      %781 = vmatprep.subr.bf16.mxu0 0
      %782 = vmatpush1.bf16.xpose.msra.mxu0 %v779
      %783 = vmatprep.subr.bf16.mxu0 0
      %784 = vmatpush1.bf16.xpose.msra.mxu0 0
      %785 = vmatprep.subr.bf16.mxu0 0
      %786 = vmatpush1.bf16.xpose.msra.mxu0 0
      %787 = vmatprep.subr.bf16.mxu0 0
      %788 = vmatpush1.bf16.xpose.msra.mxu0 0
      %789 = vmatprep.subr.bf16.mxu0 0
      %790 = vmatpush1.bf16.xpose.msra.mxu0 0
      %791 = vmatprep.subr.bf16.mxu0 0
      %792 = vmatpush1.bf16.xpose.msra.mxu0 0
      %793 = vmatprep.subr.bf16.mxu0 0
      %794 = vmatpush1.bf16.xpose.msra.mxu0 0
      %795 = vmatprep.subr.bf16.mxu0 0
      %796 = vmatpush1.bf16.xpose.msra.mxu0 0
      %797 = vmatprep.subr.bf16.mxu0 0
      %798 = vmatpush1.bf16.xpose.msra.mxu0 0
      %799 = vmatprep.subr.bf16.mxu0 0
      %800 = vmatpush1.bf16.xpose.msra.mxu0 0
      %801 = vmatprep.subr.bf16.mxu0 0
      %802 = vmatpush1.bf16.xpose.msra.mxu0 0
      %803 = vmatprep.subr.bf16.mxu0 0
      %804 = vmatpush1.bf16.xpose.msra.mxu0 0
      %805 = vmatprep.subr.bf16.mxu0 0
      %806 = vmatpush1.bf16.xpose.msra.mxu0 0
      %807 = vmatprep.subr.bf16.mxu0 0
      %808 = vmatpush1.bf16.xpose.msra.mxu0 0
      %809 = vmatprep.subr.bf16.mxu0 0
      %810 = vmatpush1.bf16.xpose.msra.mxu0 0
      %811 = vmatprep.subr.bf16.mxu0 0
      %812 = vmatpush1.bf16.xpose.msra.mxu0 0
      %813 = vmatprep.mubr.bf16.mxu0 0
      %814 = vmatmul.mubr.bf16.gmra.mrb[0].mxu0 %v776
      %v815 = vpop.f32.mrb[0].mxu0
      %v816 = vadd.f32 0.0, %v815
      %v817 = vpop.f32.mrb[0].mxu0
      %v818 = vpop.f32.mrb[0].mxu0
      %v819 = vadd.f32 0.0, %v818
      %v820 = vpop.f32.mrb[0].mxu0
      %821 = vdwg.mxu0
      %v822 = vsel %vm701, %v816, -inf
      %823 = vmax.xlane.f32.xlu0 %v822
      %v824 = vpop.xlane.xlu0 %823
      %v825 = vsel %vm701, %v819, -inf
      %826 = vmax.xlane.f32.xlu0 %v825
      %v827 = vpop.xlane.xlu0 %826
      %v828 = vsub.f32 %v816, %v824
      %v829 = vsub.f32 %v819, %v827
      %v830 = vmul.f32 %v828, 1.442695
      %v831 = vpow.pop %v830
      %v832 = vmul.f32 %v829, 1.442695
      %v833 = vpow.pop %v832
      %v834 = vsel %vm701, %v831, 0.0
      %835 = vadd.xlane.f32.xlu0 %v834
      %v836 = vpop.xlane.xlu0 %835
      %v837 = vsel %vm701, %v833, 0.0
      %838 = vadd.xlane.f32.xlu0 %v837
      %v839 = vpop.xlane.xlu0 %838
      %v840 = vrcp.pop %v836
      %v841 = vrcp.pop %v839
      %v842 = vmul.f32 %v831, %v840
      %v843 = vmul.f32 %v833, %v841
      %v844 = vpack.c.bf16 %v843, %v842
      %846 = vrot.lane.b32.xlu0 %v652, 96
      %v847 = vpop.permute.xlu0 %846
      %v850 = vsel %vm701, %v844, 0
      %852 = vmatprep.subr.bf16.mxu0 0
      %853 = vmatpush1.bf16.msra.mxu0 %v847
      %854 = vmatprep.subr.bf16.mxu0 0
      %855 = vmatpush1.bf16.msra.mxu0 0
      %856 = vmatprep.subr.bf16.mxu0 0
      %857 = vmatpush1.bf16.msra.mxu0 0
      %858 = vmatprep.subr.bf16.mxu0 0
      %859 = vmatpush1.bf16.msra.mxu0 0
      %860 = vmatprep.subr.bf16.mxu0 0
      %861 = vmatpush1.bf16.msra.mxu0 0
      %862 = vmatprep.subr.bf16.mxu0 0
      %863 = vmatpush1.bf16.msra.mxu0 0
      %864 = vmatprep.subr.bf16.mxu0 0
      %865 = vmatpush1.bf16.msra.mxu0 0
      %866 = vmatprep.subr.bf16.mxu0 0
      %867 = vmatpush1.bf16.msra.mxu0 0
      %868 = vmatprep.subr.bf16.mxu0 0
      %869 = vmatpush1.bf16.msra.mxu0 0
      %870 = vmatprep.subr.bf16.mxu0 0
      %871 = vmatpush1.bf16.msra.mxu0 0
      %872 = vmatprep.subr.bf16.mxu0 0
      %873 = vmatpush1.bf16.msra.mxu0 0
      %874 = vmatprep.subr.bf16.mxu0 0
      %875 = vmatpush1.bf16.msra.mxu0 0
      %876 = vmatprep.subr.bf16.mxu0 0
      %877 = vmatpush1.bf16.msra.mxu0 0
      %878 = vmatprep.subr.bf16.mxu0 0
      %879 = vmatpush1.bf16.msra.mxu0 0
      %880 = vmatprep.subr.bf16.mxu0 0
      %881 = vmatpush1.bf16.msra.mxu0 0
      %882 = vmatprep.subr.bf16.mxu0 0
      %883 = vmatpush1.bf16.msra.mxu0 0
      %884 = vmatprep.mubr.bf16.mxu0 0
      %885 = vmatmul.mubr.bf16.gmra.mrb[0].mxu0 %v850
      %v886 = vpop.f32.mrb[0].mxu0
      %v887 = vadd.f32 0.0, %v886
      %v888 = vpop.f32.mrb[0].mxu0
      %v889 = vpop.f32.mrb[0].mxu0
      %v890 = vadd.f32 0.0, %v889
      %v891 = vpop.f32.mrb[0].mxu0
      %892 = vdwg.mxu0
      %893 = vrot.lane.b32.xlu0 %v650, 64
      %v894 = vpop.permute.xlu0 %893
      %895 = vrot.lane.b32.xlu0 %v651, 64
      %v896 = vpop.permute.xlu0 %895
      %v898 = vsel %vm653, %v894, 0
      %v901 = vsel %vm653, %v896, 0
      %903 = vmatprep.subr.bf16.mxu0 0
      %904 = vmatpush1.bf16.xpose.msra.mxu0 %v901
      %905 = vmatprep.subr.bf16.mxu0 0
      %906 = vmatpush1.bf16.xpose.msra.mxu0 0
      %907 = vmatprep.subr.bf16.mxu0 0
      %908 = vmatpush1.bf16.xpose.msra.mxu0 0
      %909 = vmatprep.subr.bf16.mxu0 0
      %910 = vmatpush1.bf16.xpose.msra.mxu0 0
      %911 = vmatprep.subr.bf16.mxu0 0
      %912 = vmatpush1.bf16.xpose.msra.mxu0 0
      %913 = vmatprep.subr.bf16.mxu0 0
      %914 = vmatpush1.bf16.xpose.msra.mxu0 0
      %915 = vmatprep.subr.bf16.mxu0 0
      %916 = vmatpush1.bf16.xpose.msra.mxu0 0
      %917 = vmatprep.subr.bf16.mxu0 0
      %918 = vmatpush1.bf16.xpose.msra.mxu0 0
      %919 = vmatprep.subr.bf16.mxu0 0
      %920 = vmatpush1.bf16.xpose.msra.mxu0 0
      %921 = vmatprep.subr.bf16.mxu0 0
      %922 = vmatpush1.bf16.xpose.msra.mxu0 0
      %923 = vmatprep.subr.bf16.mxu0 0
      %924 = vmatpush1.bf16.xpose.msra.mxu0 0
      %925 = vmatprep.subr.bf16.mxu0 0
      %926 = vmatpush1.bf16.xpose.msra.mxu0 0
      %927 = vmatprep.subr.bf16.mxu0 0
      %928 = vmatpush1.bf16.xpose.msra.mxu0 0
      %929 = vmatprep.subr.bf16.mxu0 0
      %930 = vmatpush1.bf16.xpose.msra.mxu0 0
      %931 = vmatprep.subr.bf16.mxu0 0
      %932 = vmatpush1.bf16.xpose.msra.mxu0 0
      %933 = vmatprep.subr.bf16.mxu0 0
      %934 = vmatpush1.bf16.xpose.msra.mxu0 0
      %935 = vmatprep.mubr.bf16.mxu0 0
      %936 = vmatmul.mubr.bf16.gmra.mrb[0].mxu0 %v898
      %v937 = vpop.f32.mrb[0].mxu0
      %v938 = vadd.f32 0.0, %v937
      %v939 = vpop.f32.mrb[0].mxu0
      %v940 = vpop.f32.mrb[0].mxu0
      %v941 = vadd.f32 0.0, %v940
      %v942 = vpop.f32.mrb[0].mxu0
      %943 = vdwg.mxu0
      %v944 = vsel %vm701, %v938, -inf
      %945 = vmax.xlane.f32.xlu0 %v944
      %v946 = vpop.xlane.xlu0 %945
      %v947 = vsel %vm701, %v941, -inf
      %948 = vmax.xlane.f32.xlu0 %v947
      %v949 = vpop.xlane.xlu0 %948
      %v950 = vsub.f32 %v938, %v946
      %v951 = vsub.f32 %v941, %v949
      %v952 = vmul.f32 %v950, 1.442695
      %v953 = vpow.pop %v952
      %v954 = vmul.f32 %v951, 1.442695
      %v955 = vpow.pop %v954
      %v956 = vsel %vm701, %v953, 0.0
      %957 = vadd.xlane.f32.xlu0 %v956
      %v958 = vpop.xlane.xlu0 %957
      %v959 = vsel %vm701, %v955, 0.0
      %960 = vadd.xlane.f32.xlu0 %v959
      %v961 = vpop.xlane.xlu0 %960
      %v962 = vrcp.pop %v958
      %v963 = vrcp.pop %v961
      %v964 = vmul.f32 %v953, %v962
      %v965 = vmul.f32 %v955, %v963
      %v966 = vpack.c.bf16 %v965, %v964
      %967 = vrot.lane.b32.xlu0 %v652, 64
      %v968 = vpop.permute.xlu0 %967
      %v971 = vsel %vm701, %v966, 0
      %973 = vmatprep.subr.bf16.mxu0 0
      %974 = vmatpush1.bf16.msra.mxu0 %v968
      %975 = vmatprep.subr.bf16.mxu0 0
      %976 = vmatpush1.bf16.msra.mxu0 0
      %977 = vmatprep.subr.bf16.mxu0 0
      %978 = vmatpush1.bf16.msra.mxu0 0
      %979 = vmatprep.subr.bf16.mxu0 0
      %980 = vmatpush1.bf16.msra.mxu0 0
      %981 = vmatprep.subr.bf16.mxu0 0
      %982 = vmatpush1.bf16.msra.mxu0 0
      %983 = vmatprep.subr.bf16.mxu0 0
      %984 = vmatpush1.bf16.msra.mxu0 0
      %985 = vmatprep.subr.bf16.mxu0 0
      %986 = vmatpush1.bf16.msra.mxu0 0
      %987 = vmatprep.subr.bf16.mxu0 0
      %988 = vmatpush1.bf16.msra.mxu0 0
      %989 = vmatprep.subr.bf16.mxu0 0
      %990 = vmatpush1.bf16.msra.mxu0 0
      %991 = vmatprep.subr.bf16.mxu0 0
      %992 = vmatpush1.bf16.msra.mxu0 0
      %993 = vmatprep.subr.bf16.mxu0 0
      %994 = vmatpush1.bf16.msra.mxu0 0
      %995 = vmatprep.subr.bf16.mxu0 0
      %996 = vmatpush1.bf16.msra.mxu0 0
      %997 = vmatprep.subr.bf16.mxu0 0
      %998 = vmatpush1.bf16.msra.mxu0 0
      %999 = vmatprep.subr.bf16.mxu0 0
      %1000 = vmatpush1.bf16.msra.mxu0 0
      %1001 = vmatprep.subr.bf16.mxu0 0
      %1002 = vmatpush1.bf16.msra.mxu0 0
      %1003 = vmatprep.subr.bf16.mxu0 0
      %1004 = vmatpush1.bf16.msra.mxu0 0
      %1005 = vmatprep.mubr.bf16.mxu0 0
      %1006 = vmatmul.mubr.bf16.gmra.mrb[0].mxu0 %v971
      %v1007 = vpop.f32.mrb[0].mxu0
      %v1008 = vadd.f32 0.0, %v1007
      %v1009 = vpop.f32.mrb[0].mxu0
      %v1010 = vpop.f32.mrb[0].mxu0
      %v1011 = vadd.f32 0.0, %v1010
      %v1012 = vpop.f32.mrb[0].mxu0
      %1013 = vdwg.mxu0
      %1014 = vrot.lane.b32.xlu0 %v650, 32
      %v1015 = vpop.permute.xlu0 %1014
      %1016 = vrot.lane.b32.xlu0 %v651, 32
      %v1017 = vpop.permute.xlu0 %1016
      %v1019 = vsel %vm653, %v1015, 0
      %v1022 = vsel %vm653, %v1017, 0
      %1024 = vmatprep.subr.bf16.mxu0 0
      %1025 = vmatpush1.bf16.xpose.msra.mxu0 %v1022
      %1026 = vmatprep.subr.bf16.mxu0 0
      %1027 = vmatpush1.bf16.xpose.msra.mxu0 0
      %1028 = vmatprep.subr.bf16.mxu0 0
      %1029 = vmatpush1.bf16.xpose.msra.mxu0 0
      %1030 = vmatprep.subr.bf16.mxu0 0
      %1031 = vmatpush1.bf16.xpose.msra.mxu0 0
      %1032 = vmatprep.subr.bf16.mxu0 0
      %1033 = vmatpush1.bf16.xpose.msra.mxu0 0
      %1034 = vmatprep.subr.bf16.mxu0 0
      %1035 = vmatpush1.bf16.xpose.msra.mxu0 0
      %1036 = vmatprep.subr.bf16.mxu0 0
      %1037 = vmatpush1.bf16.xpose.msra.mxu0 0
      %1038 = vmatprep.subr.bf16.mxu0 0
      %1039 = vmatpush1.bf16.xpose.msra.mxu0 0
      %1040 = vmatprep.subr.bf16.mxu0 0
      %1041 = vmatpush1.bf16.xpose.msra.mxu0 0
      %1042 = vmatprep.subr.bf16.mxu0 0
      %1043 = vmatpush1.bf16.xpose.msra.mxu0 0
      %1044 = vmatprep.subr.bf16.mxu0 0
      %1045 = vmatpush1.bf16.xpose.msra.mxu0 0
      %1046 = vmatprep.subr.bf16.mxu0 0
      %1047 = vmatpush1.bf16.xpose.msra.mxu0 0
      %1048 = vmatprep.subr.bf16.mxu0 0
      %1049 = vmatpush1.bf16.xpose.msra.mxu0 0
      %1050 = vmatprep.subr.bf16.mxu0 0
      %1051 = vmatpush1.bf16.xpose.msra.mxu0 0
      %1052 = vmatprep.subr.bf16.mxu0 0
      %1053 = vmatpush1.bf16.xpose.msra.mxu0 0
      %1054 = vmatprep.subr.bf16.mxu0 0
      %1055 = vmatpush1.bf16.xpose.msra.mxu0 0
      %1056 = vmatprep.mubr.bf16.mxu0 0
      %1057 = vmatmul.mubr.bf16.gmra.mrb[0].mxu0 %v1019
      %v1058 = vpop.f32.mrb[0].mxu0
      %v1059 = vadd.f32 0.0, %v1058
      %v1060 = vpop.f32.mrb[0].mxu0
      %v1061 = vpop.f32.mrb[0].mxu0
      %v1062 = vadd.f32 0.0, %v1061
      %v1063 = vpop.f32.mrb[0].mxu0
      %1064 = vdwg.mxu0
      %v1065 = vsel %vm701, %v1059, -inf
      %1066 = vmax.xlane.f32.xlu0 %v1065
      %v1067 = vpop.xlane.xlu0 %1066
      %v1068 = vsel %vm701, %v1062, -inf
      %1069 = vmax.xlane.f32.xlu0 %v1068
      %v1070 = vpop.xlane.xlu0 %1069
      %v1071 = vsub.f32 %v1059, %v1067
      %v1072 = vsub.f32 %v1062, %v1070
      %v1073 = vmul.f32 %v1071, 1.442695
      %v1074 = vpow.pop %v1073
      %v1075 = vmul.f32 %v1072, 1.442695
      %v1076 = vpow.pop %v1075
      %v1077 = vsel %vm701, %v1074, 0.0
      %1078 = vadd.xlane.f32.xlu0 %v1077
      %v1079 = vpop.xlane.xlu0 %1078
      %v1080 = vsel %vm701, %v1076, 0.0
      %1081 = vadd.xlane.f32.xlu0 %v1080
      %v1082 = vpop.xlane.xlu0 %1081
      %v1083 = vrcp.pop %v1079
      %v1084 = vrcp.pop %v1082
      %v1085 = vmul.f32 %v1074, %v1083
      %v1086 = vmul.f32 %v1076, %v1084
      %v1087 = vpack.c.bf16 %v1086, %v1085
      %1088 = vrot.lane.b32.xlu0 %v652, 32
      %v1089 = vpop.permute.xlu0 %1088
      %v1092 = vsel %vm701, %v1087, 0
      %1094 = vmatprep.subr.bf16.mxu0 0
      %1095 = vmatpush1.bf16.msra.mxu0 %v1089
      %1096 = vmatprep.subr.bf16.mxu0 0
      %1097 = vmatpush1.bf16.msra.mxu0 0
      %1098 = vmatprep.subr.bf16.mxu0 0
      %1099 = vmatpush1.bf16.msra.mxu0 0
      %1100 = vmatprep.subr.bf16.mxu0 0
      %1101 = vmatpush1.bf16.msra.mxu0 0
      %1102 = vmatprep.subr.bf16.mxu0 0
      %1103 = vmatpush1.bf16.msra.mxu0 0
      %1104 = vmatprep.subr.bf16.mxu0 0
      %1105 = vmatpush1.bf16.msra.mxu0 0
      %1106 = vmatprep.subr.bf16.mxu0 0
      %1107 = vmatpush1.bf16.msra.mxu0 0
      %1108 = vmatprep.subr.bf16.mxu0 0
      %1109 = vmatpush1.bf16.msra.mxu0 0
      %1110 = vmatprep.subr.bf16.mxu0 0
      %1111 = vmatpush1.bf16.msra.mxu0 0
      %1112 = vmatprep.subr.bf16.mxu0 0
      %1113 = vmatpush1.bf16.msra.mxu0 0
      %1114 = vmatprep.subr.bf16.mxu0 0
      %1115 = vmatpush1.bf16.msra.mxu0 0
      %1116 = vmatprep.subr.bf16.mxu0 0
      %1117 = vmatpush1.bf16.msra.mxu0 0
      %1118 = vmatprep.subr.bf16.mxu0 0
      %1119 = vmatpush1.bf16.msra.mxu0 0
      %1120 = vmatprep.subr.bf16.mxu0 0
      %1121 = vmatpush1.bf16.msra.mxu0 0
      %1122 = vmatprep.subr.bf16.mxu0 0
      %1123 = vmatpush1.bf16.msra.mxu0 0
      %1124 = vmatprep.subr.bf16.mxu0 0
      %1125 = vmatpush1.bf16.msra.mxu0 0
      %1126 = vmatprep.mubr.bf16.mxu0 0
      %1127 = vmatmul.mubr.bf16.gmra.mrb[0].mxu0 %v1092
      %v1128 = vpop.f32.mrb[0].mxu0
      %v1129 = vadd.f32 0.0, %v1128
      %v1130 = vpop.f32.mrb[0].mxu0
      %v1131 = vpop.f32.mrb[0].mxu0
      %v1132 = vadd.f32 0.0, %v1131
      %v1133 = vpop.f32.mrb[0].mxu0
      %1134 = vdwg.mxu0
      %1137 = vrot.lane.b32.xlu0 %v887, 32
      %v1138 = vpop.permute.xlu0 %1137
      %1139 = vrot.lane.b32.xlu0 %v890, 32
      %v1140 = vpop.permute.xlu0 %1139
      %1145 = vrot.lane.b32.xlu0 %v1008, 64
      %v1146 = vpop.permute.xlu0 %1145
      %1147 = vrot.lane.b32.xlu0 %v1011, 64
      %v1148 = vpop.permute.xlu0 %1147
      %1153 = vrot.lane.b32.xlu0 %v1129, 96
      %v1154 = vpop.permute.xlu0 %1153
      %1155 = vrot.lane.b32.xlu0 %v1132, 96
      %v1156 = vpop.permute.xlu0 %1155
      %v1159 = vsel %vm653, %v763, %v1138
      %v1160 = vsel %vm653, %v766, %v1140
      %vm1161 = vcmask 523264
      %v1162 = vsel %vm1161, %v1159, %v1146
      %v1163 = vsel %vm1161, %v1160, %v1148
      %vm1164 = vcmask 785408
      %v1165 = vsel %vm1164, %v1162, %v1154
      %v1166 = vsel %vm1164, %v1163, %v1156
      %v1167 = vpack.c.bf16 %v1166, %v1165
      %v1168 = vld [vmem:[%s6] sm:$0xf]
      %v1169 = vld [vmem:[%s6 + $0x4] sm:$0xf]
      %v1170 = vld [vmem:[%s6 + $0x8] sm:$0xf]
      %v1171 = vld [vmem:[%s6 + $0xc] sm:$0xf]
      %v1172 = vld [vmem:[%s6 + $0x10] sm:$0xf]
      %v1173 = vld [vmem:[%s6 + $0x14] sm:$0xf]
      %v1174 = vld [vmem:[%s6 + $0x18] sm:$0xf]
      %v1175 = vld [vmem:[%s6 + $0x1c] sm:$0xf]
      %v1176 = vld [vmem:[%s6 + $0x20] sm:$0xf]
      %v1177 = vld [vmem:[%s6 + $0x24] sm:$0xf]
      %v1178 = vld [vmem:[%s6 + $0x28] sm:$0xf]
      %v1179 = vld [vmem:[%s6 + $0x2c] sm:$0xf]
      %v1180 = vld [vmem:[%s6 + $0x30] sm:$0xf]
      %v1181 = vld [vmem:[%s6 + $0x34] sm:$0xf]
      %v1182 = vld [vmem:[%s6 + $0x38] sm:$0xf]
      %v1183 = vld [vmem:[%s6 + $0x3c] sm:$0xf]
      %v1200 = vunpack.c.l.b16 %v1168
      %v1201 = vunpack.c.l.b16 %v1169
      %v1202 = vunpack.c.l.b16 %v1170
      %v1203 = vunpack.c.l.b16 %v1171
      %v1204 = vunpack.c.l.b16 %v1172
      %v1205 = vunpack.c.l.b16 %v1173
      %v1206 = vunpack.c.l.b16 %v1174
      %v1207 = vunpack.c.l.b16 %v1175
      %v1208 = vunpack.c.l.b16 %v1176
      %v1209 = vunpack.c.l.b16 %v1177
      %v1210 = vunpack.c.l.b16 %v1178
      %v1211 = vunpack.c.l.b16 %v1179
      %v1212 = vunpack.c.l.b16 %v1180
      %v1213 = vunpack.c.l.b16 %v1181
      %v1214 = vunpack.c.l.b16 %v1182
      %v1215 = vunpack.c.l.b16 %v1183
      %v1216 = vpack.c.b16 %v1201, %v1200
      %v1217 = vpack.c.b16 %v1203, %v1202
      %v1218 = vpack.c.b16 %v1205, %v1204
      %v1219 = vpack.c.b16 %v1207, %v1206
      %v1220 = vpack.c.b16 %v1209, %v1208
      %v1221 = vpack.c.b16 %v1211, %v1210
      %v1222 = vpack.c.b16 %v1213, %v1212
      %v1223 = vpack.c.b16 %v1215, %v1214
      %1232 = vmatprep.subr.bf16.mxu0 0
      %1233 = vmatpush1.bf16.msra.mxu0 %v1216
      %1234 = vmatprep.subr.bf16.mxu0 0
      %1235 = vmatpush1.bf16.msra.mxu0 %v1217
      %1236 = vmatprep.subr.bf16.mxu0 0
      %1237 = vmatpush1.bf16.msra.mxu0 %v1218
      %1238 = vmatprep.subr.bf16.mxu0 0
      %1239 = vmatpush1.bf16.msra.mxu0 %v1219
      %1240 = vmatprep.subr.bf16.mxu0 0
      %1241 = vmatpush1.bf16.msra.mxu0 %v1220
      %1242 = vmatprep.subr.bf16.mxu0 0
      %1243 = vmatpush1.bf16.msra.mxu0 %v1221
      %1244 = vmatprep.subr.bf16.mxu0 0
      %1245 = vmatpush1.bf16.msra.mxu0 %v1222
      %1246 = vmatprep.subr.bf16.mxu0 0
      %1247 = vmatpush1.bf16.msra.mxu0 %v1223
      %1248 = vmatprep.subr.bf16.mxu0 0
      %1249 = vmatpush1.bf16.msra.mxu0 0
      %1250 = vmatprep.subr.bf16.mxu0 0
      %1251 = vmatpush1.bf16.msra.mxu0 0
      %1252 = vmatprep.subr.bf16.mxu0 0
      %1253 = vmatpush1.bf16.msra.mxu0 0
      %1254 = vmatprep.subr.bf16.mxu0 0
      %1255 = vmatpush1.bf16.msra.mxu0 0
      %1256 = vmatprep.subr.bf16.mxu0 0
      %1257 = vmatpush1.bf16.msra.mxu0 0
      %1258 = vmatprep.subr.bf16.mxu0 0
      %1259 = vmatpush1.bf16.msra.mxu0 0
      %1260 = vmatprep.subr.bf16.mxu0 0
      %1261 = vmatpush1.bf16.msra.mxu0 0
      %1262 = vmatprep.subr.bf16.mxu0 0
      %1263 = vmatpush1.bf16.msra.mxu0 0
      %1264 = vmatprep.mubr.bf16.mxu0 0
      %1265 = vmatmul.mubr.bf16.gmra.mrb[0].mxu0 %v1167
      %v1266 = vpop.f32.mrb[0].mxu0
      %v1267 = vadd.f32 0.0, %v1266
      %v1268 = vpop.f32.mrb[0].mxu0
      %v1269 = vpop.f32.mrb[0].mxu0
      %v1270 = vadd.f32 0.0, %v1269
      %v1271 = vpop.f32.mrb[0].mxu0
      %1272 = vdwg.mxu0
      %v1273 = vadd.f32 %v381, %v1267
      %v1274 = vadd.f32 %v382, %v1270
      %v1275 = vld [vmem:[%s7] sm:$0x1]
      %v1277 = vlaneseq
      %v1278 = vshrl.u32 %v1277, 7
      %v1279 = vsub.s32 0, %v1278
      %v1280 = vrot.slane %v1275, %v1279
      %v1282 = vadd.f32 %v1273, %v1280
      %v1283 = vadd.f32 %v1274, %v1280
      %v1284 = vld [vmem:[%s8] sm:$0x1]
      %v1285 = vld [vmem:[%s9] sm:$0x1]
      %1286 = vadd.xlane.f32.xlu0 %v1282
      %v1287 = vpop.xlane.xlu0 %1286
      %1288 = vadd.xlane.f32.xlu0 %v1283
      %v1289 = vpop.xlane.xlu0 %1288
      %v1290 = vrcp.pop 128.0
      %v1291 = vmul.f32 %v1287, %v1290
      %v1292 = vmul.f32 %v1289, %v1290
      %v1293 = vsub.f32 %v1282, %v1291
      %v1294 = vsub.f32 %v1283, %v1292
      %v1295 = vmul.f32 %v1293, %v1293
      %v1296 = vmul.f32 %v1294, %v1294
      %1297 = vadd.xlane.f32.xlu0 %v1295
      %v1298 = vpop.xlane.xlu0 %1297
      %1299 = vadd.xlane.f32.xlu0 %v1296
      %v1300 = vpop.xlane.xlu0 %1299
      %v1301 = vmul.f32 %v1298, %v1290
      %v1302 = vmul.f32 %v1300, %v1290
      %v1303 = vadd.f32 %v1301, 1e-05
      %v1304 = vadd.f32 %v1302, 1e-05
      %v1305 = vrsqrt.pop %v1303
      %v1306 = vrsqrt.pop %v1304
      %v1307 = vmul.f32 %v1293, %v1305
      %v1308 = vmul.f32 %v1294, %v1306
      %v1310 = vlaneseq
      %v1311 = vshrl.u32 %v1310, 7
      %v1312 = vsub.s32 0, %v1311
      %v1313 = vrot.slane %v1284, %v1312
      %v1315 = vmul.f32 %v1307, %v1313
      %v1316 = vmul.f32 %v1308, %v1313
      %v1318 = vlaneseq
      %v1319 = vshrl.u32 %v1318, 7
      %v1320 = vsub.s32 0, %v1319
      %v1321 = vrot.slane %v1285, %v1320
      %v1323 = vadd.f32 %v1315, %v1321
      %v1324 = vadd.f32 %v1316, %v1321
      %1325 = vst [vmem:[%s379] sm:$0xff] %v1323
      %1326 = vst [vmem:[%s379 + $0x8] sm:$0xff] %v1324
      %p1327 = scmp.lt.s32.totalorder %s21, 1
      %s1328 = scalar_select %p1327, %s21, 1
      %s1329 = smul.addr %s1328, 2
      %s1330 = smul.addr %s1329, 8
      %s1331 = scalar_lea.vmem %s10, %s1330
      // Predicated region
      $region61: #{transformer_forward.16} parent=59 // pred_check
        %p1332 = pneg %p259
      $region62: #{transformer_forward.16} parent=59 // pred_check_branch
        %1334 = sbr.rel (%p1332) target = $region64
      $region63: #{transformer_forward.16} parent=59 // pred_region
        _
      $region64: #{transformer_forward.16} parent=59 // pred_fallthru
        _
    $region60: #{transformer_forward.16} parent=5 // pred_fallthru
      _
    %p1335 = scmp.le.s32.totalorder 2, %s16
    // Predicated region
    $region65: #{transformer_forward.16} parent=5 // pred_check
      %p1336 = pneg %p1335
    $region66: #{transformer_forward.16} parent=5 // pred_check_branch
      %1338 = sbr.rel (%p1336) target = $region68
    $region67: #{transformer_forward.16} parent=5 // pred_region
      %s1339 = ssub.s32 %s16, 2
      // Predicated region
      $region69: #{transformer_forward.16} parent=67 // pred_check
        %p1340 = pneg %p265
      $region70: #{transformer_forward.16} parent=67 // pred_check_branch
        %1342 = sbr.rel (%p1340) target = $region72
      $region71: #{transformer_forward.16} parent=67 // pred_region
        %p1343 = scmp.lt.s32.totalorder %s22, 1
        %s1344 = scalar_select %p1343, %s22, 1
        %s1345 = smul.addr %s1344, 2
        %s1346 = smul.addr %s1345, 8
        %s1347 = scalar_lea.vmem %s10, %s1346
      $region72: #{transformer_forward.16} parent=67 // pred_fallthru
        _
    $region68: #{transformer_forward.16} parent=5 // pred_fallthru
      _
  $region6: #{transformer_forward.16} parent=0 // loop_footer
    %s20 = sadd.s32 1, %s16
  $region7: #{transformer_forward.16} parent=0 // loop_footer_branch
    %15 = sbr.rel target = $region3
  $region8: #{transformer_forward.16} parent=0 // loop_exit
    _

</llo_original>
